<compile_context>
chip_gen: v7x
topology: tpu7x:2x2x1
jax: 0.10.0
libtpu: 0.0.40
codegen_flags: <defaults>
</compile_context>

<pallas_src>
import jax
import jax.numpy as jnp
import numpy as np
from jax import lax
from jax.experimental import pallas as pl
from jax.experimental.pallas import tpu as pltpu

CONV_K = 3                      # conv_size
POOL = 5                        # pool_size
H = W = 28                      # module hard-codes _in_size = (1, 28, 28)
HW = H * W                      # 784
OH, OW = H // POOL, W // POOL   # 5, 5
PP = OH * OW                    # 25 pooled positions per channel
LFLAT = (H + 2) * W + 2         # 842: H-padded rows flattened + 1 zero front + 1 zero back
PADBUF = HW + (POOL - 1) * W    # 896: scratch lane width for shifted-max reads


# ----------------------------------------------------------------------------
# Fused kernel: one grid step = one image, everything in VMEM
# ----------------------------------------------------------------------------
def fused_forward_kernel(x_ref, cmask_ref, sel_ref, wc1_ref, bc1_ref,
                         wc2_ref, bc2_ref, m1_ref, w1_ref, b1_ref,
                         m2_ref, w2_ref, b2_ref, o_ref,
                         xf2_scr, scr_a, scr_b, flat_scr):
    cin = x_ref.shape[1]
    c1 = wc1_ref.shape[0]
    c2 = wc2_ref.shape[0]
    cmask = cmask_ref[...]                                   # (3, HW)
    wc1 = wc1_ref[...]                                       # (c1, 9*cin)

    # ---- conv1 + ReLU: 3x3 'same' conv as 9*cin VPU broadcast-FMAs ----------
    acc1 = jnp.zeros((c1, HW), jnp.float32)
    for dy in range(CONV_K):
        for dx in range(CONV_K):
            off = dy * W + dx
            tap = x_ref[0, :, off:off + HW]                  # (cin, HW) shifted slab
            if dx != 1:
                tap = tap * cmask[dx:dx + 1, :]              # zero row-wrap columns
            for ci in range(cin):
                col = (dy * CONV_K + dx) * cin + ci
                acc1 = acc1 + wc1[:, col:col + 1] * tap[ci:ci + 1, :]
    a1 = jnp.maximum(acc1 + bc1_ref[...], 0.0)               # (c1, HW)

    # ---- re-embed a1 in the flat H-padded layout used by the tap slices -----
    xf2_scr[...] = jnp.zeros(xf2_scr.shape, jnp.float32)
    xf2_scr[:, W + 1:W + 1 + HW] = a1

    # ---- conv2 + ReLU: fold the 9 taps into one K = 9*c1 matmul -------------
    taps = []
    for dy in range(CONV_K):
        for dx in range(CONV_K):
            off = dy * W + dx
            t = xf2_scr[:, off:off + HW]                     # (c1, HW)
            if dx != 1:
                t = t * cmask[dx:dx + 1, :]
            taps.append(t)
    p_taps = jnp.concatenate(taps, axis=0)                   # (9*c1, HW)
    a2 = jnp.dot(wc2_ref[...], p_taps, preferred_element_type=jnp.float32)
    a2 = jnp.maximum(a2 + bc2_ref[...], 0.0)                 # (c2, HW)

    # ---- max_pool2d(5): shifted-slab maxes + one 0/1 selection matmul -------
    scr_a[:, :HW] = a2
    scr_a[:, HW:] = jnp.zeros((c2, PADBUF - HW), jnp.float32)
    hmax = scr_a[:, 0:HW]
    for j in range(1, POOL):                                 # horizontal max
        hmax = jnp.maximum(hmax, scr_a[:, j:j + HW])
    scr_b[:, :HW] = hmax
    scr_b[:, HW:] = jnp.zeros((c2, PADBUF - HW), jnp.float32)
    vmax = scr_b[:, 0:HW]
    for i in range(1, POOL):                                 # vertical max
        vmax = jnp.maximum(vmax, scr_b[:, i * W:i * W + HW])
    # stride-5 downsample: exact selection via a 0/1 matrix (lane-dense, one MXU pass)
    pooled = jnp.dot(vmax, sel_ref[...], preferred_element_type=jnp.float32)  # (c2, PP)

    # ---- MC-dropout(0.25) + flatten in PyTorch NCHW order -------------------
    pd = pooled * m1_ref[0]                                  # (c2, PP)
    for c in range(c2):
        flat_scr[:, c * PP:(c + 1) * PP] = pd[c:c + 1, :]

    # ---- l1 + ReLU + MC-dropout(0.5) + l2 -----------------------------------
    h = jnp.dot(flat_scr[...], w1_ref[...], preferred_element_type=jnp.float32)
    h = jnp.maximum(h + b1_ref[...], 0.0) * m2_ref[0]
    o_ref[0] = jnp.dot(h, w2_ref[...], preferred_element_type=jnp.float32) + b2_ref[...]


# ----------------------------------------------------------------------------
# Host-side prep (done once, outside the jitted forward)
# ----------------------------------------------------------------------------
def pack_params(params):
    """Pre-pack weights into kernel layouts (hoisted out of the forward)."""
    co1, ci1, kh, kw = params["conv1_w"].shape
    co2, ci2, _, _ = params["conv2_w"].shape
    return {
        # (Cout, Cin, kh, kw) -> (Cout, kh*kw*Cin); column = (dy*3+dx)*Cin + ci
        "wc1": jnp.transpose(params["conv1_w"], (0, 2, 3, 1)).reshape(co1, kh * kw * ci1),
        "bc1": params["conv1_b"].reshape(co1, 1),
        "wc2": jnp.transpose(params["conv2_w"], (0, 2, 3, 1)).reshape(co2, kh * kw * ci2),
        "bc2": params["conv2_b"].reshape(co2, 1),
        "w1t": params["l1_w"].T,                       # (h_size, n_units)
        "b1": params["l1_b"].reshape(1, -1),
        "w2t": params["l2_w"].T,                       # (n_units, n_out)
        "b2": params["l2_b"].reshape(1, -1),
    }


def make_colmask():
    """Per-tap column masks: zero the row-wrap positions of the flat shifts."""
    col = np.arange(HW) % W
    m = np.ones((3, HW), np.float32)
    m[0, col == 0] = 0.0          # dx = 0 reads x-1 -> invalid at x == 0
    m[2, col == W - 1] = 0.0      # dx = 2 reads x+1 -> invalid at x == W-1
    return jnp.asarray(m)


def make_pool_select():
    """0/1 matrix: flat position (5*y0)*W + 5*x0 -> pooled slot y0*OW + x0."""
    sel = np.zeros((HW, PP), np.float32)
    for y0 in range(OH):
        for x0 in range(OW):
            sel[(y0 * POOL) * W + x0 * POOL, y0 * OW + x0] = 1.0
    return jnp.asarray(sel)


def to_flat_padded(x_nchw):
    """(N, Cin, 28, 28) -> (N, Cin, 842): zero row above/below + 1 zero elem front/back."""
    n, cin, h, w = x_nchw.shape
    xp = jnp.pad(x_nchw, ((0, 0), (0, 0), (1, 1), (0, 0)))    # (n, cin, 30, 28)
    xf = xp.reshape(n, cin, (h + 2) * w)
    return jnp.pad(xf, ((0, 0), (0, 0), (1, 1)))              # (n, cin, 842)


def bayesian_convnet_forward(x_nchw, packed, mask1, mask2, colmask, sel):
    n, cin = x_nchw.shape[0], x_nchw.shape[1]
    c1 = packed["wc1"].shape[0]
    c2 = packed["wc2"].shape[0]
    h_size, n_units = packed["w1t"].shape
    n_out = packed["w2t"].shape[1]

    xflat = to_flat_padded(x_nchw)
    mask2_3d = mask2.reshape(n, 1, n_units)

    out = pl.pallas_call(
        fused_forward_kernel,
        out_shape=jax.ShapeDtypeStruct((n, 1, n_out), jnp.float32),
        grid=(n,),
        in_specs=[
            pl.BlockSpec((1, cin, LFLAT), lambda i: (i, 0, 0)),            # x (flat, padded)
            pl.BlockSpec((3, HW), lambda i: (0, 0)),                       # column wrap masks
            pl.BlockSpec((HW, PP), lambda i: (0, 0)),                      # pool selection
            pl.BlockSpec((c1, CONV_K * CONV_K * cin), lambda i: (0, 0)),   # conv1 weights
            pl.BlockSpec((c1, 1), lambda i: (0, 0)),                       # conv1 bias
            pl.BlockSpec((c2, CONV_K * CONV_K * c1), lambda i: (0, 0)),    # conv2 weights
            pl.BlockSpec((c2, 1), lambda i: (0, 0)),                       # conv2 bias
            pl.BlockSpec((1, c2, PP), lambda i: (i, 0, 0)),                # dropout1 mask
            pl.BlockSpec((h_size, n_units), lambda i: (0, 0)),             # l1 W^T
            pl.BlockSpec((1, n_units), lambda i: (0, 0)),                  # l1 bias
            pl.BlockSpec((1, 1, n_units), lambda i: (i, 0, 0)),            # dropout2 mask
            pl.BlockSpec((n_units, n_out), lambda i: (0, 0)),              # l2 W^T
            pl.BlockSpec((1, n_out), lambda i: (0, 0)),                    # l2 bias
        ],
        out_specs=pl.BlockSpec((1, 1, n_out), lambda i: (i, 0, 0)),
        scratch_shapes=[
            pltpu.VMEM((c1, LFLAT), jnp.float32),    # conv1 output in flat-padded form
            pltpu.VMEM((c2, PADBUF), jnp.float32),   # pool horizontal-shift buffer
            pltpu.VMEM((c2, PADBUF), jnp.float32),   # pool vertical-shift buffer
            pltpu.VMEM((1, h_size), jnp.float32),    # flattened MLP input
        ],
        compiler_params=pltpu.CompilerParams(dimension_semantics=("parallel",)),
    )(xflat, colmask, sel, packed["wc1"], packed["bc1"], packed["wc2"],
      packed["bc2"], mask1, packed["w1t"], packed["b1"], mask2_3d,
      packed["w2t"], packed["b2"])
    return out.reshape(n, n_out)


# ----------------------------------------------------------------------------
# Reference (pure JAX/XLA) for a correctness check
# ----------------------------------------------------------------------------
def reference_forward(x_nchw, params, mask1, mask2):
    x = jnp.transpose(x_nchw, (0, 2, 3, 1))
    dn = ("NHWC", "HWIO", "NHWC")
    w1 = jnp.transpose(params["conv1_w"], (2, 3, 1, 0))
    h = lax.conv_general_dilated(x, w1, (1, 1), "SAME", dimension_numbers=dn,
                                 precision=lax.Precision.HIGHEST)
    h = jax.nn.relu(h + params["conv1_b"])
    w2 = jnp.transpose(params["conv2_w"], (2, 3, 1, 0))
    h = lax.conv_general_dilated(h, w2, (1, 1), "SAME", dimension_numbers=dn,
                                 precision=lax.Precision.HIGHEST)
    h = jax.nn.relu(h + params["conv2_b"])
    h = lax.reduce_window(h, -jnp.inf, lax.max,
                          (1, POOL, POOL, 1), (1, POOL, POOL, 1), "VALID")
    n, oh, ow, c = h.shape
    h = jnp.transpose(h, (0, 3, 1, 2)).reshape(n, c, oh * ow) * mask1   # dropout1
    h = h.reshape(n, c * oh * ow)                                        # NCHW flatten
    h = jax.nn.relu(h @ params["l1_w"].T + params["l1_b"])
    h = h * mask2                                                        # dropout2
    return h @ params["l2_w"].T + params["l2_b"]


# ----------------------------------------------------------------------------
# Main
# ----------------------------------------------------------------------------
if __name__ == "__main__":
    # Small module-consistent config: spatial must be 28x28 (module hard-codes
    # _in_size); shrink channels / hidden units instead.
    BATCH, N_IN, N_FILTER, N_UNITS, N_OUT = 2, 1, 8, 32, 10
    H_SIZE = 1 * N_FILTER * OH * OW                  # 1 * 8 * 5 * 5 = 200

    key = jax.random.PRNGKey(0)
    ks = jax.random.split(key, 11)

    def kaiming(k, shape, fan_in):
        return jax.random.normal(k, shape, jnp.float32) * np.sqrt(2.0 / fan_in)

    def unif(k, shape, fan_in):
        b = 1.0 / np.sqrt(fan_in)
        return jax.random.uniform(k, shape, jnp.float32, -b, b)

    params = {
        "conv1_w": kaiming(ks[0], (N_FILTER, N_IN, CONV_K, CONV_K), N_IN * CONV_K * CONV_K),
        "conv1_b": unif(ks[1], (N_FILTER,), N_IN * CONV_K * CONV_K),
        "conv2_w": kaiming(ks[2], (N_FILTER, N_FILTER, CONV_K, CONV_K), N_FILTER * CONV_K * CONV_K),
        "conv2_b": unif(ks[3], (N_FILTER,), N_FILTER * CONV_K * CONV_K),
        "l1_w": kaiming(ks[4], (N_UNITS, H_SIZE), H_SIZE),
        "l1_b": unif(ks[5], (N_UNITS,), H_SIZE),
        "l2_w": kaiming(ks[6], (N_OUT, N_UNITS), N_UNITS),
        "l2_b": unif(ks[7], (N_OUT,), N_UNITS),
    }

    x = jax.random.normal(ks[8], (BATCH, N_IN, H, W), jnp.float32)

    # MCDropout: always-on inverted dropout; masks drawn deterministically host-side.
    p_drop1, p_drop2 = 0.25, 0.5
    mask1 = (jax.random.bernoulli(ks[9], 1.0 - p_drop1, (BATCH, N_FILTER, PP))
             .astype(jnp.float32) / (1.0 - p_drop1))
    mask2 = (jax.random.bernoulli(ks[10], 1.0 - p_drop2, (BATCH, N_UNITS))
             .astype(jnp.float32) / (1.0 - p_drop2))

    # Hoisted, done once: weight packing + constant masks / selection matrix.
    packed = pack_params(params)
    colmask = make_colmask()
    sel = make_pool_select()

    fwd = jax.jit(bayesian_convnet_forward)
    out = jax.block_until_ready(fwd(x, packed, mask1, mask2, colmask, sel))

    ref = jax.block_until_ready(reference_forward(x, params, mask1, mask2))
    assert out.shape == (BATCH, N_OUT), out.shape
    if not np.allclose(np.asarray(out), np.asarray(ref), rtol=2e-2, atol=2e-2):
        raise AssertionError("Pallas output does not match JAX reference")

    print("KERNEL_OK")
</pallas_src>

<mosaic_0001>
module attributes {stable_mosaic.version = 11 : i64} {
  func.func @fused_forward_kernel(%arg0: i32, %arg1: memref<1x1x842xf32, #tpu.memory_space<vmem>>, %arg2: memref<3x784xf32, #tpu.memory_space<vmem>>, %arg3: memref<784x25xf32, #tpu.memory_space<vmem>>, %arg4: memref<8x9xf32, #tpu.memory_space<vmem>>, %arg5: memref<8x1xf32, #tpu.memory_space<vmem>>, %arg6: memref<8x72xf32, #tpu.memory_space<vmem>>, %arg7: memref<8x1xf32, #tpu.memory_space<vmem>>, %arg8: memref<1x8x25xf32, #tpu.memory_space<vmem>>, %arg9: memref<200x32xf32, #tpu.memory_space<vmem>>, %arg10: memref<1x32xf32, #tpu.memory_space<vmem>>, %arg11: memref<1x1x32xf32, #tpu.memory_space<vmem>>, %arg12: memref<32x10xf32, #tpu.memory_space<vmem>>, %arg13: memref<1x10xf32, #tpu.memory_space<vmem>>, %arg14: memref<1x1x10xf32, #tpu.memory_space<vmem>>, %arg15: memref<8x842xf32, #tpu.memory_space<vmem>>, %arg16: memref<8x896xf32, #tpu.memory_space<vmem>>, %arg17: memref<8x896xf32, #tpu.memory_space<vmem>>, %arg18: memref<1x200xf32, #tpu.memory_space<vmem>>) attributes {dimension_semantics = [#tpu.dimension_semantics<parallel>], iteration_bounds = array<i64: 2>, scalar_prefetch = 0 : i64, scratch_operands = 4 : i64, tpu.core_type = #tpu.core_type<tc>, window_params = [{transform_indices = @transform_0, window_bounds = array<i64: 1, 1, 842>}, {pipeline_mode = #tpu.pipeline_mode<synchronous>, transform_indices = @transform_1, window_bounds = array<i64: 3, 784>}, {pipeline_mode = #tpu.pipeline_mode<synchronous>, transform_indices = @transform_2, window_bounds = array<i64: 784, 25>}, {pipeline_mode = #tpu.pipeline_mode<synchronous>, transform_indices = @transform_3, window_bounds = array<i64: 8, 9>}, {pipeline_mode = #tpu.pipeline_mode<synchronous>, transform_indices = @transform_4, window_bounds = array<i64: 8, 1>}, {pipeline_mode = #tpu.pipeline_mode<synchronous>, transform_indices = @transform_5, window_bounds = array<i64: 8, 72>}, {pipeline_mode = #tpu.pipeline_mode<synchronous>, transform_indices = @transform_6, window_bounds = array<i64: 8, 1>}, {transform_indices = @transform_7, window_bounds = array<i64: 1, 8, 25>}, {pipeline_mode = #tpu.pipeline_mode<synchronous>, transform_indices = @transform_8, window_bounds = array<i64: 200, 32>}, {pipeline_mode = #tpu.pipeline_mode<synchronous>, transform_indices = @transform_9, window_bounds = array<i64: 1, 32>}, {transform_indices = @transform_10, window_bounds = array<i64: 1, 1, 32>}, {pipeline_mode = #tpu.pipeline_mode<synchronous>, transform_indices = @transform_11, window_bounds = array<i64: 32, 10>}, {pipeline_mode = #tpu.pipeline_mode<synchronous>, transform_indices = @transform_12, window_bounds = array<i64: 1, 10>}, {transform_indices = @transform_13, window_bounds = array<i64: 1, 1, 10>}]} {
    %c0 = arith.constant 0 : index
    %c0_0 = arith.constant 0 : index
    %0 = vector.load %arg2[%c0, %c0_0] : memref<3x784xf32, #tpu.memory_space<vmem>>, vector<3x784xf32>
    %c0_1 = arith.constant 0 : index
    %c0_2 = arith.constant 0 : index
    %1 = vector.load %arg4[%c0_1, %c0_2] : memref<8x9xf32, #tpu.memory_space<vmem>>, vector<8x9xf32>
    %cst = arith.constant 0.000000e+00 : f32
    %2 = vector.broadcast %cst : f32 to vector<8x784xf32>
    %c0_3 = arith.constant 0 : index
    %c0_4 = arith.constant 0 : index
    %c0_5 = arith.constant 0 : index
    %3 = vector.load %arg1[%c0_3, %c0_4, %c0_5] : memref<1x1x842xf32, #tpu.memory_space<vmem>>, vector<1x1x784xf32>
    %4 = vector.shape_cast %3 : vector<1x1x784xf32> to vector<1x784xf32>
    %5 = vector.extract_strided_slice %0 {offsets = [0, 0], sizes = [1, 784], strides = [1, 1]} : vector<3x784xf32> to vector<1x784xf32>
    %6 = arith.mulf %4, %5 : vector<1x784xf32>
    %7 = vector.extract_strided_slice %1 {offsets = [0, 0], sizes = [8, 1], strides = [1, 1]} : vector<8x9xf32> to vector<8x1xf32>
    %8 = vector.broadcast %7 : vector<8x1xf32> to vector<8x784xf32>
    %9 = vector.broadcast %6 : vector<1x784xf32> to vector<8x784xf32>
    %10 = arith.mulf %8, %9 : vector<8x784xf32>
    %11 = arith.addf %2, %10 : vector<8x784xf32>
    %c0_6 = arith.constant 0 : index
    %c0_7 = arith.constant 0 : index
    %c1 = arith.constant 1 : index
    %12 = vector.load %arg1[%c0_6, %c0_7, %c1] : memref<1x1x842xf32, #tpu.memory_space<vmem>>, vector<1x1x784xf32>
    %13 = vector.shape_cast %12 : vector<1x1x784xf32> to vector<1x784xf32>
    %14 = vector.extract_strided_slice %1 {offsets = [0, 1], sizes = [8, 1], strides = [1, 1]} : vector<8x9xf32> to vector<8x1xf32>
    %15 = vector.broadcast %14 : vector<8x1xf32> to vector<8x784xf32>
    %16 = vector.broadcast %13 : vector<1x784xf32> to vector<8x784xf32>
    %17 = arith.mulf %15, %16 : vector<8x784xf32>
    %18 = arith.addf %11, %17 : vector<8x784xf32>
    %c0_8 = arith.constant 0 : index
    %c0_9 = arith.constant 0 : index
    %c2 = arith.constant 2 : index
    %19 = vector.load %arg1[%c0_8, %c0_9, %c2] : memref<1x1x842xf32, #tpu.memory_space<vmem>>, vector<1x1x784xf32>
    %20 = vector.shape_cast %19 : vector<1x1x784xf32> to vector<1x784xf32>
    %21 = vector.extract_strided_slice %0 {offsets = [2, 0], sizes = [1, 784], strides = [1, 1]} : vector<3x784xf32> to vector<1x784xf32>
    %22 = arith.mulf %20, %21 : vector<1x784xf32>
    %23 = vector.extract_strided_slice %1 {offsets = [0, 2], sizes = [8, 1], strides = [1, 1]} : vector<8x9xf32> to vector<8x1xf32>
    %24 = vector.broadcast %23 : vector<8x1xf32> to vector<8x784xf32>
    %25 = vector.broadcast %22 : vector<1x784xf32> to vector<8x784xf32>
    %26 = arith.mulf %24, %25 : vector<8x784xf32>
    %27 = arith.addf %18, %26 : vector<8x784xf32>
    %c0_10 = arith.constant 0 : index
    %c0_11 = arith.constant 0 : index
    %c28 = arith.constant 28 : index
    %28 = vector.load %arg1[%c0_10, %c0_11, %c28] : memref<1x1x842xf32, #tpu.memory_space<vmem>>, vector<1x1x784xf32>
    %29 = vector.shape_cast %28 : vector<1x1x784xf32> to vector<1x784xf32>
    %30 = vector.extract_strided_slice %0 {offsets = [0, 0], sizes = [1, 784], strides = [1, 1]} : vector<3x784xf32> to vector<1x784xf32>
    %31 = arith.mulf %29, %30 : vector<1x784xf32>
    %32 = vector.extract_strided_slice %1 {offsets = [0, 3], sizes = [8, 1], strides = [1, 1]} : vector<8x9xf32> to vector<8x1xf32>
    %33 = vector.broadcast %32 : vector<8x1xf32> to vector<8x784xf32>
    %34 = vector.broadcast %31 : vector<1x784xf32> to vector<8x784xf32>
    %35 = arith.mulf %33, %34 : vector<8x784xf32>
    %36 = arith.addf %27, %35 : vector<8x784xf32>
    %c0_12 = arith.constant 0 : index
    %c0_13 = arith.constant 0 : index
    %c29 = arith.constant 29 : index
    %37 = vector.load %arg1[%c0_12, %c0_13, %c29] : memref<1x1x842xf32, #tpu.memory_space<vmem>>, vector<1x1x784xf32>
    %38 = vector.shape_cast %37 : vector<1x1x784xf32> to vector<1x784xf32>
    %39 = vector.extract_strided_slice %1 {offsets = [0, 4], sizes = [8, 1], strides = [1, 1]} : vector<8x9xf32> to vector<8x1xf32>
    %40 = vector.broadcast %39 : vector<8x1xf32> to vector<8x784xf32>
    %41 = vector.broadcast %38 : vector<1x784xf32> to vector<8x784xf32>
    %42 = arith.mulf %40, %41 : vector<8x784xf32>
    %43 = arith.addf %36, %42 : vector<8x784xf32>
    %c0_14 = arith.constant 0 : index
    %c0_15 = arith.constant 0 : index
    %c30 = arith.constant 30 : index
    %44 = vector.load %arg1[%c0_14, %c0_15, %c30] : memref<1x1x842xf32, #tpu.memory_space<vmem>>, vector<1x1x784xf32>
    %45 = vector.shape_cast %44 : vector<1x1x784xf32> to vector<1x784xf32>
    %46 = vector.extract_strided_slice %0 {offsets = [2, 0], sizes = [1, 784], strides = [1, 1]} : vector<3x784xf32> to vector<1x784xf32>
    %47 = arith.mulf %45, %46 : vector<1x784xf32>
    %48 = vector.extract_strided_slice %1 {offsets = [0, 5], sizes = [8, 1], strides = [1, 1]} : vector<8x9xf32> to vector<8x1xf32>
    %49 = vector.broadcast %48 : vector<8x1xf32> to vector<8x784xf32>
    %50 = vector.broadcast %47 : vector<1x784xf32> to vector<8x784xf32>
    %51 = arith.mulf %49, %50 : vector<8x784xf32>
    %52 = arith.addf %43, %51 : vector<8x784xf32>
    %c0_16 = arith.constant 0 : index
    %c0_17 = arith.constant 0 : index
    %c56 = arith.constant 56 : index
    %53 = vector.load %arg1[%c0_16, %c0_17, %c56] : memref<1x1x842xf32, #tpu.memory_space<vmem>>, vector<1x1x784xf32>
    %54 = vector.shape_cast %53 : vector<1x1x784xf32> to vector<1x784xf32>
    %55 = vector.extract_strided_slice %0 {offsets = [0, 0], sizes = [1, 784], strides = [1, 1]} : vector<3x784xf32> to vector<1x784xf32>
    %56 = arith.mulf %54, %55 : vector<1x784xf32>
    %57 = vector.extract_strided_slice %1 {offsets = [0, 6], sizes = [8, 1], strides = [1, 1]} : vector<8x9xf32> to vector<8x1xf32>
    %58 = vector.broadcast %57 : vector<8x1xf32> to vector<8x784xf32>
    %59 = vector.broadcast %56 : vector<1x784xf32> to vector<8x784xf32>
    %60 = arith.mulf %58, %59 : vector<8x784xf32>
    %61 = arith.addf %52, %60 : vector<8x784xf32>
    %c0_18 = arith.constant 0 : index
    %c0_19 = arith.constant 0 : index
    %c57 = arith.constant 57 : index
    %62 = vector.load %arg1[%c0_18, %c0_19, %c57] : memref<1x1x842xf32, #tpu.memory_space<vmem>>, vector<1x1x784xf32>
    %63 = vector.shape_cast %62 : vector<1x1x784xf32> to vector<1x784xf32>
    %64 = vector.extract_strided_slice %1 {offsets = [0, 7], sizes = [8, 1], strides = [1, 1]} : vector<8x9xf32> to vector<8x1xf32>
    %65 = vector.broadcast %64 : vector<8x1xf32> to vector<8x784xf32>
    %66 = vector.broadcast %63 : vector<1x784xf32> to vector<8x784xf32>
    %67 = arith.mulf %65, %66 : vector<8x784xf32>
    %68 = arith.addf %61, %67 : vector<8x784xf32>
    %c0_20 = arith.constant 0 : index
    %c0_21 = arith.constant 0 : index
    %c58 = arith.constant 58 : index
    %69 = vector.load %arg1[%c0_20, %c0_21, %c58] : memref<1x1x842xf32, #tpu.memory_space<vmem>>, vector<1x1x784xf32>
    %70 = vector.shape_cast %69 : vector<1x1x784xf32> to vector<1x784xf32>
    %71 = vector.extract_strided_slice %0 {offsets = [2, 0], sizes = [1, 784], strides = [1, 1]} : vector<3x784xf32> to vector<1x784xf32>
    %72 = arith.mulf %70, %71 : vector<1x784xf32>
    %73 = vector.extract_strided_slice %1 {offsets = [0, 8], sizes = [8, 1], strides = [1, 1]} : vector<8x9xf32> to vector<8x1xf32>
    %74 = vector.broadcast %73 : vector<8x1xf32> to vector<8x784xf32>
    %75 = vector.broadcast %72 : vector<1x784xf32> to vector<8x784xf32>
    %76 = arith.mulf %74, %75 : vector<8x784xf32>
    %77 = arith.addf %68, %76 : vector<8x784xf32>
    %c0_22 = arith.constant 0 : index
    %c0_23 = arith.constant 0 : index
    %78 = vector.load %arg5[%c0_22, %c0_23] : memref<8x1xf32, #tpu.memory_space<vmem>>, vector<8x1xf32>
    %79 = vector.broadcast %78 : vector<8x1xf32> to vector<8x784xf32>
    %80 = arith.addf %77, %79 : vector<8x784xf32>
    %cst_24 = arith.constant 0.000000e+00 : f32
    %81 = vector.broadcast %cst_24 : f32 to vector<8x784xf32>
    %82 = arith.maximumf %80, %81 : vector<8x784xf32>
    %cst_25 = arith.constant 0.000000e+00 : f32
    %83 = vector.broadcast %cst_25 : f32 to vector<8x842xf32>
    %c0_26 = arith.constant 0 : index
    %c0_27 = arith.constant 0 : index
    %84 = vector.load %arg15[%c0_26, %c0_27] : memref<8x842xf32, #tpu.memory_space<vmem>>, vector<8x842xf32>
    tpu.vector_store %arg15[%c0_26, %c0_27], %83 {strides = array<i32>} : memref<8x842xf32, #tpu.memory_space<vmem>>, vector<8x842xf32>,
    %c0_28 = arith.constant 0 : index
    %c29_29 = arith.constant 29 : index
    %85 = vector.load %arg15[%c0_28, %c29_29] : memref<8x842xf32, #tpu.memory_space<vmem>>, vector<8x784xf32>
    tpu.vector_store %arg15[%c0_28, %c29_29], %82 {strides = array<i32>} : memref<8x842xf32, #tpu.memory_space<vmem>>, vector<8x784xf32>,
    %c0_30 = arith.constant 0 : index
    %c0_31 = arith.constant 0 : index
    %86 = vector.load %arg15[%c0_30, %c0_31] : memref<8x842xf32, #tpu.memory_space<vmem>>, vector<8x784xf32>
    %87 = vector.extract_strided_slice %0 {offsets = [0, 0], sizes = [1, 784], strides = [1, 1]} : vector<3x784xf32> to vector<1x784xf32>
    %88 = vector.broadcast %87 : vector<1x784xf32> to vector<8x784xf32>
    %89 = arith.mulf %86, %88 : vector<8x784xf32>
    %c0_32 = arith.constant 0 : index
    %c1_33 = arith.constant 1 : index
    %90 = vector.load %arg15[%c0_32, %c1_33] : memref<8x842xf32, #tpu.memory_space<vmem>>, vector<8x784xf32>
    %c0_34 = arith.constant 0 : index
    %c2_35 = arith.constant 2 : index
    %91 = vector.load %arg15[%c0_34, %c2_35] : memref<8x842xf32, #tpu.memory_space<vmem>>, vector<8x784xf32>
    %92 = vector.extract_strided_slice %0 {offsets = [2, 0], sizes = [1, 784], strides = [1, 1]} : vector<3x784xf32> to vector<1x784xf32>
    %93 = vector.broadcast %92 : vector<1x784xf32> to vector<8x784xf32>
    %94 = arith.mulf %91, %93 : vector<8x784xf32>
    %c0_36 = arith.constant 0 : index
    %c28_37 = arith.constant 28 : index
    %95 = vector.load %arg15[%c0_36, %c28_37] : memref<8x842xf32, #tpu.memory_space<vmem>>, vector<8x784xf32>
    %96 = vector.extract_strided_slice %0 {offsets = [0, 0], sizes = [1, 784], strides = [1, 1]} : vector<3x784xf32> to vector<1x784xf32>
    %97 = vector.broadcast %96 : vector<1x784xf32> to vector<8x784xf32>
    %98 = arith.mulf %95, %97 : vector<8x784xf32>
    %c0_38 = arith.constant 0 : index
    %c29_39 = arith.constant 29 : index
    %99 = vector.load %arg15[%c0_38, %c29_39] : memref<8x842xf32, #tpu.memory_space<vmem>>, vector<8x784xf32>
    %c0_40 = arith.constant 0 : index
    %c30_41 = arith.constant 30 : index
    %100 = vector.load %arg15[%c0_40, %c30_41] : memref<8x842xf32, #tpu.memory_space<vmem>>, vector<8x784xf32>
    %101 = vector.extract_strided_slice %0 {offsets = [2, 0], sizes = [1, 784], strides = [1, 1]} : vector<3x784xf32> to vector<1x784xf32>
    %102 = vector.broadcast %101 : vector<1x784xf32> to vector<8x784xf32>
    %103 = arith.mulf %100, %102 : vector<8x784xf32>
    %c0_42 = arith.constant 0 : index
    %c56_43 = arith.constant 56 : index
    %104 = vector.load %arg15[%c0_42, %c56_43] : memref<8x842xf32, #tpu.memory_space<vmem>>, vector<8x784xf32>
    %105 = vector.extract_strided_slice %0 {offsets = [0, 0], sizes = [1, 784], strides = [1, 1]} : vector<3x784xf32> to vector<1x784xf32>
    %106 = vector.broadcast %105 : vector<1x784xf32> to vector<8x784xf32>
    %107 = arith.mulf %104, %106 : vector<8x784xf32>
    %c0_44 = arith.constant 0 : index
    %c57_45 = arith.constant 57 : index
    %108 = vector.load %arg15[%c0_44, %c57_45] : memref<8x842xf32, #tpu.memory_space<vmem>>, vector<8x784xf32>
    %c0_46 = arith.constant 0 : index
    %c58_47 = arith.constant 58 : index
    %109 = vector.load %arg15[%c0_46, %c58_47] : memref<8x842xf32, #tpu.memory_space<vmem>>, vector<8x784xf32>
    %110 = vector.extract_strided_slice %0 {offsets = [2, 0], sizes = [1, 784], strides = [1, 1]} : vector<3x784xf32> to vector<1x784xf32>
    %111 = vector.broadcast %110 : vector<1x784xf32> to vector<8x784xf32>
    %112 = arith.mulf %109, %111 : vector<8x784xf32>
    %113 = tpu.concatenate %89, %90, %94, %98, %99, %103, %107, %108, %112 in 0 : vector<8x784xf32>, vector<8x784xf32>, vector<8x784xf32>, vector<8x784xf32>, vector<8x784xf32>, vector<8x784xf32>, vector<8x784xf32>, vector<8x784xf32>, vector<8x784xf32> -> vector<72x784xf32>
    %c0_48 = arith.constant 0 : index
    %c0_49 = arith.constant 0 : index
    %114 = vector.load %arg6[%c0_48, %c0_49] : memref<8x72xf32, #tpu.memory_space<vmem>>, vector<8x72xf32>
    %cst_50 = arith.constant dense<0.000000e+00> : vector<8x784xf32>
    %115 = tpu.matmul %114, %113, %cst_50 {dimension_numbers = #tpu.dot_dimension_numbers<[1], [0], [0], [1], [0, 0, 1, 1], [], []>} : vector<8x72xf32>, vector<72x784xf32>, vector<8x784xf32> -> vector<8x784xf32>
    %c0_51 = arith.constant 0 : index
    %c0_52 = arith.constant 0 : index
    %116 = vector.load %arg7[%c0_51, %c0_52] : memref<8x1xf32, #tpu.memory_space<vmem>>, vector<8x1xf32>
    %117 = vector.broadcast %116 : vector<8x1xf32> to vector<8x784xf32>
    %118 = arith.addf %115, %117 : vector<8x784xf32>
    %cst_53 = arith.constant 0.000000e+00 : f32
    %119 = vector.broadcast %cst_53 : f32 to vector<8x784xf32>
    %120 = arith.maximumf %118, %119 : vector<8x784xf32>
    %c0_54 = arith.constant 0 : index
    %c0_55 = arith.constant 0 : index
    %121 = vector.load %arg16[%c0_54, %c0_55] : memref<8x896xf32, #tpu.memory_space<vmem>>, vector<8x784xf32>
    tpu.vector_store %arg16[%c0_54, %c0_55], %120 {strides = array<i32>} : memref<8x896xf32, #tpu.memory_space<vmem>>, vector<8x784xf32>,
    %cst_56 = arith.constant 0.000000e+00 : f32
    %122 = vector.broadcast %cst_56 : f32 to vector<8x112xf32>
    %c0_57 = arith.constant 0 : index
    %c784 = arith.constant 784 : index
    %123 = vector.load %arg16[%c0_57, %c784] : memref<8x896xf32, #tpu.memory_space<vmem>>, vector<8x112xf32>
    tpu.vector_store %arg16[%c0_57, %c784], %122 {strides = array<i32>} : memref<8x896xf32, #tpu.memory_space<vmem>>, vector<8x112xf32>,
    %c0_58 = arith.constant 0 : index
    %c0_59 = arith.constant 0 : index
    %124 = vector.load %arg16[%c0_58, %c0_59] : memref<8x896xf32, #tpu.memory_space<vmem>>, vector<8x784xf32>
    %c0_60 = arith.constant 0 : index
    %c1_61 = arith.constant 1 : index
    %125 = vector.load %arg16[%c0_60, %c1_61] : memref<8x896xf32, #tpu.memory_space<vmem>>, vector<8x784xf32>
    %126 = arith.maximumf %124, %125 : vector<8x784xf32>
    %c0_62 = arith.constant 0 : index
    %c2_63 = arith.constant 2 : index
    %127 = vector.load %arg16[%c0_62, %c2_63] : memref<8x896xf32, #tpu.memory_space<vmem>>, vector<8x784xf32>
    %128 = arith.maximumf %126, %127 : vector<8x784xf32>
    %c0_64 = arith.constant 0 : index
    %c3 = arith.constant 3 : index
    %129 = vector.load %arg16[%c0_64, %c3] : memref<8x896xf32, #tpu.memory_space<vmem>>, vector<8x784xf32>
    %130 = arith.maximumf %128, %129 : vector<8x784xf32>
    %c0_65 = arith.constant 0 : index
    %c4 = arith.constant 4 : index
    %131 = vector.load %arg16[%c0_65, %c4] : memref<8x896xf32, #tpu.memory_space<vmem>>, vector<8x784xf32>
    %132 = arith.maximumf %130, %131 : vector<8x784xf32>
    %c0_66 = arith.constant 0 : index
    %c0_67 = arith.constant 0 : index
    %133 = vector.load %arg17[%c0_66, %c0_67] : memref<8x896xf32, #tpu.memory_space<vmem>>, vector<8x784xf32>
    tpu.vector_store %arg17[%c0_66, %c0_67], %132 {strides = array<i32>} : memref<8x896xf32, #tpu.memory_space<vmem>>, vector<8x784xf32>,
    %cst_68 = arith.constant 0.000000e+00 : f32
    %134 = vector.broadcast %cst_68 : f32 to vector<8x112xf32>
    %c0_69 = arith.constant 0 : index
    %c784_70 = arith.constant 784 : index
    %135 = vector.load %arg17[%c0_69, %c784_70] : memref<8x896xf32, #tpu.memory_space<vmem>>, vector<8x112xf32>
    tpu.vector_store %arg17[%c0_69, %c784_70], %134 {strides = array<i32>} : memref<8x896xf32, #tpu.memory_space<vmem>>, vector<8x112xf32>,
    %c0_71 = arith.constant 0 : index
    %c0_72 = arith.constant 0 : index
    %136 = vector.load %arg17[%c0_71, %c0_72] : memref<8x896xf32, #tpu.memory_space<vmem>>, vector<8x784xf32>
    %c0_73 = arith.constant 0 : index
    %c28_74 = arith.constant 28 : index
    %137 = vector.load %arg17[%c0_73, %c28_74] : memref<8x896xf32, #tpu.memory_space<vmem>>, vector<8x784xf32>
    %138 = arith.maximumf %136, %137 : vector<8x784xf32>
    %c0_75 = arith.constant 0 : index
    %c56_76 = arith.constant 56 : index
    %139 = vector.load %arg17[%c0_75, %c56_76] : memref<8x896xf32, #tpu.memory_space<vmem>>, vector<8x784xf32>
    %140 = arith.maximumf %138, %139 : vector<8x784xf32>
    %c0_77 = arith.constant 0 : index
    %c84 = arith.constant 84 : index
    %141 = vector.load %arg17[%c0_77, %c84] : memref<8x896xf32, #tpu.memory_space<vmem>>, vector<8x784xf32>
    %142 = arith.maximumf %140, %141 : vector<8x784xf32>
    %c0_78 = arith.constant 0 : index
    %c112 = arith.constant 112 : index
    %143 = vector.load %arg17[%c0_78, %c112] : memref<8x896xf32, #tpu.memory_space<vmem>>, vector<8x784xf32>
    %144 = arith.maximumf %142, %143 : vector<8x784xf32>
    %c0_79 = arith.constant 0 : index
    %c0_80 = arith.constant 0 : index
    %145 = vector.load %arg3[%c0_79, %c0_80] : memref<784x25xf32, #tpu.memory_space<vmem>>, vector<784x25xf32>
    %cst_81 = arith.constant dense<0.000000e+00> : vector<8x25xf32>
    %146 = tpu.matmul %144, %145, %cst_81 {dimension_numbers = #tpu.dot_dimension_numbers<[1], [0], [0], [1], [0, 0, 1, 1], [], []>} : vector<8x784xf32>, vector<784x25xf32>, vector<8x25xf32> -> vector<8x25xf32>
    %c0_82 = arith.constant 0 : index
    %c0_83 = arith.constant 0 : index
    %c0_84 = arith.constant 0 : index
    %147 = vector.load %arg8[%c0_82, %c0_83, %c0_84] : memref<1x8x25xf32, #tpu.memory_space<vmem>>, vector<1x8x25xf32>
    %148 = vector.shape_cast %147 : vector<1x8x25xf32> to vector<8x25xf32>
    %149 = arith.mulf %146, %148 : vector<8x25xf32>
    %150 = vector.extract_strided_slice %149 {offsets = [0, 0], sizes = [1, 25], strides = [1, 1]} : vector<8x25xf32> to vector<1x25xf32>
    %c0_85 = arith.constant 0 : index
    %c0_86 = arith.constant 0 : index
    %151 = vector.load %arg18[%c0_85, %c0_86] : memref<1x200xf32, #tpu.memory_space<vmem>>, vector<1x25xf32>
    tpu.vector_store %arg18[%c0_85, %c0_86], %150 {strides = array<i32>} : memref<1x200xf32, #tpu.memory_space<vmem>>, vector<1x25xf32>,
    %152 = vector.extract_strided_slice %149 {offsets = [1, 0], sizes = [1, 25], strides = [1, 1]} : vector<8x25xf32> to vector<1x25xf32>
    %c0_87 = arith.constant 0 : index
    %c25 = arith.constant 25 : index
    %153 = vector.load %arg18[%c0_87, %c25] : memref<1x200xf32, #tpu.memory_space<vmem>>, vector<1x25xf32>
    tpu.vector_store %arg18[%c0_87, %c25], %152 {strides = array<i32>} : memref<1x200xf32, #tpu.memory_space<vmem>>, vector<1x25xf32>,
    %154 = vector.extract_strided_slice %149 {offsets = [2, 0], sizes = [1, 25], strides = [1, 1]} : vector<8x25xf32> to vector<1x25xf32>
    %c0_88 = arith.constant 0 : index
    %c50 = arith.constant 50 : index
    %155 = vector.load %arg18[%c0_88, %c50] : memref<1x200xf32, #tpu.memory_space<vmem>>, vector<1x25xf32>
    tpu.vector_store %arg18[%c0_88, %c50], %154 {strides = array<i32>} : memref<1x200xf32, #tpu.memory_space<vmem>>, vector<1x25xf32>,
    %156 = vector.extract_strided_slice %149 {offsets = [3, 0], sizes = [1, 25], strides = [1, 1]} : vector<8x25xf32> to vector<1x25xf32>
    %c0_89 = arith.constant 0 : index
    %c75 = arith.constant 75 : index
    %157 = vector.load %arg18[%c0_89, %c75] : memref<1x200xf32, #tpu.memory_space<vmem>>, vector<1x25xf32>
    tpu.vector_store %arg18[%c0_89, %c75], %156 {strides = array<i32>} : memref<1x200xf32, #tpu.memory_space<vmem>>, vector<1x25xf32>,
    %158 = vector.extract_strided_slice %149 {offsets = [4, 0], sizes = [1, 25], strides = [1, 1]} : vector<8x25xf32> to vector<1x25xf32>
    %c0_90 = arith.constant 0 : index
    %c100 = arith.constant 100 : index
    %159 = vector.load %arg18[%c0_90, %c100] : memref<1x200xf32, #tpu.memory_space<vmem>>, vector<1x25xf32>
    tpu.vector_store %arg18[%c0_90, %c100], %158 {strides = array<i32>} : memref<1x200xf32, #tpu.memory_space<vmem>>, vector<1x25xf32>,
    %160 = vector.extract_strided_slice %149 {offsets = [5, 0], sizes = [1, 25], strides = [1, 1]} : vector<8x25xf32> to vector<1x25xf32>
    %c0_91 = arith.constant 0 : index
    %c125 = arith.constant 125 : index
    %161 = vector.load %arg18[%c0_91, %c125] : memref<1x200xf32, #tpu.memory_space<vmem>>, vector<1x25xf32>
    tpu.vector_store %arg18[%c0_91, %c125], %160 {strides = array<i32>} : memref<1x200xf32, #tpu.memory_space<vmem>>, vector<1x25xf32>,
    %162 = vector.extract_strided_slice %149 {offsets = [6, 0], sizes = [1, 25], strides = [1, 1]} : vector<8x25xf32> to vector<1x25xf32>
    %c0_92 = arith.constant 0 : index
    %c150 = arith.constant 150 : index
    %163 = vector.load %arg18[%c0_92, %c150] : memref<1x200xf32, #tpu.memory_space<vmem>>, vector<1x25xf32>
    tpu.vector_store %arg18[%c0_92, %c150], %162 {strides = array<i32>} : memref<1x200xf32, #tpu.memory_space<vmem>>, vector<1x25xf32>,
    %164 = vector.extract_strided_slice %149 {offsets = [7, 0], sizes = [1, 25], strides = [1, 1]} : vector<8x25xf32> to vector<1x25xf32>
    %c0_93 = arith.constant 0 : index
    %c175 = arith.constant 175 : index
    %165 = vector.load %arg18[%c0_93, %c175] : memref<1x200xf32, #tpu.memory_space<vmem>>, vector<1x25xf32>
    tpu.vector_store %arg18[%c0_93, %c175], %164 {strides = array<i32>} : memref<1x200xf32, #tpu.memory_space<vmem>>, vector<1x25xf32>,
    %c0_94 = arith.constant 0 : index
    %c0_95 = arith.constant 0 : index
    %166 = vector.load %arg18[%c0_94, %c0_95] : memref<1x200xf32, #tpu.memory_space<vmem>>, vector<1x200xf32>
    %c0_96 = arith.constant 0 : index
    %c0_97 = arith.constant 0 : index
    %167 = vector.load %arg9[%c0_96, %c0_97] : memref<200x32xf32, #tpu.memory_space<vmem>>, vector<200x32xf32>
    %cst_98 = arith.constant dense<0.000000e+00> : vector<1x32xf32>
    %168 = tpu.matmul %166, %167, %cst_98 {dimension_numbers = #tpu.dot_dimension_numbers<[1], [0], [0], [1], [0, 0, 1, 1], [], []>} : vector<1x200xf32>, vector<200x32xf32>, vector<1x32xf32> -> vector<1x32xf32>
    %c0_99 = arith.constant 0 : index
    %c0_100 = arith.constant 0 : index
    %169 = vector.load %arg10[%c0_99, %c0_100] : memref<1x32xf32, #tpu.memory_space<vmem>>, vector<1x32xf32>
    %170 = arith.addf %168, %169 : vector<1x32xf32>
    %cst_101 = arith.constant 0.000000e+00 : f32
    %171 = vector.broadcast %cst_101 : f32 to vector<1x32xf32>
    %172 = arith.maximumf %170, %171 : vector<1x32xf32>
    %c0_102 = arith.constant 0 : index
    %c0_103 = arith.constant 0 : index
    %c0_104 = arith.constant 0 : index
    %173 = vector.load %arg11[%c0_102, %c0_103, %c0_104] : memref<1x1x32xf32, #tpu.memory_space<vmem>>, vector<1x1x32xf32>
    %174 = vector.shape_cast %173 : vector<1x1x32xf32> to vector<1x32xf32>
    %175 = arith.mulf %172, %174 : vector<1x32xf32>
    %c0_105 = arith.constant 0 : index
    %c0_106 = arith.constant 0 : index
    %176 = vector.load %arg12[%c0_105, %c0_106] : memref<32x10xf32, #tpu.memory_space<vmem>>, vector<32x10xf32>
    %cst_107 = arith.constant dense<0.000000e+00> : vector<1x10xf32>
    %177 = tpu.matmul %175, %176, %cst_107 {dimension_numbers = #tpu.dot_dimension_numbers<[1], [0], [0], [1], [0, 0, 1, 1], [], []>} : vector<1x32xf32>, vector<32x10xf32>, vector<1x10xf32> -> vector<1x10xf32>
    %c0_108 = arith.constant 0 : index
    %c0_109 = arith.constant 0 : index
    %178 = vector.load %arg13[%c0_108, %c0_109] : memref<1x10xf32, #tpu.memory_space<vmem>>, vector<1x10xf32>
    %179 = arith.addf %177, %178 : vector<1x10xf32>
    %c0_110 = arith.constant 0 : index
    %c0_111 = arith.constant 0 : index
    %c0_112 = arith.constant 0 : index
    %180 = vector.load %arg14[%c0_110, %c0_111, %c0_112] : memref<1x1x10xf32, #tpu.memory_space<vmem>>, vector<1x1x10xf32>
    %181 = vector.shape_cast %180 : vector<1x1x10xf32> to vector<1x10xf32>
    %182 = vector.shape_cast %179 : vector<1x10xf32> to vector<1x1x10xf32>
    tpu.vector_store %arg14[%c0_110, %c0_111, %c0_112], %182 {strides = array<i32>} : memref<1x1x10xf32, #tpu.memory_space<vmem>>, vector<1x1x10xf32>,
    return
  }
  func.func @transform_0(%arg0: i32) -> (i32, i32, i32) {
    %c0_i32 = arith.constant 0 : i32
    %c0_i32_0 = arith.constant 0 : i32
    %c0_i32_1 = arith.constant 0 : i32
    return %arg0, %c0_i32, %c0_i32_0 : i32, i32, i32
  }
  func.func @transform_1(%arg0: i32) -> (i32, i32) {
    %c0_i32 = arith.constant 0 : i32
    %c0_i32_0 = arith.constant 0 : i32
    %c0_i32_1 = arith.constant 0 : i32
    return %c0_i32, %c0_i32_0 : i32, i32
  }
  func.func @transform_2(%arg0: i32) -> (i32, i32) {
    %c0_i32 = arith.constant 0 : i32
    %c0_i32_0 = arith.constant 0 : i32
    %c0_i32_1 = arith.constant 0 : i32
    return %c0_i32, %c0_i32_0 : i32, i32
  }
  func.func @transform_3(%arg0: i32) -> (i32, i32) {
    %c0_i32 = arith.constant 0 : i32
    %c0_i32_0 = arith.constant 0 : i32
    %c0_i32_1 = arith.constant 0 : i32
    return %c0_i32, %c0_i32_0 : i32, i32
  }
  func.func @transform_4(%arg0: i32) -> (i32, i32) {
    %c0_i32 = arith.constant 0 : i32
    %c0_i32_0 = arith.constant 0 : i32
    %c0_i32_1 = arith.constant 0 : i32
    return %c0_i32, %c0_i32_0 : i32, i32
  }
  func.func @transform_5(%arg0: i32) -> (i32, i32) {
    %c0_i32 = arith.constant 0 : i32
    %c0_i32_0 = arith.constant 0 : i32
    %c0_i32_1 = arith.constant 0 : i32
    return %c0_i32, %c0_i32_0 : i32, i32
  }
  func.func @transform_6(%arg0: i32) -> (i32, i32) {
    %c0_i32 = arith.constant 0 : i32
    %c0_i32_0 = arith.constant 0 : i32
    %c0_i32_1 = arith.constant 0 : i32
    return %c0_i32, %c0_i32_0 : i32, i32
  }
  func.func @transform_7(%arg0: i32) -> (i32, i32, i32) {
    %c0_i32 = arith.constant 0 : i32
    %c0_i32_0 = arith.constant 0 : i32
    %c0_i32_1 = arith.constant 0 : i32
    return %arg0, %c0_i32, %c0_i32_0 : i32, i32, i32
  }
  func.func @transform_8(%arg0: i32) -> (i32, i32) {
    %c0_i32 = arith.constant 0 : i32
    %c0_i32_0 = arith.constant 0 : i32
    %c0_i32_1 = arith.constant 0 : i32
    return %c0_i32, %c0_i32_0 : i32, i32
  }
  func.func @transform_9(%arg0: i32) -> (i32, i32) {
    %c0_i32 = arith.constant 0 : i32
    %c0_i32_0 = arith.constant 0 : i32
    %c0_i32_1 = arith.constant 0 : i32
    return %c0_i32, %c0_i32_0 : i32, i32
  }
  func.func @transform_10(%arg0: i32) -> (i32, i32, i32) {
    %c0_i32 = arith.constant 0 : i32
    %c0_i32_0 = arith.constant 0 : i32
    %c0_i32_1 = arith.constant 0 : i32
    return %arg0, %c0_i32, %c0_i32_0 : i32, i32, i32
  }
  func.func @transform_11(%arg0: i32) -> (i32, i32) {
    %c0_i32 = arith.constant 0 : i32
    %c0_i32_0 = arith.constant 0 : i32
    %c0_i32_1 = arith.constant 0 : i32
    return %c0_i32, %c0_i32_0 : i32, i32
  }
  func.func @transform_12(%arg0: i32) -> (i32, i32) {
    %c0_i32 = arith.constant 0 : i32
    %c0_i32_0 = arith.constant 0 : i32
    %c0_i32_1 = arith.constant 0 : i32
    return %c0_i32, %c0_i32_0 : i32, i32
  }
  func.func @transform_13(%arg0: i32) -> (i32, i32, i32) {
    %c0_i32 = arith.constant 0 : i32
    %c0_i32_0 = arith.constant 0 : i32
    %c0_i32_1 = arith.constant 0 : i32
    return %arg0, %c0_i32, %c0_i32_0 : i32, i32, i32
  }
}

</mosaic_0001>

<llo_original>
// kernel: bayesian_convnet_forward.1
$region0: #{bayesian_convnet_forward.1}
  #allocation0 [shape = 'u32[]', space=smem, size = 0x4, offset = 0x4, fixed_abs, tag = 'smem constant byte address 0x4 - core index']
  #allocation1 [shape = 'u32[144,128]{1,0:T(1,128)}', space=vmem, size = 0x12000, scoped, tag = 'internal scratch']
  #allocation2 [shape = 'f32[8,842]{1,0:T(8,128)}', space=vmem, size = 0x7000, scoped, tag = 'scratch operand']
  #allocation3 [shape = 'f32[8,896]{1,0:T(8,128)}', space=vmem, size = 0x7000, scoped, tag = 'scratch operand']
  #allocation4 [shape = 'f32[8,896]{1,0:T(8,128)}', space=vmem, size = 0x7000, scoped, tag = 'scratch operand']
  #allocation5 [shape = 'f32[1,200]{1,0:T(1,128)}', space=vmem, size = 0x400, scoped, tag = 'scratch operand']
  %s0 = inlined_call_operand.vmem [shape: f32[2,1,842], index: 0, kind: input, shape index: {}]
  %s1 = inlined_call_operand.vmem [shape: f32[3,784], index: 1, kind: input, shape index: {}]
  %s2 = inlined_call_operand.vmem [shape: f32[784,25], index: 2, kind: input, shape index: {}]
  %s3 = inlined_call_operand.vmem [shape: f32[8,9], index: 3, kind: input, shape index: {}]
  %s4 = inlined_call_operand.vmem [shape: f32[8,1], index: 4, kind: input, shape index: {}]
  %s5 = inlined_call_operand.vmem [shape: f32[8,72], index: 5, kind: input, shape index: {}]
  %s6 = inlined_call_operand.vmem [shape: f32[8,1], index: 6, kind: input, shape index: {}]
  %s7 = inlined_call_operand.vmem [shape: f32[2,8,25], index: 7, kind: input, shape index: {}]
  %s8 = inlined_call_operand.vmem [shape: f32[200,32], index: 8, kind: input, shape index: {}]
  %s9 = inlined_call_operand.vmem [shape: f32[1,32], index: 9, kind: input, shape index: {}]
  %s10 = inlined_call_operand.vmem [shape: f32[2,1,32], index: 10, kind: input, shape index: {}]
  %s11 = inlined_call_operand.vmem [shape: f32[32,10], index: 11, kind: input, shape index: {}]
  %s12 = inlined_call_operand.vmem [shape: f32[1,10], index: 12, kind: input, shape index: {}]
  %s13 = inlined_call_operand.hbm [shape: f32[2,1,10], index: 13, kind: output, shape index: {}]
  %s14 = sld [smem:[#allocation0]]
  $region85: #{bayesian_convnet_forward.1} parent=0
    _
  %s16 = ssub.s32 1, %s14
  %s17 = scalar_select 0, %s16, %s14
  $region1: #{bayesian_convnet_forward.1} parent=0
    #allocation6 [shape = 'u8[1024]{0}', space=vmem, size = 0x400, scoped, tag = 'output window, operand 0']
    #allocation7 [shape = 's32[2]{0}', space=sflag, size = 0x8, scoped, tag = 'scoped memory for bayesian_convnet_forward.1']
    %18 = vsyncpa [#allocation7], 0
    %s19 = scalar_lea.sflag [#allocation7], 1
    %20 = vsyncpa %s19, 0
    loop: start=0, step=1, limit=4
    $region2: #{bayesian_convnet_forward.1} parent=1 // loop_pre_header
      _
    $region3: #{bayesian_convnet_forward.1} parent=1 // loop_header
      %s22 = sphi 0, %s26
      %p23 = scmp.ge.s32.totalorder %s22, 4
      %s32 = sphi 0, %s34
      %s35 = sphi 0, %s32
      %s36 = sphi 0, %s35
      %s52 = sphi 0, %s36
      %s56 = sphi 0, %s56
      %s58 = sphi 0, %s56
      %s59 = sphi 0, %s58
      %s73 = sphi 0, %s59
      %s77 = sphi 0, %s77
      %s79 = sphi 0, %s77
      %s80 = sphi 0, %s79
      %s94 = sphi 0, %s80
      %s98 = sphi 0, %s98
      %s100 = sphi 0, %s98
      %s101 = sphi 0, %s100
      %s115 = sphi 0, %s101
      %s119 = sphi 0, %s119
      %s121 = sphi 0, %s119
      %s122 = sphi 0, %s121
      %s136 = sphi 0, %s122
      %s140 = sphi 0, %s140
      %s142 = sphi 0, %s140
      %s143 = sphi 0, %s142
      %s157 = sphi 0, %s143
      %s161 = sphi 0, %s161
      %s163 = sphi 0, %s161
      %s164 = sphi 0, %s163
      %s178 = sphi 0, %s164
      %s184 = sphi 0, %s186
      %s187 = sphi 0, %s184
      %s188 = sphi 0, %s187
      %s204 = sphi 0, %s188
      %s208 = sphi 0, %s208
      %s210 = sphi 0, %s208
      %s211 = sphi 0, %s210
      %s225 = sphi 0, %s211
      %s229 = sphi 0, %s229
      %s231 = sphi 0, %s229
      %s232 = sphi 0, %s231
      %s246 = sphi 0, %s232
      %s252 = sphi 0, %s254
      %s255 = sphi 0, %s252
      %s256 = sphi 0, %s255
      %s272 = sphi 0, %s256
      %s276 = sphi 0, %s276
      %s278 = sphi 0, %s276
      %s279 = sphi 0, %s278
      %s293 = sphi 0, %s279
      %s297 = sphi 0, %s297
      %s299 = sphi 0, %s297
      %s300 = sphi 0, %s299
      %s314 = sphi 0, %s300
      %s320 = sphi 0, %s322
      %s323 = sphi 0, %s320
      %s324 = sphi 0, %s323
      %s340 = sphi 0, %s324
    $region4: #{bayesian_convnet_forward.1} parent=1 // loop_header_branch
      %25 = sbr.rel (%p23) target = $region8
    $region5: #{bayesian_convnet_forward.1} parent=1 // loop_body
      %s27 = ssub.s32 %s22, 1
      %s28 = ssub.s32 %s22, 2
      %s29 = sadd.s32 %s22, 1
      %s30 = ssub.s32 %s22, %s29
      %p31 = scmp.eq.s32.totalorder %s30, 0
      %s33 = sadd.s32 %s32, 1
      %s34 = scalar_select %p31, %s32, %s33
      %p37 = pneg %p31
      %p38 = scmp.eq.s32.totalorder %s22, 1
      %p39 = por %p37, %p38
      %p40 = scmp.ne.s32.totalorder %s32, %s35
      %p41 = scmp.eq.s32.totalorder %s22, 0
      %p42 = por %p40, %p41
      %p43 = scmp.ne.s32.totalorder %s32, %s35
      %p44 = scmp.eq.s32.totalorder %s27, 1
      %p45 = por %p43, %p44
      %p46 = scmp.ne.s32.totalorder %s35, %s36
      %p47 = scmp.eq.s32.totalorder %s27, 0
      %p48 = por %p46, %p47
      %p49 = scmp.ne.s32.totalorder %s35, %s36
      %p50 = scmp.eq.s32.totalorder %s28, 1
      %p51 = por %p49, %p50
      %p53 = scmp.ne.s32.totalorder %s36, %s52
      %p54 = scmp.eq.s32.totalorder %s28, 0
      %p55 = por %p53, %p54
      %s57 = sadd.s32 %s56, 1
      %p60 = scmp.eq.s32.totalorder %s22, 1
      %p61 = scmp.ne.s32.totalorder %s56, %s58
      %p62 = scmp.eq.s32.totalorder %s22, 0
      %p63 = por %p61, %p62
      %p64 = scmp.ne.s32.totalorder %s56, %s58
      %p65 = scmp.eq.s32.totalorder %s27, 1
      %p66 = por %p64, %p65
      %p67 = scmp.ne.s32.totalorder %s58, %s59
      %p68 = scmp.eq.s32.totalorder %s27, 0
      %p69 = por %p67, %p68
      %p70 = scmp.ne.s32.totalorder %s58, %s59
      %p71 = scmp.eq.s32.totalorder %s28, 1
      %p72 = por %p70, %p71
      %p74 = scmp.ne.s32.totalorder %s59, %s73
      %p75 = scmp.eq.s32.totalorder %s28, 0
      %p76 = por %p74, %p75
      %s78 = sadd.s32 %s77, 1
      %p81 = scmp.eq.s32.totalorder %s22, 1
      %p82 = scmp.ne.s32.totalorder %s77, %s79
      %p83 = scmp.eq.s32.totalorder %s22, 0
      %p84 = por %p82, %p83
      %p85 = scmp.ne.s32.totalorder %s77, %s79
      %p86 = scmp.eq.s32.totalorder %s27, 1
      %p87 = por %p85, %p86
      %p88 = scmp.ne.s32.totalorder %s79, %s80
      %p89 = scmp.eq.s32.totalorder %s27, 0
      %p90 = por %p88, %p89
      %p91 = scmp.ne.s32.totalorder %s79, %s80
      %p92 = scmp.eq.s32.totalorder %s28, 1
      %p93 = por %p91, %p92
      %p95 = scmp.ne.s32.totalorder %s80, %s94
      %p96 = scmp.eq.s32.totalorder %s28, 0
      %p97 = por %p95, %p96
      %s99 = sadd.s32 %s98, 1
      %p102 = scmp.eq.s32.totalorder %s22, 1
      %p103 = scmp.ne.s32.totalorder %s98, %s100
      %p104 = scmp.eq.s32.totalorder %s22, 0
      %p105 = por %p103, %p104
      %p106 = scmp.ne.s32.totalorder %s98, %s100
      %p107 = scmp.eq.s32.totalorder %s27, 1
      %p108 = por %p106, %p107
      %p109 = scmp.ne.s32.totalorder %s100, %s101
      %p110 = scmp.eq.s32.totalorder %s27, 0
      %p111 = por %p109, %p110
      %p112 = scmp.ne.s32.totalorder %s100, %s101
      %p113 = scmp.eq.s32.totalorder %s28, 1
      %p114 = por %p112, %p113
      %p116 = scmp.ne.s32.totalorder %s101, %s115
      %p117 = scmp.eq.s32.totalorder %s28, 0
      %p118 = por %p116, %p117
      %s120 = sadd.s32 %s119, 1
      %p123 = scmp.eq.s32.totalorder %s22, 1
      %p124 = scmp.ne.s32.totalorder %s119, %s121
      %p125 = scmp.eq.s32.totalorder %s22, 0
      %p126 = por %p124, %p125
      %p127 = scmp.ne.s32.totalorder %s119, %s121
      %p128 = scmp.eq.s32.totalorder %s27, 1
      %p129 = por %p127, %p128
      %p130 = scmp.ne.s32.totalorder %s121, %s122
      %p131 = scmp.eq.s32.totalorder %s27, 0
      %p132 = por %p130, %p131
      %p133 = scmp.ne.s32.totalorder %s121, %s122
      %p134 = scmp.eq.s32.totalorder %s28, 1
      %p135 = por %p133, %p134
      %p137 = scmp.ne.s32.totalorder %s122, %s136
      %p138 = scmp.eq.s32.totalorder %s28, 0
      %p139 = por %p137, %p138
      %s141 = sadd.s32 %s140, 1
      %p144 = scmp.eq.s32.totalorder %s22, 1
      %p145 = scmp.ne.s32.totalorder %s140, %s142
      %p146 = scmp.eq.s32.totalorder %s22, 0
      %p147 = por %p145, %p146
      %p148 = scmp.ne.s32.totalorder %s140, %s142
      %p149 = scmp.eq.s32.totalorder %s27, 1
      %p150 = por %p148, %p149
      %p151 = scmp.ne.s32.totalorder %s142, %s143
      %p152 = scmp.eq.s32.totalorder %s27, 0
      %p153 = por %p151, %p152
      %p154 = scmp.ne.s32.totalorder %s142, %s143
      %p155 = scmp.eq.s32.totalorder %s28, 1
      %p156 = por %p154, %p155
      %p158 = scmp.ne.s32.totalorder %s143, %s157
      %p159 = scmp.eq.s32.totalorder %s28, 0
      %p160 = por %p158, %p159
      %s162 = sadd.s32 %s161, 1
      %p165 = scmp.eq.s32.totalorder %s22, 1
      %p166 = scmp.ne.s32.totalorder %s161, %s163
      %p167 = scmp.eq.s32.totalorder %s22, 0
      %p168 = por %p166, %p167
      %p169 = scmp.ne.s32.totalorder %s161, %s163
      %p170 = scmp.eq.s32.totalorder %s27, 1
      %p171 = por %p169, %p170
      %p172 = scmp.ne.s32.totalorder %s163, %s164
      %p173 = scmp.eq.s32.totalorder %s27, 0
      %p174 = por %p172, %p173
      %p175 = scmp.ne.s32.totalorder %s163, %s164
      %p176 = scmp.eq.s32.totalorder %s28, 1
      %p177 = por %p175, %p176
      %p179 = scmp.ne.s32.totalorder %s164, %s178
      %p180 = scmp.eq.s32.totalorder %s28, 0
      %p181 = por %p179, %p180
      %s182 = ssub.s32 %s22, %s29
      %p183 = scmp.eq.s32.totalorder %s182, 0
      %s185 = sadd.s32 %s184, 1
      %s186 = scalar_select %p183, %s184, %s185
      %p189 = pneg %p183
      %p190 = scmp.eq.s32.totalorder %s22, 1
      %p191 = por %p189, %p190
      %p192 = scmp.ne.s32.totalorder %s184, %s187
      %p193 = scmp.eq.s32.totalorder %s22, 0
      %p194 = por %p192, %p193
      %p195 = scmp.ne.s32.totalorder %s184, %s187
      %p196 = scmp.eq.s32.totalorder %s27, 1
      %p197 = por %p195, %p196
      %p198 = scmp.ne.s32.totalorder %s187, %s188
      %p199 = scmp.eq.s32.totalorder %s27, 0
      %p200 = por %p198, %p199
      %p201 = scmp.ne.s32.totalorder %s187, %s188
      %p202 = scmp.eq.s32.totalorder %s28, 1
      %p203 = por %p201, %p202
      %p205 = scmp.ne.s32.totalorder %s188, %s204
      %p206 = scmp.eq.s32.totalorder %s28, 0
      %p207 = por %p205, %p206
      %s209 = sadd.s32 %s208, 1
      %p212 = scmp.eq.s32.totalorder %s22, 1
      %p213 = scmp.ne.s32.totalorder %s208, %s210
      %p214 = scmp.eq.s32.totalorder %s22, 0
      %p215 = por %p213, %p214
      %p216 = scmp.ne.s32.totalorder %s208, %s210
      %p217 = scmp.eq.s32.totalorder %s27, 1
      %p218 = por %p216, %p217
      %p219 = scmp.ne.s32.totalorder %s210, %s211
      %p220 = scmp.eq.s32.totalorder %s27, 0
      %p221 = por %p219, %p220
      %p222 = scmp.ne.s32.totalorder %s210, %s211
      %p223 = scmp.eq.s32.totalorder %s28, 1
      %p224 = por %p222, %p223
      %p226 = scmp.ne.s32.totalorder %s211, %s225
      %p227 = scmp.eq.s32.totalorder %s28, 0
      %p228 = por %p226, %p227
      %s230 = sadd.s32 %s229, 1
      %p233 = scmp.eq.s32.totalorder %s22, 1
      %p234 = scmp.ne.s32.totalorder %s229, %s231
      %p235 = scmp.eq.s32.totalorder %s22, 0
      %p236 = por %p234, %p235
      %p237 = scmp.ne.s32.totalorder %s229, %s231
      %p238 = scmp.eq.s32.totalorder %s27, 1
      %p239 = por %p237, %p238
      %p240 = scmp.ne.s32.totalorder %s231, %s232
      %p241 = scmp.eq.s32.totalorder %s27, 0
      %p242 = por %p240, %p241
      %p243 = scmp.ne.s32.totalorder %s231, %s232
      %p244 = scmp.eq.s32.totalorder %s28, 1
      %p245 = por %p243, %p244
      %p247 = scmp.ne.s32.totalorder %s232, %s246
      %p248 = scmp.eq.s32.totalorder %s28, 0
      %p249 = por %p247, %p248
      %s250 = ssub.s32 %s22, %s29
      %p251 = scmp.eq.s32.totalorder %s250, 0
      %s253 = sadd.s32 %s252, 1
      %s254 = scalar_select %p251, %s252, %s253
      %p257 = pneg %p251
      %p258 = scmp.eq.s32.totalorder %s22, 1
      %p259 = por %p257, %p258
      %p260 = scmp.ne.s32.totalorder %s252, %s255
      %p261 = scmp.eq.s32.totalorder %s22, 0
      %p262 = por %p260, %p261
      %p263 = scmp.ne.s32.totalorder %s252, %s255
      %p264 = scmp.eq.s32.totalorder %s27, 1
      %p265 = por %p263, %p264
      %p266 = scmp.ne.s32.totalorder %s255, %s256
      %p267 = scmp.eq.s32.totalorder %s27, 0
      %p268 = por %p266, %p267
      %p269 = scmp.ne.s32.totalorder %s255, %s256
      %p270 = scmp.eq.s32.totalorder %s28, 1
      %p271 = por %p269, %p270
      %p273 = scmp.ne.s32.totalorder %s256, %s272
      %p274 = scmp.eq.s32.totalorder %s28, 0
      %p275 = por %p273, %p274
      %s277 = sadd.s32 %s276, 1
      %p280 = scmp.eq.s32.totalorder %s22, 1
      %p281 = scmp.ne.s32.totalorder %s276, %s278
      %p282 = scmp.eq.s32.totalorder %s22, 0
      %p283 = por %p281, %p282
      %p284 = scmp.ne.s32.totalorder %s276, %s278
      %p285 = scmp.eq.s32.totalorder %s27, 1
      %p286 = por %p284, %p285
      %p287 = scmp.ne.s32.totalorder %s278, %s279
      %p288 = scmp.eq.s32.totalorder %s27, 0
      %p289 = por %p287, %p288
      %p290 = scmp.ne.s32.totalorder %s278, %s279
      %p291 = scmp.eq.s32.totalorder %s28, 1
      %p292 = por %p290, %p291
      %p294 = scmp.ne.s32.totalorder %s279, %s293
      %p295 = scmp.eq.s32.totalorder %s28, 0
      %p296 = por %p294, %p295
      %s298 = sadd.s32 %s297, 1
      %p301 = scmp.eq.s32.totalorder %s22, 1
      %p302 = scmp.ne.s32.totalorder %s297, %s299
      %p303 = scmp.eq.s32.totalorder %s22, 0
      %p304 = por %p302, %p303
      %p305 = scmp.ne.s32.totalorder %s297, %s299
      %p306 = scmp.eq.s32.totalorder %s27, 1
      %p307 = por %p305, %p306
      %p308 = scmp.ne.s32.totalorder %s299, %s300
      %p309 = scmp.eq.s32.totalorder %s27, 0
      %p310 = por %p308, %p309
      %p311 = scmp.ne.s32.totalorder %s299, %s300
      %p312 = scmp.eq.s32.totalorder %s28, 1
      %p313 = por %p311, %p312
      %p315 = scmp.ne.s32.totalorder %s300, %s314
      %p316 = scmp.eq.s32.totalorder %s28, 0
      %p317 = por %p315, %p316
      %s318 = ssub.s32 %s22, %s29
      %p319 = scmp.eq.s32.totalorder %s318, 0
      %s321 = sadd.s32 %s320, 1
      %s322 = scalar_select %p319, %s320, %s321
      %p325 = pneg %p319
      %p326 = scmp.eq.s32.totalorder %s22, 1
      %p327 = por %p325, %p326
      %p328 = scmp.ne.s32.totalorder %s320, %s323
      %p329 = scmp.eq.s32.totalorder %s22, 0
      %p330 = por %p328, %p329
      %p331 = scmp.ne.s32.totalorder %s320, %s323
      %p332 = scmp.eq.s32.totalorder %s27, 1
      %p333 = por %p331, %p332
      %p334 = scmp.ne.s32.totalorder %s323, %s324
      %p335 = scmp.eq.s32.totalorder %s27, 0
      %p336 = por %p334, %p335
      %p337 = scmp.ne.s32.totalorder %s323, %s324
      %p338 = scmp.eq.s32.totalorder %s28, 1
      %p339 = por %p337, %p338
      %p341 = scmp.ne.s32.totalorder %s324, %s340
      %p342 = scmp.eq.s32.totalorder %s28, 0
      %p343 = por %p341, %p342
      %p344 = scmp.le.s32.totalorder 1, %s22
      %p345 = scmp.lt.s32.totalorder %s22, 3
      %p346 = pnand %p344, %p345
      %p347 = pneg %p346
      // Predicated region
      $region9: #{bayesian_convnet_forward.1} parent=5 // pred_check
        _
      $region10: #{bayesian_convnet_forward.1} parent=5 // pred_check_branch
        %349 = sbr.rel (%p346) target = $region12
      $region11: #{bayesian_convnet_forward.1} parent=5 // pred_region
        %s350 = ssub.s32 %s22, 1
        // Predicated region
        $region13: #{bayesian_convnet_forward.1} parent=11 // pred_check
          %p351 = pneg %p69
        $region14: #{bayesian_convnet_forward.1} parent=11 // pred_check_branch
          %353 = sbr.rel (%p351) target = $region16
        $region15: #{bayesian_convnet_forward.1} parent=11 // pred_region
          _
        $region16: #{bayesian_convnet_forward.1} parent=11 // pred_fallthru
          _
        // Predicated region
        $region17: #{bayesian_convnet_forward.1} parent=11 // pred_check
          %p354 = pneg %p90
        $region18: #{bayesian_convnet_forward.1} parent=11 // pred_check_branch
          %356 = sbr.rel (%p354) target = $region20
        $region19: #{bayesian_convnet_forward.1} parent=11 // pred_region
          _
        $region20: #{bayesian_convnet_forward.1} parent=11 // pred_fallthru
          _
        // Predicated region
        $region21: #{bayesian_convnet_forward.1} parent=11 // pred_check
          %p357 = pneg %p111
        $region22: #{bayesian_convnet_forward.1} parent=11 // pred_check_branch
          %359 = sbr.rel (%p357) target = $region24
        $region23: #{bayesian_convnet_forward.1} parent=11 // pred_region
          _
        $region24: #{bayesian_convnet_forward.1} parent=11 // pred_fallthru
          _
        // Predicated region
        $region25: #{bayesian_convnet_forward.1} parent=11 // pred_check
          %p360 = pneg %p132
        $region26: #{bayesian_convnet_forward.1} parent=11 // pred_check_branch
          %362 = sbr.rel (%p360) target = $region28
        $region27: #{bayesian_convnet_forward.1} parent=11 // pred_region
          _
        $region28: #{bayesian_convnet_forward.1} parent=11 // pred_fallthru
          _
        // Predicated region
        $region29: #{bayesian_convnet_forward.1} parent=11 // pred_check
          %p363 = pneg %p153
        $region30: #{bayesian_convnet_forward.1} parent=11 // pred_check_branch
          %365 = sbr.rel (%p363) target = $region32
        $region31: #{bayesian_convnet_forward.1} parent=11 // pred_region
          _
        $region32: #{bayesian_convnet_forward.1} parent=11 // pred_fallthru
          _
        // Predicated region
        $region33: #{bayesian_convnet_forward.1} parent=11 // pred_check
          %p366 = pneg %p174
        $region34: #{bayesian_convnet_forward.1} parent=11 // pred_check_branch
          %368 = sbr.rel (%p366) target = $region36
        $region35: #{bayesian_convnet_forward.1} parent=11 // pred_region
          _
        $region36: #{bayesian_convnet_forward.1} parent=11 // pred_fallthru
          _
        // Predicated region
        $region37: #{bayesian_convnet_forward.1} parent=11 // pred_check
          %p369 = pneg %p221
        $region38: #{bayesian_convnet_forward.1} parent=11 // pred_check_branch
          %371 = sbr.rel (%p369) target = $region40
        $region39: #{bayesian_convnet_forward.1} parent=11 // pred_region
          _
        $region40: #{bayesian_convnet_forward.1} parent=11 // pred_fallthru
          _
        // Predicated region
        $region41: #{bayesian_convnet_forward.1} parent=11 // pred_check
          %p372 = pneg %p242
        $region42: #{bayesian_convnet_forward.1} parent=11 // pred_check_branch
          %374 = sbr.rel (%p372) target = $region44
        $region43: #{bayesian_convnet_forward.1} parent=11 // pred_region
          _
        $region44: #{bayesian_convnet_forward.1} parent=11 // pred_fallthru
          _
        // Predicated region
        $region45: #{bayesian_convnet_forward.1} parent=11 // pred_check
          %p375 = pneg %p289
        $region46: #{bayesian_convnet_forward.1} parent=11 // pred_check_branch
          %377 = sbr.rel (%p375) target = $region48
        $region47: #{bayesian_convnet_forward.1} parent=11 // pred_region
          _
        $region48: #{bayesian_convnet_forward.1} parent=11 // pred_fallthru
          _
        // Predicated region
        $region49: #{bayesian_convnet_forward.1} parent=11 // pred_check
          %p378 = pneg %p310
        $region50: #{bayesian_convnet_forward.1} parent=11 // pred_check_branch
          %380 = sbr.rel (%p378) target = $region52
        $region51: #{bayesian_convnet_forward.1} parent=11 // pred_region
          _
        $region52: #{bayesian_convnet_forward.1} parent=11 // pred_fallthru
          _
      $region12: #{bayesian_convnet_forward.1} parent=5 // pred_fallthru
        _
      %p381 = scmp.lt.s32.totalorder %s22, 2
      // Predicated region
      $region53: #{bayesian_convnet_forward.1} parent=5 // pred_check
        %p382 = pneg %p381
      $region54: #{bayesian_convnet_forward.1} parent=5 // pred_check_branch
        %384 = sbr.rel (%p382) target = $region56
      $region55: #{bayesian_convnet_forward.1} parent=5 // pred_region
        // Predicated region
        $region57: #{bayesian_convnet_forward.1} parent=55 // pred_check
          %p385 = pneg %p42
        $region58: #{bayesian_convnet_forward.1} parent=55 // pred_check_branch
          %387 = sbr.rel (%p385) target = $region60
        $region59: #{bayesian_convnet_forward.1} parent=55 // pred_region
          %p388 = scmp.lt.s32.totalorder %s22, 1
          %s389 = scalar_select %p388, %s22, 1
          %s390 = smul.addr %s389, 7
          %s391 = scalar_lea.vmem %s0, %s390
        $region60: #{bayesian_convnet_forward.1} parent=55 // pred_fallthru
          _
        // Predicated region
        $region61: #{bayesian_convnet_forward.1} parent=55 // pred_check
          %p392 = pneg %p194
        $region62: #{bayesian_convnet_forward.1} parent=55 // pred_check_branch
          %394 = sbr.rel (%p392) target = $region64
        $region63: #{bayesian_convnet_forward.1} parent=55 // pred_region
          %p395 = scmp.lt.s32.totalorder %s22, 1
          %s396 = scalar_select %p395, %s22, 1
          %s397 = smul.addr %s396, 8
          %s398 = scalar_lea.vmem %s7, %s397
        $region64: #{bayesian_convnet_forward.1} parent=55 // pred_fallthru
          _
        // Predicated region
        $region65: #{bayesian_convnet_forward.1} parent=55 // pred_check
          %p399 = pneg %p262
        $region66: #{bayesian_convnet_forward.1} parent=55 // pred_check_branch
          %401 = sbr.rel (%p399) target = $region68
        $region67: #{bayesian_convnet_forward.1} parent=55 // pred_region
          %p402 = scmp.lt.s32.totalorder %s22, 1
          %s403 = scalar_select %p402, %s22, 1
          %s404 = scalar_lea.vmem %s10, %s403
        $region68: #{bayesian_convnet_forward.1} parent=55 // pred_fallthru
          _
      $region56: #{bayesian_convnet_forward.1} parent=5 // pred_fallthru
        _
      %p405 = scmp.le.s32.totalorder 1, %s22
      %p406 = scmp.lt.s32.totalorder %s22, 3
      %p407 = pnand %p405, %p406
      %p408 = pneg %p407
      // Predicated region
      $region69: #{bayesian_convnet_forward.1} parent=5 // pred_check
        _
      $region70: #{bayesian_convnet_forward.1} parent=5 // pred_check_branch
        %410 = sbr.rel (%p407) target = $region72
      $region71: #{bayesian_convnet_forward.1} parent=5 // pred_region
        %s411 = ssub.s32 %s22, 1
        %p412 = scmp.lt.s32.totalorder %s27, 1
        %s413 = scalar_select %p412, %s27, 1
        %s414 = smul.addr %s413, 7
        %s415 = scalar_lea.vmem %s0, %s414
        %p416 = pneg %p48
        %p417 = pneg %p45
        %p418 = pneg %p69
        %p419 = pneg %p66
        %p420 = pneg %p90
        %p421 = pneg %p87
        %p422 = pneg %p111
        %p423 = pneg %p108
        %p424 = pneg %p132
        %p425 = pneg %p129
        %p426 = pneg %p153
        %p427 = pneg %p150
        %p428 = pneg %p174
        %p429 = pneg %p171
        %p430 = scmp.lt.s32.totalorder %s27, 1
        %s431 = scalar_select %p430, %s27, 1
        %s432 = smul.addr %s431, 8
        %s433 = scalar_lea.vmem %s7, %s432
        %p434 = pneg %p200
        %p435 = pneg %p197
        %p436 = pneg %p221
        %p437 = pneg %p218
        %p438 = pneg %p242
        %p439 = pneg %p239
        %p440 = scmp.lt.s32.totalorder %s27, 1
        %s441 = scalar_select %p440, %s27, 1
        %s442 = scalar_lea.vmem %s10, %s441
        %p443 = pneg %p268
        %p444 = pneg %p265
        %p445 = pneg %p289
        %p446 = pneg %p286
        %p447 = pneg %p310
        %p448 = pneg %p307
        %p449 = pneg %p336
        %p450 = pneg %p333
        %s451 = sand.u32 %s323, 1
        %s452 = scalar_lea.sflag [#allocation7], %s451
        %s453 = sand.u32 %s323, 1
        %s454 = scalar_lea.vmem [#allocation6], %s453
        %p455 = scmp.lt.s32.totalorder %s27, 1
        %s456 = scalar_select %p455, %s27, 1
        %s457 = smul.addr %s456, 7
        %s458 = scalar_lea.vmem %s0, %s457
        %p459 = scmp.lt.s32.totalorder %s27, 1
        %s460 = scalar_select %p459, %s27, 1
        %s461 = smul.addr %s460, 8
        %s462 = scalar_lea.vmem %s7, %s461
        %p463 = scmp.lt.s32.totalorder %s27, 1
        %s464 = scalar_select %p463, %s27, 1
        %s465 = scalar_lea.vmem %s10, %s464
        %v466 = vld [vmem:[%s1] sm:$0x77]
        %v467 = vld [vmem:[%s1 + $0x8] sm:$0x77]
        %v468 = vld [vmem:[%s1 + $0x10] sm:$0x77]
        %v469 = vld [vmem:[%s1 + $0x18] sm:$0x7]
        %v470 = vld [vmem:[%s3] sm:$0xff]
        %v471 = vld [vmem:[%s458] sm:$0x7f]
        %v477 = vunpack.c.l.s4 1966171168
        %v478 = vunpack.c.0.s8 %v477
        %v479 = vlaneseq
        %v480 = vshrl.u32 %v479, 7
        %v481 = vsub.s32 %v478, %v480
        %v482 = vrot.slane %v466, %v481
        %v484 = vunpack.c.l.s4 1966171168
        %v485 = vunpack.c.0.s8 %v484
        %v486 = vlaneseq
        %v487 = vshrl.u32 %v486, 7
        %v488 = vsub.s32 %v485, %v487
        %v489 = vrot.slane %v467, %v488
        %v491 = vunpack.c.l.s4 1966171168
        %v492 = vunpack.c.0.s8 %v491
        %v493 = vlaneseq
        %v494 = vshrl.u32 %v493, 7
        %v495 = vsub.s32 %v492, %v494
        %v496 = vrot.slane %v468, %v495
        %v498 = vunpack.c.l.s4 1966171168
        %v499 = vunpack.c.0.s8 %v498
        %v500 = vlaneseq
        %v501 = vshrl.u32 %v500, 7
        %v502 = vsub.s32 %v499, %v501
        %v503 = vrot.slane %v469, %v502
        %v504 = vcombine.low %v482, %v489
        %v505 = vcombine.low %v496, %v503
        %v507 = vunpack.c.l.s4 1966171168
        %v508 = vunpack.c.0.s8 %v507
        %v509 = vlaneseq
        %v510 = vshrl.u32 %v509, 7
        %v511 = vsub.s32 %v508, %v510
        %v512 = vrot.slane %v504, %v511
        %v514 = vunpack.c.l.s4 1966171168
        %v515 = vunpack.c.0.s8 %v514
        %v516 = vlaneseq
        %v517 = vshrl.u32 %v516, 7
        %v518 = vsub.s32 %v515, %v517
        %v519 = vrot.slane %v505, %v518
        %v520 = vcombine.low %v512, %v519
        %v522 = vmul.f32 %v471, %v520
        %524 = vset.pattern.permute.xlu0 0
        %525 = vperm.xlu0 %524, %v470
        %v526 = vpop.permute.xlu0 %525
        %v529 = vlaneseq
        %v530 = vshrl.u32 %v529, 7
        %v531 = vsub.s32 0, %v530
        %v532 = vrot.slane %v522, %v531
        %v533 = vlaneseq
        %v534 = vshrl.u32 %v533, 7
        %v535 = vsub.s32 1, %v534
        %v536 = vrot.slane %v522, %v535
        %v537 = vlaneseq
        %v538 = vshrl.u32 %v537, 7
        %v539 = vsub.s32 2, %v538
        %v540 = vrot.slane %v522, %v539
        %v541 = vlaneseq
        %v542 = vshrl.u32 %v541, 7
        %v543 = vsub.s32 3, %v542
        %v544 = vrot.slane %v522, %v543
        %v545 = vlaneseq
        %v546 = vshrl.u32 %v545, 7
        %v547 = vsub.s32 4, %v546
        %v548 = vrot.slane %v522, %v547
        %v549 = vlaneseq
        %v550 = vshrl.u32 %v549, 7
        %v551 = vsub.s32 5, %v550
        %v552 = vrot.slane %v522, %v551
        %v553 = vlaneseq
        %v554 = vshrl.u32 %v553, 7
        %v555 = vsub.s32 6, %v554
        %v556 = vrot.slane %v522, %v555
        %v564 = vmul.f32 %v526, %v532
        %v565 = vmul.f32 %v526, %v536
        %v566 = vmul.f32 %v526, %v540
        %v567 = vmul.f32 %v526, %v544
        %v568 = vmul.f32 %v526, %v548
        %v569 = vmul.f32 %v526, %v552
        %v570 = vmul.f32 %v526, %v556
        %v571 = vadd.f32 %v564, 0.0
        %v572 = vadd.f32 %v565, 0.0
        %v573 = vadd.f32 %v566, 0.0
        %v574 = vadd.f32 %v567, 0.0
        %v575 = vadd.f32 %v568, 0.0
        %v576 = vadd.f32 %v569, 0.0
        %v577 = vadd.f32 %v570, 0.0
        %v578 = vld [vmem:[%s458] sm:$0x7f]
        %579 = vset.pattern.permute.xlu0 1
        %580 = vperm.xlu0 %579, %v470
        %v581 = vpop.permute.xlu0 %580
        %v584 = vlaneseq
        %v585 = vshrl.u32 %v584, 7
        %v586 = vsub.s32 0, %v585
        %v587 = vrot.slane %v578, %v586
        %v588 = vlaneseq
        %v589 = vshrl.u32 %v588, 7
        %v590 = vsub.s32 1, %v589
        %v591 = vrot.slane %v578, %v590
        %v592 = vlaneseq
        %v593 = vshrl.u32 %v592, 7
        %v594 = vsub.s32 2, %v593
        %v595 = vrot.slane %v578, %v594
        %v596 = vlaneseq
        %v597 = vshrl.u32 %v596, 7
        %v598 = vsub.s32 3, %v597
        %v599 = vrot.slane %v578, %v598
        %v600 = vlaneseq
        %v601 = vshrl.u32 %v600, 7
        %v602 = vsub.s32 4, %v601
        %v603 = vrot.slane %v578, %v602
        %v604 = vlaneseq
        %v605 = vshrl.u32 %v604, 7
        %v606 = vsub.s32 5, %v605
        %v607 = vrot.slane %v578, %v606
        %v608 = vlaneseq
        %v609 = vshrl.u32 %v608, 7
        %v610 = vsub.s32 6, %v609
        %v611 = vrot.slane %v578, %v610
        %v619 = vmul.f32 %v581, %v587
        %v620 = vmul.f32 %v581, %v591
        %v621 = vmul.f32 %v581, %v595
        %v622 = vmul.f32 %v581, %v599
        %v623 = vmul.f32 %v581, %v603
        %v624 = vmul.f32 %v581, %v607
        %v625 = vmul.f32 %v581, %v611
        %633 = vrot.lane.b32.xlu0 %v619, 127
        %v634 = vpop.permute.xlu0 %633
        %635 = vrot.lane.b32.xlu0 %v620, 127
        %v636 = vpop.permute.xlu0 %635
        %637 = vrot.lane.b32.xlu0 %v621, 127
        %v638 = vpop.permute.xlu0 %637
        %639 = vrot.lane.b32.xlu0 %v622, 127
        %v640 = vpop.permute.xlu0 %639
        %641 = vrot.lane.b32.xlu0 %v623, 127
        %v642 = vpop.permute.xlu0 %641
        %643 = vrot.lane.b32.xlu0 %v624, 127
        %v644 = vpop.permute.xlu0 %643
        %645 = vrot.lane.b32.xlu0 %v625, 127
        %v646 = vpop.permute.xlu0 %645
        %vm647 = vcmask 1039360
        %v648 = vsel %vm647, %v634, %v636
        %v649 = vsel %vm647, %v636, %v638
        %v650 = vsel %vm647, %v638, %v640
        %v651 = vsel %vm647, %v640, %v642
        %v652 = vsel %vm647, %v642, %v644
        %v653 = vsel %vm647, %v644, %v646
        %v661 = vadd.f32 %v571, %v648
        %v662 = vadd.f32 %v572, %v649
        %v663 = vadd.f32 %v573, %v650
        %v664 = vadd.f32 %v574, %v651
        %v665 = vadd.f32 %v575, %v652
        %v666 = vadd.f32 %v576, %v653
        %v667 = vadd.f32 %v577, %v646
        %v668 = vcombine.high %v512, %v519
        %669 = vrot.lane.b32.xlu0 %v668, 2
        %v670 = vpop.permute.xlu0 %669
        %v671 = vrot.slane %v670, 7
        %vm672 = vcmask 15360
        %v673 = vsel %vm672, %v671, %v670
        %v675 = vmul.f32 %v578, %v673
        %676 = vset.pattern.permute.xlu0 2
        %677 = vperm.xlu0 %676, %v470
        %v678 = vpop.permute.xlu0 %677
        %v681 = vlaneseq
        %v682 = vshrl.u32 %v681, 7
        %v683 = vsub.s32 0, %v682
        %v684 = vrot.slane %v675, %v683
        %v685 = vlaneseq
        %v686 = vshrl.u32 %v685, 7
        %v687 = vsub.s32 1, %v686
        %v688 = vrot.slane %v675, %v687
        %v689 = vlaneseq
        %v690 = vshrl.u32 %v689, 7
        %v691 = vsub.s32 2, %v690
        %v692 = vrot.slane %v675, %v691
        %v693 = vlaneseq
        %v694 = vshrl.u32 %v693, 7
        %v695 = vsub.s32 3, %v694
        %v696 = vrot.slane %v675, %v695
        %v697 = vlaneseq
        %v698 = vshrl.u32 %v697, 7
        %v699 = vsub.s32 4, %v698
        %v700 = vrot.slane %v675, %v699
        %v701 = vlaneseq
        %v702 = vshrl.u32 %v701, 7
        %v703 = vsub.s32 5, %v702
        %v704 = vrot.slane %v675, %v703
        %v705 = vlaneseq
        %v706 = vshrl.u32 %v705, 7
        %v707 = vsub.s32 6, %v706
        %v708 = vrot.slane %v675, %v707
        %v716 = vmul.f32 %v678, %v684
        %v717 = vmul.f32 %v678, %v688
        %v718 = vmul.f32 %v678, %v692
        %v719 = vmul.f32 %v678, %v696
        %v720 = vmul.f32 %v678, %v700
        %v721 = vmul.f32 %v678, %v704
        %v722 = vmul.f32 %v678, %v708
        %730 = vrot.lane.b32.xlu0 %v716, 126
        %v731 = vpop.permute.xlu0 %730
        %732 = vrot.lane.b32.xlu0 %v717, 126
        %v733 = vpop.permute.xlu0 %732
        %734 = vrot.lane.b32.xlu0 %v718, 126
        %v735 = vpop.permute.xlu0 %734
        %736 = vrot.lane.b32.xlu0 %v719, 126
        %v737 = vpop.permute.xlu0 %736
        %738 = vrot.lane.b32.xlu0 %v720, 126
        %v739 = vpop.permute.xlu0 %738
        %740 = vrot.lane.b32.xlu0 %v721, 126
        %v741 = vpop.permute.xlu0 %740
        %742 = vrot.lane.b32.xlu0 %v722, 126
        %v743 = vpop.permute.xlu0 %742
        %vm744 = vcmask 1031168
        %v745 = vsel %vm744, %v731, %v733
        %v746 = vsel %vm744, %v733, %v735
        %v747 = vsel %vm744, %v735, %v737
        %v748 = vsel %vm744, %v737, %v739
        %v749 = vsel %vm744, %v739, %v741
        %v750 = vsel %vm744, %v741, %v743
        %v758 = vadd.f32 %v661, %v745
        %v759 = vadd.f32 %v662, %v746
        %v760 = vadd.f32 %v663, %v747
        %v761 = vadd.f32 %v664, %v748
        %v762 = vadd.f32 %v665, %v749
        %v763 = vadd.f32 %v666, %v750
        %v764 = vadd.f32 %v667, %v743
        %v765 = vld [vmem:[%s458] sm:$0x7f]
        %766 = vrot.lane.b32.xlu0 %v520, 28
        %v767 = vpop.permute.xlu0 %766
        %v768 = vrot.slane %v767, 7
        %vm769 = vcmask 228352
        %v770 = vsel %vm769, %v768, %v767
        %v772 = vmul.f32 %v765, %v770
        %773 = vset.pattern.permute.xlu0 3
        %774 = vperm.xlu0 %773, %v470
        %v775 = vpop.permute.xlu0 %774
        %v778 = vlaneseq
        %v779 = vshrl.u32 %v778, 7
        %v780 = vsub.s32 0, %v779
        %v781 = vrot.slane %v772, %v780
        %v782 = vlaneseq
        %v783 = vshrl.u32 %v782, 7
        %v784 = vsub.s32 1, %v783
        %v785 = vrot.slane %v772, %v784
        %v786 = vlaneseq
        %v787 = vshrl.u32 %v786, 7
        %v788 = vsub.s32 2, %v787
        %v789 = vrot.slane %v772, %v788
        %v790 = vlaneseq
        %v791 = vshrl.u32 %v790, 7
        %v792 = vsub.s32 3, %v791
        %v793 = vrot.slane %v772, %v792
        %v794 = vlaneseq
        %v795 = vshrl.u32 %v794, 7
        %v796 = vsub.s32 4, %v795
        %v797 = vrot.slane %v772, %v796
        %v798 = vlaneseq
        %v799 = vshrl.u32 %v798, 7
        %v800 = vsub.s32 5, %v799
        %v801 = vrot.slane %v772, %v800
        %v802 = vlaneseq
        %v803 = vshrl.u32 %v802, 7
        %v804 = vsub.s32 6, %v803
        %v805 = vrot.slane %v772, %v804
        %v813 = vmul.f32 %v775, %v781
        %v814 = vmul.f32 %v775, %v785
        %v815 = vmul.f32 %v775, %v789
        %v816 = vmul.f32 %v775, %v793
        %v817 = vmul.f32 %v775, %v797
        %v818 = vmul.f32 %v775, %v801
        %v819 = vmul.f32 %v775, %v805
        %827 = vrot.lane.b32.xlu0 %v813, 100
        %v828 = vpop.permute.xlu0 %827
        %829 = vrot.lane.b32.xlu0 %v814, 100
        %v830 = vpop.permute.xlu0 %829
        %831 = vrot.lane.b32.xlu0 %v815, 100
        %v832 = vpop.permute.xlu0 %831
        %833 = vrot.lane.b32.xlu0 %v816, 100
        %v834 = vpop.permute.xlu0 %833
        %835 = vrot.lane.b32.xlu0 %v817, 100
        %v836 = vpop.permute.xlu0 %835
        %837 = vrot.lane.b32.xlu0 %v818, 100
        %v838 = vpop.permute.xlu0 %837
        %839 = vrot.lane.b32.xlu0 %v819, 100
        %v840 = vpop.permute.xlu0 %839
        %vm841 = vcmask 818176
        %v842 = vsel %vm841, %v828, %v830
        %v843 = vsel %vm841, %v830, %v832
        %v844 = vsel %vm841, %v832, %v834
        %v845 = vsel %vm841, %v834, %v836
        %v846 = vsel %vm841, %v836, %v838
        %v847 = vsel %vm841, %v838, %v840
        %v855 = vadd.f32 %v758, %v842
        %v856 = vadd.f32 %v759, %v843
        %v857 = vadd.f32 %v760, %v844
        %v858 = vadd.f32 %v761, %v845
        %v859 = vadd.f32 %v762, %v846
        %v860 = vadd.f32 %v763, %v847
        %v861 = vadd.f32 %v764, %v840
        %v862 = vld [vmem:[%s458] sm:$0x7f]
        %863 = vset.pattern.permute.xlu0 4
        %864 = vperm.xlu0 %863, %v470
        %v865 = vpop.permute.xlu0 %864
        %v868 = vlaneseq
        %v869 = vshrl.u32 %v868, 7
        %v870 = vsub.s32 0, %v869
        %v871 = vrot.slane %v862, %v870
        %v872 = vlaneseq
        %v873 = vshrl.u32 %v872, 7
        %v874 = vsub.s32 1, %v873
        %v875 = vrot.slane %v862, %v874
        %v876 = vlaneseq
        %v877 = vshrl.u32 %v876, 7
        %v878 = vsub.s32 2, %v877
        %v879 = vrot.slane %v862, %v878
        %v880 = vlaneseq
        %v881 = vshrl.u32 %v880, 7
        %v882 = vsub.s32 3, %v881
        %v883 = vrot.slane %v862, %v882
        %v884 = vlaneseq
        %v885 = vshrl.u32 %v884, 7
        %v886 = vsub.s32 4, %v885
        %v887 = vrot.slane %v862, %v886
        %v888 = vlaneseq
        %v889 = vshrl.u32 %v888, 7
        %v890 = vsub.s32 5, %v889
        %v891 = vrot.slane %v862, %v890
        %v892 = vlaneseq
        %v893 = vshrl.u32 %v892, 7
        %v894 = vsub.s32 6, %v893
        %v895 = vrot.slane %v862, %v894
        %v903 = vmul.f32 %v865, %v871
        %v904 = vmul.f32 %v865, %v875
        %v905 = vmul.f32 %v865, %v879
        %v906 = vmul.f32 %v865, %v883
        %v907 = vmul.f32 %v865, %v887
        %v908 = vmul.f32 %v865, %v891
        %v909 = vmul.f32 %v865, %v895
        %917 = vrot.lane.b32.xlu0 %v903, 99
        %v918 = vpop.permute.xlu0 %917
        %919 = vrot.lane.b32.xlu0 %v904, 99
        %v920 = vpop.permute.xlu0 %919
        %921 = vrot.lane.b32.xlu0 %v905, 99
        %v922 = vpop.permute.xlu0 %921
        %923 = vrot.lane.b32.xlu0 %v906, 99
        %v924 = vpop.permute.xlu0 %923
        %925 = vrot.lane.b32.xlu0 %v907, 99
        %v926 = vpop.permute.xlu0 %925
        %927 = vrot.lane.b32.xlu0 %v908, 99
        %v928 = vpop.permute.xlu0 %927
        %929 = vrot.lane.b32.xlu0 %v909, 99
        %v930 = vpop.permute.xlu0 %929
        %vm931 = vcmask 809984
        %v932 = vsel %vm931, %v918, %v920
        %v933 = vsel %vm931, %v920, %v922
        %v934 = vsel %vm931, %v922, %v924
        %v935 = vsel %vm931, %v924, %v926
        %v936 = vsel %vm931, %v926, %v928
        %v937 = vsel %vm931, %v928, %v930
        %v945 = vadd.f32 %v855, %v932
        %v946 = vadd.f32 %v856, %v933
        %v947 = vadd.f32 %v857, %v934
        %v948 = vadd.f32 %v858, %v935
        %v949 = vadd.f32 %v859, %v936
        %v950 = vadd.f32 %v860, %v937
        %v951 = vadd.f32 %v861, %v930
        %952 = vrot.lane.b32.xlu0 %v668, 30
        %v953 = vpop.permute.xlu0 %952
        %v954 = vrot.slane %v953, 7
        %vm955 = vcmask 244736
        %v956 = vsel %vm955, %v954, %v953
        %v958 = vmul.f32 %v862, %v956
        %959 = vset.pattern.permute.xlu0 5
        %960 = vperm.xlu0 %959, %v470
        %v961 = vpop.permute.xlu0 %960
        %v964 = vlaneseq
        %v965 = vshrl.u32 %v964, 7
        %v966 = vsub.s32 0, %v965
        %v967 = vrot.slane %v958, %v966
        %v968 = vlaneseq
        %v969 = vshrl.u32 %v968, 7
        %v970 = vsub.s32 1, %v969
        %v971 = vrot.slane %v958, %v970
        %v972 = vlaneseq
        %v973 = vshrl.u32 %v972, 7
        %v974 = vsub.s32 2, %v973
        %v975 = vrot.slane %v958, %v974
        %v976 = vlaneseq
        %v977 = vshrl.u32 %v976, 7
        %v978 = vsub.s32 3, %v977
        %v979 = vrot.slane %v958, %v978
        %v980 = vlaneseq
        %v981 = vshrl.u32 %v980, 7
        %v982 = vsub.s32 4, %v981
        %v983 = vrot.slane %v958, %v982
        %v984 = vlaneseq
        %v985 = vshrl.u32 %v984, 7
        %v986 = vsub.s32 5, %v985
        %v987 = vrot.slane %v958, %v986
        %v988 = vlaneseq
        %v989 = vshrl.u32 %v988, 7
        %v990 = vsub.s32 6, %v989
        %v991 = vrot.slane %v958, %v990
        %v999 = vmul.f32 %v961, %v967
        %v1000 = vmul.f32 %v961, %v971
        %v1001 = vmul.f32 %v961, %v975
        %v1002 = vmul.f32 %v961, %v979
        %v1003 = vmul.f32 %v961, %v983
        %v1004 = vmul.f32 %v961, %v987
        %v1005 = vmul.f32 %v961, %v991
        %1013 = vrot.lane.b32.xlu0 %v999, 98
        %v1014 = vpop.permute.xlu0 %1013
        %1015 = vrot.lane.b32.xlu0 %v1000, 98
        %v1016 = vpop.permute.xlu0 %1015
        %1017 = vrot.lane.b32.xlu0 %v1001, 98
        %v1018 = vpop.permute.xlu0 %1017
        %1019 = vrot.lane.b32.xlu0 %v1002, 98
        %v1020 = vpop.permute.xlu0 %1019
        %1021 = vrot.lane.b32.xlu0 %v1003, 98
        %v1022 = vpop.permute.xlu0 %1021
        %1023 = vrot.lane.b32.xlu0 %v1004, 98
        %v1024 = vpop.permute.xlu0 %1023
        %1025 = vrot.lane.b32.xlu0 %v1005, 98
        %v1026 = vpop.permute.xlu0 %1025
        %vm1027 = vcmask 801792
        %v1028 = vsel %vm1027, %v1014, %v1016
        %v1029 = vsel %vm1027, %v1016, %v1018
        %v1030 = vsel %vm1027, %v1018, %v1020
        %v1031 = vsel %vm1027, %v1020, %v1022
        %v1032 = vsel %vm1027, %v1022, %v1024
        %v1033 = vsel %vm1027, %v1024, %v1026
        %v1041 = vadd.f32 %v945, %v1028
        %v1042 = vadd.f32 %v946, %v1029
        %v1043 = vadd.f32 %v947, %v1030
        %v1044 = vadd.f32 %v948, %v1031
        %v1045 = vadd.f32 %v949, %v1032
        %v1046 = vadd.f32 %v950, %v1033
        %v1047 = vadd.f32 %v951, %v1026
        %v1048 = vld [vmem:[%s458] sm:$0x7f]
        %1049 = vrot.lane.b32.xlu0 %v520, 56
        %v1050 = vpop.permute.xlu0 %1049
        %v1051 = vrot.slane %v1050, 7
        %vm1052 = vcmask 457728
        %v1053 = vsel %vm1052, %v1051, %v1050
        %v1055 = vmul.f32 %v1048, %v1053
        %1056 = vset.pattern.permute.xlu0 6
        %1057 = vperm.xlu0 %1056, %v470
        %v1058 = vpop.permute.xlu0 %1057
        %v1061 = vlaneseq
        %v1062 = vshrl.u32 %v1061, 7
        %v1063 = vsub.s32 0, %v1062
        %v1064 = vrot.slane %v1055, %v1063
        %v1065 = vlaneseq
        %v1066 = vshrl.u32 %v1065, 7
        %v1067 = vsub.s32 1, %v1066
        %v1068 = vrot.slane %v1055, %v1067
        %v1069 = vlaneseq
        %v1070 = vshrl.u32 %v1069, 7
        %v1071 = vsub.s32 2, %v1070
        %v1072 = vrot.slane %v1055, %v1071
        %v1073 = vlaneseq
        %v1074 = vshrl.u32 %v1073, 7
        %v1075 = vsub.s32 3, %v1074
        %v1076 = vrot.slane %v1055, %v1075
        %v1077 = vlaneseq
        %v1078 = vshrl.u32 %v1077, 7
        %v1079 = vsub.s32 4, %v1078
        %v1080 = vrot.slane %v1055, %v1079
        %v1081 = vlaneseq
        %v1082 = vshrl.u32 %v1081, 7
        %v1083 = vsub.s32 5, %v1082
        %v1084 = vrot.slane %v1055, %v1083
        %v1085 = vlaneseq
        %v1086 = vshrl.u32 %v1085, 7
        %v1087 = vsub.s32 6, %v1086
        %v1088 = vrot.slane %v1055, %v1087
        %v1096 = vmul.f32 %v1058, %v1064
        %v1097 = vmul.f32 %v1058, %v1068
        %v1098 = vmul.f32 %v1058, %v1072
        %v1099 = vmul.f32 %v1058, %v1076
        %v1100 = vmul.f32 %v1058, %v1080
        %v1101 = vmul.f32 %v1058, %v1084
        %v1102 = vmul.f32 %v1058, %v1088
        %1110 = vrot.lane.b32.xlu0 %v1096, 72
        %v1111 = vpop.permute.xlu0 %1110
        %1112 = vrot.lane.b32.xlu0 %v1097, 72
        %v1113 = vpop.permute.xlu0 %1112
        %1114 = vrot.lane.b32.xlu0 %v1098, 72
        %v1115 = vpop.permute.xlu0 %1114
        %1116 = vrot.lane.b32.xlu0 %v1099, 72
        %v1117 = vpop.permute.xlu0 %1116
        %1118 = vrot.lane.b32.xlu0 %v1100, 72
        %v1119 = vpop.permute.xlu0 %1118
        %1120 = vrot.lane.b32.xlu0 %v1101, 72
        %v1121 = vpop.permute.xlu0 %1120
        %1122 = vrot.lane.b32.xlu0 %v1102, 72
        %v1123 = vpop.permute.xlu0 %1122
        %vm1124 = vcmask 588800
        %v1125 = vsel %vm1124, %v1111, %v1113
        %v1126 = vsel %vm1124, %v1113, %v1115
        %v1127 = vsel %vm1124, %v1115, %v1117
        %v1128 = vsel %vm1124, %v1117, %v1119
        %v1129 = vsel %vm1124, %v1119, %v1121
        %v1130 = vsel %vm1124, %v1121, %v1123
        %v1138 = vadd.f32 %v1041, %v1125
        %v1139 = vadd.f32 %v1042, %v1126
        %v1140 = vadd.f32 %v1043, %v1127
        %v1141 = vadd.f32 %v1044, %v1128
        %v1142 = vadd.f32 %v1045, %v1129
        %v1143 = vadd.f32 %v1046, %v1130
        %v1144 = vadd.f32 %v1047, %v1123
        %v1145 = vld [vmem:[%s458] sm:$0x7f]
        %1146 = vset.pattern.permute.xlu0 7
        %1147 = vperm.xlu0 %1146, %v470
        %v1148 = vpop.permute.xlu0 %1147
        %v1151 = vlaneseq
        %v1152 = vshrl.u32 %v1151, 7
        %v1153 = vsub.s32 0, %v1152
        %v1154 = vrot.slane %v1145, %v1153
        %v1155 = vlaneseq
        %v1156 = vshrl.u32 %v1155, 7
        %v1157 = vsub.s32 1, %v1156
        %v1158 = vrot.slane %v1145, %v1157
        %v1159 = vlaneseq
        %v1160 = vshrl.u32 %v1159, 7
        %v1161 = vsub.s32 2, %v1160
        %v1162 = vrot.slane %v1145, %v1161
        %v1163 = vlaneseq
        %v1164 = vshrl.u32 %v1163, 7
        %v1165 = vsub.s32 3, %v1164
        %v1166 = vrot.slane %v1145, %v1165
        %v1167 = vlaneseq
        %v1168 = vshrl.u32 %v1167, 7
        %v1169 = vsub.s32 4, %v1168
        %v1170 = vrot.slane %v1145, %v1169
        %v1171 = vlaneseq
        %v1172 = vshrl.u32 %v1171, 7
        %v1173 = vsub.s32 5, %v1172
        %v1174 = vrot.slane %v1145, %v1173
        %v1175 = vlaneseq
        %v1176 = vshrl.u32 %v1175, 7
        %v1177 = vsub.s32 6, %v1176
        %v1178 = vrot.slane %v1145, %v1177
        %v1186 = vmul.f32 %v1148, %v1154
        %v1187 = vmul.f32 %v1148, %v1158
        %v1188 = vmul.f32 %v1148, %v1162
        %v1189 = vmul.f32 %v1148, %v1166
        %v1190 = vmul.f32 %v1148, %v1170
        %v1191 = vmul.f32 %v1148, %v1174
        %v1192 = vmul.f32 %v1148, %v1178
        %1200 = vrot.lane.b32.xlu0 %v1186, 71
        %v1201 = vpop.permute.xlu0 %1200
        %1202 = vrot.lane.b32.xlu0 %v1187, 71
        %v1203 = vpop.permute.xlu0 %1202
        %1204 = vrot.lane.b32.xlu0 %v1188, 71
        %v1205 = vpop.permute.xlu0 %1204
        %1206 = vrot.lane.b32.xlu0 %v1189, 71
        %v1207 = vpop.permute.xlu0 %1206
        %1208 = vrot.lane.b32.xlu0 %v1190, 71
        %v1209 = vpop.permute.xlu0 %1208
        %1210 = vrot.lane.b32.xlu0 %v1191, 71
        %v1211 = vpop.permute.xlu0 %1210
        %1212 = vrot.lane.b32.xlu0 %v1192, 71
        %v1213 = vpop.permute.xlu0 %1212
        %vm1214 = vcmask 580608
        %v1215 = vsel %vm1214, %v1201, %v1203
        %v1216 = vsel %vm1214, %v1203, %v1205
        %v1217 = vsel %vm1214, %v1205, %v1207
        %v1218 = vsel %vm1214, %v1207, %v1209
        %v1219 = vsel %vm1214, %v1209, %v1211
        %v1220 = vsel %vm1214, %v1211, %v1213
        %v1228 = vadd.f32 %v1138, %v1215
        %v1229 = vadd.f32 %v1139, %v1216
        %v1230 = vadd.f32 %v1140, %v1217
        %v1231 = vadd.f32 %v1141, %v1218
        %v1232 = vadd.f32 %v1142, %v1219
        %v1233 = vadd.f32 %v1143, %v1220
        %v1234 = vadd.f32 %v1144, %v1213
        %1235 = vrot.lane.b32.xlu0 %v668, 58
        %v1236 = vpop.permute.xlu0 %1235
        %v1237 = vrot.slane %v1236, 7
        %vm1238 = vcmask 474112
        %v1239 = vsel %vm1238, %v1237, %v1236
        %v1241 = vmul.f32 %v1145, %v1239
        %1242 = vset.pattern.permute.xlu0 8
        %1243 = vperm.xlu0 %1242, %v470
        %v1244 = vpop.permute.xlu0 %1243
        %v1247 = vlaneseq
        %v1248 = vshrl.u32 %v1247, 7
        %v1249 = vsub.s32 0, %v1248
        %v1250 = vrot.slane %v1241, %v1249
        %v1251 = vlaneseq
        %v1252 = vshrl.u32 %v1251, 7
        %v1253 = vsub.s32 1, %v1252
        %v1254 = vrot.slane %v1241, %v1253
        %v1255 = vlaneseq
        %v1256 = vshrl.u32 %v1255, 7
        %v1257 = vsub.s32 2, %v1256
        %v1258 = vrot.slane %v1241, %v1257
        %v1259 = vlaneseq
        %v1260 = vshrl.u32 %v1259, 7
        %v1261 = vsub.s32 3, %v1260
        %v1262 = vrot.slane %v1241, %v1261
        %v1263 = vlaneseq
        %v1264 = vshrl.u32 %v1263, 7
        %v1265 = vsub.s32 4, %v1264
        %v1266 = vrot.slane %v1241, %v1265
        %v1267 = vlaneseq
        %v1268 = vshrl.u32 %v1267, 7
        %v1269 = vsub.s32 5, %v1268
        %v1270 = vrot.slane %v1241, %v1269
        %v1271 = vlaneseq
        %v1272 = vshrl.u32 %v1271, 7
        %v1273 = vsub.s32 6, %v1272
        %v1274 = vrot.slane %v1241, %v1273
        %v1282 = vmul.f32 %v1244, %v1250
        %v1283 = vmul.f32 %v1244, %v1254
        %v1284 = vmul.f32 %v1244, %v1258
        %v1285 = vmul.f32 %v1244, %v1262
        %v1286 = vmul.f32 %v1244, %v1266
        %v1287 = vmul.f32 %v1244, %v1270
        %v1288 = vmul.f32 %v1244, %v1274
        %1296 = vrot.lane.b32.xlu0 %v1282, 70
        %v1297 = vpop.permute.xlu0 %1296
        %1298 = vrot.lane.b32.xlu0 %v1283, 70
        %v1299 = vpop.permute.xlu0 %1298
        %1300 = vrot.lane.b32.xlu0 %v1284, 70
        %v1301 = vpop.permute.xlu0 %1300
        %1302 = vrot.lane.b32.xlu0 %v1285, 70
        %v1303 = vpop.permute.xlu0 %1302
        %1304 = vrot.lane.b32.xlu0 %v1286, 70
        %v1305 = vpop.permute.xlu0 %1304
        %1306 = vrot.lane.b32.xlu0 %v1287, 70
        %v1307 = vpop.permute.xlu0 %1306
        %1308 = vrot.lane.b32.xlu0 %v1288, 70
        %v1309 = vpop.permute.xlu0 %1308
        %vm1310 = vcmask 572416
        %v1311 = vsel %vm1310, %v1297, %v1299
        %v1312 = vsel %vm1310, %v1299, %v1301
        %v1313 = vsel %vm1310, %v1301, %v1303
        %v1314 = vsel %vm1310, %v1303, %v1305
        %v1315 = vsel %vm1310, %v1305, %v1307
        %v1316 = vsel %vm1310, %v1307, %v1309
        %v1324 = vadd.f32 %v1228, %v1311
        %v1325 = vadd.f32 %v1229, %v1312
        %v1326 = vadd.f32 %v1230, %v1313
        %v1327 = vadd.f32 %v1231, %v1314
        %v1328 = vadd.f32 %v1232, %v1315
        %v1329 = vadd.f32 %v1233, %v1316
        %v1330 = vadd.f32 %v1234, %v1309
        %v1331 = vld [vmem:[%s4] sm:$0xff]
        %1333 = vset.pattern.permute.xlu0 0
        %1334 = vperm.xlu0 %1333, %v1331
        %v1335 = vpop.permute.xlu0 %1334
        %v1337 = vadd.f32 %v1324, %v1335
        %v1338 = vadd.f32 %v1325, %v1335
        %v1339 = vadd.f32 %v1326, %v1335
        %v1340 = vadd.f32 %v1327, %v1335
        %v1341 = vadd.f32 %v1328, %v1335
        %v1342 = vadd.f32 %v1329, %v1335
        %v1343 = vadd.f32 %v1330, %v1335
        %v1344 = vmax.f32 %v1337, 0.0
        %v1345 = vmax.f32 %v1338, 0.0
        %v1346 = vmax.f32 %v1339, 0.0
        %v1347 = vmax.f32 %v1340, 0.0
        %v1348 = vmax.f32 %v1341, 0.0
        %v1349 = vmax.f32 %v1342, 0.0
        %v1350 = vmax.f32 %v1343, 0.0
        %1351 = vst [vmem:[#allocation2] sm:$0xff] 0.0
        %1352 = vst [vmem:[#allocation2 + $0x8] sm:$0xff] 0.0
        %1353 = vst [vmem:[#allocation2 + $0x10] sm:$0xff] 0.0
        %1354 = vst [vmem:[#allocation2 + $0x18] sm:$0xff] 0.0
        %1355 = vst [vmem:[#allocation2 + $0x20] sm:$0xff] 0.0
        %1356 = vst [vmem:[#allocation2 + $0x28] sm:$0xff] 0.0
        %vm1357 = vcmask 605184
        %1358 = vst.msk [vmem:[#allocation2 + $0x30] sm:$0xff] %vm1357, 0.0
        %1366 = vrot.lane.b32.xlu0 %v1344, 29
        %v1367 = vpop.permute.xlu0 %1366
        %1368 = vrot.lane.b32.xlu0 %v1345, 29
        %v1369 = vpop.permute.xlu0 %1368
        %1370 = vrot.lane.b32.xlu0 %v1346, 29
        %v1371 = vpop.permute.xlu0 %1370
        %1372 = vrot.lane.b32.xlu0 %v1347, 29
        %v1373 = vpop.permute.xlu0 %1372
        %1374 = vrot.lane.b32.xlu0 %v1348, 29
        %v1375 = vpop.permute.xlu0 %1374
        %1376 = vrot.lane.b32.xlu0 %v1349, 29
        %v1377 = vpop.permute.xlu0 %1376
        %1378 = vrot.lane.b32.xlu0 %v1350, 29
        %v1379 = vpop.permute.xlu0 %1378
        %vm1380 = vcmask 236544
        %v1381 = vsel %vm1380, %v1367, %v1369
        %v1382 = vsel %vm1380, %v1369, %v1371
        %v1383 = vsel %vm1380, %v1371, %v1373
        %v1384 = vsel %vm1380, %v1373, %v1375
        %v1385 = vsel %vm1380, %v1375, %v1377
        %v1386 = vsel %vm1380, %v1377, %v1379
        %vm1394 = vcmask 1047784
        %1395 = vst.msk [vmem:[#allocation2] sm:$0xff] %vm1394, %v1367
        %1396 = vst [vmem:[#allocation2 + $0x8] sm:$0xff] %v1381
        %1397 = vst [vmem:[#allocation2 + $0x10] sm:$0xff] %v1382
        %1398 = vst [vmem:[#allocation2 + $0x18] sm:$0xff] %v1383
        %1399 = vst [vmem:[#allocation2 + $0x20] sm:$0xff] %v1384
        %1400 = vst [vmem:[#allocation2 + $0x28] sm:$0xff] %v1385
        %vm1401 = vcmask 367616
        %1402 = vst.msk [vmem:[#allocation2 + $0x30] sm:$0xff] %vm1401, %v1386
        %v1403 = vld [vmem:[#allocation2] sm:$0xff]
        %v1404 = vld [vmem:[#allocation2 + $0x8] sm:$0xff]
        %v1405 = vld [vmem:[#allocation2 + $0x10] sm:$0xff]
        %v1406 = vld [vmem:[#allocation2 + $0x18] sm:$0xff]
        %v1407 = vld [vmem:[#allocation2 + $0x20] sm:$0xff]
        %v1408 = vld [vmem:[#allocation2 + $0x28] sm:$0xff]
        %v1409 = vld [vmem:[#allocation2 + $0x30] sm:$0xff]
        %v1410 = vlaneseq
        %v1411 = vshrl.u32 %v1410, 7
        %v1412 = vsub.s32 0, %v1411
        %v1413 = vrot.slane %v466, %v1412
        %v1414 = vlaneseq
        %v1415 = vshrl.u32 %v1414, 7
        %v1416 = vsub.s32 4, %v1415
        %v1417 = vrot.slane %v466, %v1416
        %v1418 = vlaneseq
        %v1419 = vshrl.u32 %v1418, 7
        %v1420 = vsub.s32 0, %v1419
        %v1421 = vrot.slane %v467, %v1420
        %v1422 = vlaneseq
        %v1423 = vshrl.u32 %v1422, 7
        %v1424 = vsub.s32 4, %v1423
        %v1425 = vrot.slane %v467, %v1424
        %v1426 = vlaneseq
        %v1427 = vshrl.u32 %v1426, 7
        %v1428 = vsub.s32 0, %v1427
        %v1429 = vrot.slane %v468, %v1428
        %v1430 = vlaneseq
        %v1431 = vshrl.u32 %v1430, 7
        %v1432 = vsub.s32 4, %v1431
        %v1433 = vrot.slane %v468, %v1432
        %v1434 = vlaneseq
        %v1435 = vshrl.u32 %v1434, 7
        %v1436 = vsub.s32 0, %v1435
        %v1437 = vrot.slane %v469, %v1436
        %v1445 = vlaneseq
        %v1446 = vshrl.u32 %v1445, 7
        %v1447 = vsub.s32 0, %v1446
        %v1448 = vrot.slane %v1413, %v1447
        %v1449 = vlaneseq
        %v1450 = vshrl.u32 %v1449, 7
        %v1451 = vsub.s32 0, %v1450
        %v1452 = vrot.slane %v1417, %v1451
        %v1453 = vlaneseq
        %v1454 = vshrl.u32 %v1453, 7
        %v1455 = vsub.s32 0, %v1454
        %v1456 = vrot.slane %v1421, %v1455
        %v1457 = vlaneseq
        %v1458 = vshrl.u32 %v1457, 7
        %v1459 = vsub.s32 0, %v1458
        %v1460 = vrot.slane %v1425, %v1459
        %v1461 = vlaneseq
        %v1462 = vshrl.u32 %v1461, 7
        %v1463 = vsub.s32 0, %v1462
        %v1464 = vrot.slane %v1429, %v1463
        %v1465 = vlaneseq
        %v1466 = vshrl.u32 %v1465, 7
        %v1467 = vsub.s32 0, %v1466
        %v1468 = vrot.slane %v1433, %v1467
        %v1469 = vlaneseq
        %v1470 = vshrl.u32 %v1469, 7
        %v1471 = vsub.s32 0, %v1470
        %v1472 = vrot.slane %v1437, %v1471
        %v1473 = vmul.f32 %v1403, %v1448
        %v1474 = vmul.f32 %v1404, %v1452
        %v1475 = vmul.f32 %v1405, %v1456
        %v1476 = vmul.f32 %v1406, %v1460
        %v1477 = vmul.f32 %v1407, %v1464
        %v1478 = vmul.f32 %v1408, %v1468
        %v1479 = vmul.f32 %v1409, %v1472
        %v1480 = vlaneseq
        %v1481 = vshrl.u32 %v1480, 7
        %v1482 = vsub.s32 2, %v1481
        %v1483 = vrot.slane %v466, %v1482
        %v1484 = vlaneseq
        %v1485 = vshrl.u32 %v1484, 7
        %v1486 = vsub.s32 6, %v1485
        %v1487 = vrot.slane %v466, %v1486
        %v1488 = vlaneseq
        %v1489 = vshrl.u32 %v1488, 7
        %v1490 = vsub.s32 2, %v1489
        %v1491 = vrot.slane %v467, %v1490
        %v1492 = vlaneseq
        %v1493 = vshrl.u32 %v1492, 7
        %v1494 = vsub.s32 6, %v1493
        %v1495 = vrot.slane %v467, %v1494
        %v1496 = vlaneseq
        %v1497 = vshrl.u32 %v1496, 7
        %v1498 = vsub.s32 2, %v1497
        %v1499 = vrot.slane %v468, %v1498
        %v1500 = vlaneseq
        %v1501 = vshrl.u32 %v1500, 7
        %v1502 = vsub.s32 6, %v1501
        %v1503 = vrot.slane %v468, %v1502
        %v1504 = vlaneseq
        %v1505 = vshrl.u32 %v1504, 7
        %v1506 = vsub.s32 2, %v1505
        %v1507 = vrot.slane %v469, %v1506
        %v1515 = vlaneseq
        %v1516 = vshrl.u32 %v1515, 7
        %v1517 = vsub.s32 2, %v1516
        %v1518 = vrot.slane %v1483, %v1517
        %v1519 = vlaneseq
        %v1520 = vshrl.u32 %v1519, 7
        %v1521 = vsub.s32 2, %v1520
        %v1522 = vrot.slane %v1487, %v1521
        %v1523 = vlaneseq
        %v1524 = vshrl.u32 %v1523, 7
        %v1525 = vsub.s32 2, %v1524
        %v1526 = vrot.slane %v1491, %v1525
        %v1527 = vlaneseq
        %v1528 = vshrl.u32 %v1527, 7
        %v1529 = vsub.s32 2, %v1528
        %v1530 = vrot.slane %v1495, %v1529
        %v1531 = vlaneseq
        %v1532 = vshrl.u32 %v1531, 7
        %v1533 = vsub.s32 2, %v1532
        %v1534 = vrot.slane %v1499, %v1533
        %v1535 = vlaneseq
        %v1536 = vshrl.u32 %v1535, 7
        %v1537 = vsub.s32 2, %v1536
        %v1538 = vrot.slane %v1503, %v1537
        %v1539 = vlaneseq
        %v1540 = vshrl.u32 %v1539, 7
        %v1541 = vsub.s32 2, %v1540
        %v1542 = vrot.slane %v1507, %v1541
        %1550 = vrot.lane.b32.xlu0 %v1518, 2
        %v1551 = vpop.permute.xlu0 %1550
        %1552 = vrot.lane.b32.xlu0 %v1522, 2
        %v1553 = vpop.permute.xlu0 %1552
        %1554 = vrot.lane.b32.xlu0 %v1526, 2
        %v1555 = vpop.permute.xlu0 %1554
        %1556 = vrot.lane.b32.xlu0 %v1530, 2
        %v1557 = vpop.permute.xlu0 %1556
        %1558 = vrot.lane.b32.xlu0 %v1534, 2
        %v1559 = vpop.permute.xlu0 %1558
        %1560 = vrot.lane.b32.xlu0 %v1538, 2
        %v1561 = vpop.permute.xlu0 %1560
        %1562 = vrot.lane.b32.xlu0 %v1542, 2
        %v1563 = vpop.permute.xlu0 %1562
        %v1564 = vsel %vm672, %v1551, %v1553
        %v1565 = vsel %vm672, %v1553, %v1555
        %v1566 = vsel %vm672, %v1555, %v1557
        %v1567 = vsel %vm672, %v1557, %v1559
        %v1568 = vsel %vm672, %v1559, %v1561
        %v1569 = vsel %vm672, %v1561, %v1563
        %v1577 = vmul.f32 %v1403, %v1551
        %v1578 = vmul.f32 %v1404, %v1564
        %v1579 = vmul.f32 %v1405, %v1565
        %v1580 = vmul.f32 %v1406, %v1566
        %v1581 = vmul.f32 %v1407, %v1567
        %v1582 = vmul.f32 %v1408, %v1568
        %v1583 = vmul.f32 %v1409, %v1569
        %1591 = vrot.lane.b32.xlu0 %v1448, 28
        %v1592 = vpop.permute.xlu0 %1591
        %1593 = vrot.lane.b32.xlu0 %v1452, 28
        %v1594 = vpop.permute.xlu0 %1593
        %1595 = vrot.lane.b32.xlu0 %v1456, 28
        %v1596 = vpop.permute.xlu0 %1595
        %1597 = vrot.lane.b32.xlu0 %v1460, 28
        %v1598 = vpop.permute.xlu0 %1597
        %1599 = vrot.lane.b32.xlu0 %v1464, 28
        %v1600 = vpop.permute.xlu0 %1599
        %1601 = vrot.lane.b32.xlu0 %v1468, 28
        %v1602 = vpop.permute.xlu0 %1601
        %1603 = vrot.lane.b32.xlu0 %v1472, 28
        %v1604 = vpop.permute.xlu0 %1603
        %v1605 = vsel %vm769, %v1592, %v1594
        %v1606 = vsel %vm769, %v1594, %v1596
        %v1607 = vsel %vm769, %v1596, %v1598
        %v1608 = vsel %vm769, %v1598, %v1600
        %v1609 = vsel %vm769, %v1600, %v1602
        %v1610 = vsel %vm769, %v1602, %v1604
        %v1618 = vmul.f32 %v1403, %v1592
        %v1619 = vmul.f32 %v1404, %v1605
        %v1620 = vmul.f32 %v1405, %v1606
        %v1621 = vmul.f32 %v1406, %v1607
        %v1622 = vmul.f32 %v1407, %v1608
        %v1623 = vmul.f32 %v1408, %v1609
        %v1624 = vmul.f32 %v1409, %v1610
        %1625 = vrot.lane.b32.xlu0 %v1518, 30
        %v1626 = vpop.permute.xlu0 %1625
        %1627 = vrot.lane.b32.xlu0 %v1522, 30
        %v1628 = vpop.permute.xlu0 %1627
        %1629 = vrot.lane.b32.xlu0 %v1526, 30
        %v1630 = vpop.permute.xlu0 %1629
        %1631 = vrot.lane.b32.xlu0 %v1530, 30
        %v1632 = vpop.permute.xlu0 %1631
        %1633 = vrot.lane.b32.xlu0 %v1534, 30
        %v1634 = vpop.permute.xlu0 %1633
        %1635 = vrot.lane.b32.xlu0 %v1538, 30
        %v1636 = vpop.permute.xlu0 %1635
        %1637 = vrot.lane.b32.xlu0 %v1542, 30
        %v1638 = vpop.permute.xlu0 %1637
        %v1639 = vsel %vm955, %v1626, %v1628
        %v1640 = vsel %vm955, %v1628, %v1630
        %v1641 = vsel %vm955, %v1630, %v1632
        %v1642 = vsel %vm955, %v1632, %v1634
        %v1643 = vsel %vm955, %v1634, %v1636
        %v1644 = vsel %vm955, %v1636, %v1638
        %v1652 = vmul.f32 %v1403, %v1626
        %v1653 = vmul.f32 %v1404, %v1639
        %v1654 = vmul.f32 %v1405, %v1640
        %v1655 = vmul.f32 %v1406, %v1641
        %v1656 = vmul.f32 %v1407, %v1642
        %v1657 = vmul.f32 %v1408, %v1643
        %v1658 = vmul.f32 %v1409, %v1644
        %1659 = vrot.lane.b32.xlu0 %v1448, 56
        %v1660 = vpop.permute.xlu0 %1659
        %1661 = vrot.lane.b32.xlu0 %v1452, 56
        %v1662 = vpop.permute.xlu0 %1661
        %1663 = vrot.lane.b32.xlu0 %v1456, 56
        %v1664 = vpop.permute.xlu0 %1663
        %1665 = vrot.lane.b32.xlu0 %v1460, 56
        %v1666 = vpop.permute.xlu0 %1665
        %1667 = vrot.lane.b32.xlu0 %v1464, 56
        %v1668 = vpop.permute.xlu0 %1667
        %1669 = vrot.lane.b32.xlu0 %v1468, 56
        %v1670 = vpop.permute.xlu0 %1669
        %1671 = vrot.lane.b32.xlu0 %v1472, 56
        %v1672 = vpop.permute.xlu0 %1671
        %v1673 = vsel %vm1052, %v1660, %v1662
        %v1674 = vsel %vm1052, %v1662, %v1664
        %v1675 = vsel %vm1052, %v1664, %v1666
        %v1676 = vsel %vm1052, %v1666, %v1668
        %v1677 = vsel %vm1052, %v1668, %v1670
        %v1678 = vsel %vm1052, %v1670, %v1672
        %v1686 = vmul.f32 %v1403, %v1660
        %v1687 = vmul.f32 %v1404, %v1673
        %v1688 = vmul.f32 %v1405, %v1674
        %v1689 = vmul.f32 %v1406, %v1675
        %v1690 = vmul.f32 %v1407, %v1676
        %v1691 = vmul.f32 %v1408, %v1677
        %v1692 = vmul.f32 %v1409, %v1678
        %1693 = vrot.lane.b32.xlu0 %v1518, 58
        %v1694 = vpop.permute.xlu0 %1693
        %1695 = vrot.lane.b32.xlu0 %v1522, 58
        %v1696 = vpop.permute.xlu0 %1695
        %1697 = vrot.lane.b32.xlu0 %v1526, 58
        %v1698 = vpop.permute.xlu0 %1697
        %1699 = vrot.lane.b32.xlu0 %v1530, 58
        %v1700 = vpop.permute.xlu0 %1699
        %1701 = vrot.lane.b32.xlu0 %v1534, 58
        %v1702 = vpop.permute.xlu0 %1701
        %1703 = vrot.lane.b32.xlu0 %v1538, 58
        %v1704 = vpop.permute.xlu0 %1703
        %1705 = vrot.lane.b32.xlu0 %v1542, 58
        %v1706 = vpop.permute.xlu0 %1705
        %v1707 = vsel %vm1238, %v1694, %v1696
        %v1708 = vsel %vm1238, %v1696, %v1698
        %v1709 = vsel %vm1238, %v1698, %v1700
        %v1710 = vsel %vm1238, %v1700, %v1702
        %v1711 = vsel %vm1238, %v1702, %v1704
        %v1712 = vsel %vm1238, %v1704, %v1706
        %v1720 = vmul.f32 %v1403, %v1694
        %v1721 = vmul.f32 %v1404, %v1707
        %v1722 = vmul.f32 %v1405, %v1708
        %v1723 = vmul.f32 %v1406, %v1709
        %v1724 = vmul.f32 %v1407, %v1710
        %v1725 = vmul.f32 %v1408, %v1711
        %v1726 = vmul.f32 %v1409, %v1712
        %1734 = vrot.lane.b32.xlu0 %v1403, 127
        %v1735 = vpop.permute.xlu0 %1734
        %1736 = vrot.lane.b32.xlu0 %v1404, 127
        %v1737 = vpop.permute.xlu0 %1736
        %1738 = vrot.lane.b32.xlu0 %v1405, 127
        %v1739 = vpop.permute.xlu0 %1738
        %1740 = vrot.lane.b32.xlu0 %v1406, 127
        %v1741 = vpop.permute.xlu0 %1740
        %1742 = vrot.lane.b32.xlu0 %v1407, 127
        %v1743 = vpop.permute.xlu0 %1742
        %1744 = vrot.lane.b32.xlu0 %v1408, 127
        %v1745 = vpop.permute.xlu0 %1744
        %1746 = vrot.lane.b32.xlu0 %v1409, 127
        %v1747 = vpop.permute.xlu0 %1746
        %v1748 = vsel %vm647, %v1735, %v1737
        %v1749 = vsel %vm647, %v1737, %v1739
        %v1750 = vsel %vm647, %v1739, %v1741
        %v1751 = vsel %vm647, %v1741, %v1743
        %v1752 = vsel %vm647, %v1743, %v1745
        %v1753 = vsel %vm647, %v1745, %v1747
        %1768 = vrot.lane.b32.xlu0 %v1577, 126
        %v1769 = vpop.permute.xlu0 %1768
        %1770 = vrot.lane.b32.xlu0 %v1578, 126
        %v1771 = vpop.permute.xlu0 %1770
        %1772 = vrot.lane.b32.xlu0 %v1579, 126
        %v1773 = vpop.permute.xlu0 %1772
        %1774 = vrot.lane.b32.xlu0 %v1580, 126
        %v1775 = vpop.permute.xlu0 %1774
        %1776 = vrot.lane.b32.xlu0 %v1581, 126
        %v1777 = vpop.permute.xlu0 %1776
        %1778 = vrot.lane.b32.xlu0 %v1582, 126
        %v1779 = vpop.permute.xlu0 %1778
        %1780 = vrot.lane.b32.xlu0 %v1583, 126
        %v1781 = vpop.permute.xlu0 %1780
        %v1782 = vsel %vm744, %v1769, %v1771
        %v1783 = vsel %vm744, %v1771, %v1773
        %v1784 = vsel %vm744, %v1773, %v1775
        %v1785 = vsel %vm744, %v1775, %v1777
        %v1786 = vsel %vm744, %v1777, %v1779
        %v1787 = vsel %vm744, %v1779, %v1781
        %1802 = vrot.lane.b32.xlu0 %v1618, 100
        %v1803 = vpop.permute.xlu0 %1802
        %1804 = vrot.lane.b32.xlu0 %v1619, 100
        %v1805 = vpop.permute.xlu0 %1804
        %1806 = vrot.lane.b32.xlu0 %v1620, 100
        %v1807 = vpop.permute.xlu0 %1806
        %1808 = vrot.lane.b32.xlu0 %v1621, 100
        %v1809 = vpop.permute.xlu0 %1808
        %1810 = vrot.lane.b32.xlu0 %v1622, 100
        %v1811 = vpop.permute.xlu0 %1810
        %1812 = vrot.lane.b32.xlu0 %v1623, 100
        %v1813 = vpop.permute.xlu0 %1812
        %1814 = vrot.lane.b32.xlu0 %v1624, 100
        %v1815 = vpop.permute.xlu0 %1814
        %v1816 = vsel %vm841, %v1803, %v1805
        %v1817 = vsel %vm841, %v1805, %v1807
        %v1818 = vsel %vm841, %v1807, %v1809
        %v1819 = vsel %vm841, %v1809, %v1811
        %v1820 = vsel %vm841, %v1811, %v1813
        %v1821 = vsel %vm841, %v1813, %v1815
        %1829 = vrot.lane.b32.xlu0 %v1403, 99
        %v1830 = vpop.permute.xlu0 %1829
        %1831 = vrot.lane.b32.xlu0 %v1404, 99
        %v1832 = vpop.permute.xlu0 %1831
        %1833 = vrot.lane.b32.xlu0 %v1405, 99
        %v1834 = vpop.permute.xlu0 %1833
        %1835 = vrot.lane.b32.xlu0 %v1406, 99
        %v1836 = vpop.permute.xlu0 %1835
        %1837 = vrot.lane.b32.xlu0 %v1407, 99
        %v1838 = vpop.permute.xlu0 %1837
        %1839 = vrot.lane.b32.xlu0 %v1408, 99
        %v1840 = vpop.permute.xlu0 %1839
        %1841 = vrot.lane.b32.xlu0 %v1409, 99
        %v1842 = vpop.permute.xlu0 %1841
        %v1843 = vsel %vm931, %v1830, %v1832
        %v1844 = vsel %vm931, %v1832, %v1834
        %v1845 = vsel %vm931, %v1834, %v1836
        %v1846 = vsel %vm931, %v1836, %v1838
        %v1847 = vsel %vm931, %v1838, %v1840
        %v1848 = vsel %vm931, %v1840, %v1842
        %1863 = vrot.lane.b32.xlu0 %v1652, 98
        %v1864 = vpop.permute.xlu0 %1863
        %1865 = vrot.lane.b32.xlu0 %v1653, 98
        %v1866 = vpop.permute.xlu0 %1865
        %1867 = vrot.lane.b32.xlu0 %v1654, 98
        %v1868 = vpop.permute.xlu0 %1867
        %1869 = vrot.lane.b32.xlu0 %v1655, 98
        %v1870 = vpop.permute.xlu0 %1869
        %1871 = vrot.lane.b32.xlu0 %v1656, 98
        %v1872 = vpop.permute.xlu0 %1871
        %1873 = vrot.lane.b32.xlu0 %v1657, 98
        %v1874 = vpop.permute.xlu0 %1873
        %1875 = vrot.lane.b32.xlu0 %v1658, 98
        %v1876 = vpop.permute.xlu0 %1875
        %v1877 = vsel %vm1027, %v1864, %v1866
        %v1878 = vsel %vm1027, %v1866, %v1868
        %v1879 = vsel %vm1027, %v1868, %v1870
        %v1880 = vsel %vm1027, %v1870, %v1872
        %v1881 = vsel %vm1027, %v1872, %v1874
        %v1882 = vsel %vm1027, %v1874, %v1876
        %1897 = vrot.lane.b32.xlu0 %v1686, 72
        %v1898 = vpop.permute.xlu0 %1897
        %1899 = vrot.lane.b32.xlu0 %v1687, 72
        %v1900 = vpop.permute.xlu0 %1899
        %1901 = vrot.lane.b32.xlu0 %v1688, 72
        %v1902 = vpop.permute.xlu0 %1901
        %1903 = vrot.lane.b32.xlu0 %v1689, 72
        %v1904 = vpop.permute.xlu0 %1903
        %1905 = vrot.lane.b32.xlu0 %v1690, 72
        %v1906 = vpop.permute.xlu0 %1905
        %1907 = vrot.lane.b32.xlu0 %v1691, 72
        %v1908 = vpop.permute.xlu0 %1907
        %1909 = vrot.lane.b32.xlu0 %v1692, 72
        %v1910 = vpop.permute.xlu0 %1909
        %v1911 = vsel %vm1124, %v1898, %v1900
        %v1912 = vsel %vm1124, %v1900, %v1902
        %v1913 = vsel %vm1124, %v1902, %v1904
        %v1914 = vsel %vm1124, %v1904, %v1906
        %v1915 = vsel %vm1124, %v1906, %v1908
        %v1916 = vsel %vm1124, %v1908, %v1910
        %1924 = vrot.lane.b32.xlu0 %v1403, 71
        %v1925 = vpop.permute.xlu0 %1924
        %1926 = vrot.lane.b32.xlu0 %v1404, 71
        %v1927 = vpop.permute.xlu0 %1926
        %1928 = vrot.lane.b32.xlu0 %v1405, 71
        %v1929 = vpop.permute.xlu0 %1928
        %1930 = vrot.lane.b32.xlu0 %v1406, 71
        %v1931 = vpop.permute.xlu0 %1930
        %1932 = vrot.lane.b32.xlu0 %v1407, 71
        %v1933 = vpop.permute.xlu0 %1932
        %1934 = vrot.lane.b32.xlu0 %v1408, 71
        %v1935 = vpop.permute.xlu0 %1934
        %1936 = vrot.lane.b32.xlu0 %v1409, 71
        %v1937 = vpop.permute.xlu0 %1936
        %v1938 = vsel %vm1214, %v1925, %v1927
        %v1939 = vsel %vm1214, %v1927, %v1929
        %v1940 = vsel %vm1214, %v1929, %v1931
        %v1941 = vsel %vm1214, %v1931, %v1933
        %v1942 = vsel %vm1214, %v1933, %v1935
        %v1943 = vsel %vm1214, %v1935, %v1937
        %1958 = vrot.lane.b32.xlu0 %v1720, 70
        %v1959 = vpop.permute.xlu0 %1958
        %1960 = vrot.lane.b32.xlu0 %v1721, 70
        %v1961 = vpop.permute.xlu0 %1960
        %1962 = vrot.lane.b32.xlu0 %v1722, 70
        %v1963 = vpop.permute.xlu0 %1962
        %1964 = vrot.lane.b32.xlu0 %v1723, 70
        %v1965 = vpop.permute.xlu0 %1964
        %1966 = vrot.lane.b32.xlu0 %v1724, 70
        %v1967 = vpop.permute.xlu0 %1966
        %1968 = vrot.lane.b32.xlu0 %v1725, 70
        %v1969 = vpop.permute.xlu0 %1968
        %1970 = vrot.lane.b32.xlu0 %v1726, 70
        %v1971 = vpop.permute.xlu0 %1970
        %v1972 = vsel %vm1310, %v1959, %v1961
        %v1973 = vsel %vm1310, %v1961, %v1963
        %v1974 = vsel %vm1310, %v1963, %v1965
        %v1975 = vsel %vm1310, %v1965, %v1967
        %v1976 = vsel %vm1310, %v1967, %v1969
        %v1977 = vsel %vm1310, %v1969, %v1971
        %v1985 = vld [vmem:[%s5] sm:$0xff]
        %v1986 = vld [vmem:[%s6] sm:$0xff]
        %1988 = vset.pattern.permute.xlu0 0
        %1989 = vperm.xlu0 %1988, %v1986
        %v1990 = vpop.permute.xlu0 %1989
        %v1993 = vsel %vm1124, %v1985, 0
        %1995 = vmatprep.subr.mxu0 %v1474
        %1996 = vmatpush1.msra.mxu0 %v1473
        %1997 = vmatprep.subr.mxu0 %v1749
        %1998 = vmatpush1.msra.mxu0 %v1748
        %1999 = vmatprep.subr.mxu0 %v1783
        %2000 = vmatpush1.msra.mxu0 %v1782
        %2001 = vmatprep.subr.mxu0 %v1817
        %2002 = vmatpush1.msra.mxu0 %v1816
        %2003 = vmatprep.subr.mxu0 %v1844
        %2004 = vmatpush1.msra.mxu0 %v1843
        %2005 = vmatprep.subr.mxu0 %v1878
        %2006 = vmatpush1.msra.mxu0 %v1877
        %2007 = vmatprep.subr.mxu0 %v1912
        %2008 = vmatpush1.msra.mxu0 %v1911
        %2009 = vmatprep.subr.mxu0 %v1939
        %2010 = vmatpush1.msra.mxu0 %v1938
        %2011 = vmatprep.subr.mxu0 %v1973
        %2012 = vmatpush1.msra.mxu0 %v1972
        %2013 = vmatprep.subr.mxu0 0.0
        %2014 = vmatpush1.msra.mxu0 0.0
        %2015 = vmatprep.subr.mxu0 0.0
        %2016 = vmatpush1.msra.mxu0 0.0
        %2017 = vmatprep.subr.mxu0 0.0
        %2018 = vmatpush1.msra.mxu0 0.0
        %2019 = vmatprep.subr.mxu0 0.0
        %2020 = vmatpush1.msra.mxu0 0.0
        %2021 = vmatprep.subr.mxu0 0.0
        %2022 = vmatpush1.msra.mxu0 0.0
        %2023 = vmatprep.subr.mxu0 0.0
        %2024 = vmatpush1.msra.mxu0 0.0
        %2025 = vmatprep.subr.mxu0 0.0
        %2026 = vmatpush1.msra.mxu0 0.0
        %2027 = vmatprep.subr.mxu0 0.0
        %2028 = vmatpush1.msra.mxu0 0.0
        %2029 = vmatprep.subr.mxu0 0.0
        %2030 = vmatpush1.msra.mxu0 0.0
        %2031 = vmatprep.subr.mxu0 0.0
        %2032 = vmatpush1.msra.mxu0 0.0
        %2033 = vmatprep.subr.mxu0 0.0
        %2034 = vmatpush1.msra.mxu0 0.0
        %2035 = vmatprep.subr.mxu0 0.0
        %2036 = vmatpush1.msra.mxu0 0.0
        %2037 = vmatprep.subr.mxu0 0.0
        %2038 = vmatpush1.msra.mxu0 0.0
        %2039 = vmatprep.subr.mxu0 0.0
        %2040 = vmatpush1.msra.mxu0 0.0
        %2041 = vmatprep.subr.mxu0 0.0
        %2042 = vmatpush1.msra.mxu0 0.0
        %2043 = vmatprep.subr.mxu0 0.0
        %2044 = vmatpush1.msra.mxu0 0.0
        %2045 = vmatprep.subr.mxu0 0.0
        %2046 = vmatpush1.msra.mxu0 0.0
        %2047 = vmatprep.subr.mxu0 0.0
        %2048 = vmatpush1.msra.mxu0 0.0
        %2049 = vmatprep.subr.mxu0 0.0
        %2050 = vmatpush1.msra.mxu0 0.0
        %2051 = vmatprep.subr.mxu0 0.0
        %2052 = vmatpush1.msra.mxu0 0.0
        %2053 = vmatprep.subr.mxu0 0.0
        %2054 = vmatpush1.msra.mxu0 0.0
        %2055 = vmatprep.subr.mxu0 0.0
        %2056 = vmatpush1.msra.mxu0 0.0
        %2057 = vmatprep.subr.mxu0 0.0
        %2058 = vmatpush1.msra.mxu0 0.0
        %2059 = vmatprep.mubr.f32.mxu0 0.0
        %2060 = vmatmul.mubr.f32.gmra.mrb[0].mxu0 %v1993
        %v2061 = vpop.f32.mrb[0].mxu0
        %v2062 = vadd.f32 %v1990, %v2061
        %v2063 = vpop.f32.mrb[0].mxu0
        %v2064 = vadd.f32 %v1990, %v2063
        %2065 = vdwg.mxu0
        %2066 = vmatprep.subr.mxu0 %v1476
        %2067 = vmatpush1.msra.mxu0 %v1475
        %2068 = vmatprep.subr.mxu0 %v1751
        %2069 = vmatpush1.msra.mxu0 %v1750
        %2070 = vmatprep.subr.mxu0 %v1785
        %2071 = vmatpush1.msra.mxu0 %v1784
        %2072 = vmatprep.subr.mxu0 %v1819
        %2073 = vmatpush1.msra.mxu0 %v1818
        %2074 = vmatprep.subr.mxu0 %v1846
        %2075 = vmatpush1.msra.mxu0 %v1845
        %2076 = vmatprep.subr.mxu0 %v1880
        %2077 = vmatpush1.msra.mxu0 %v1879
        %2078 = vmatprep.subr.mxu0 %v1914
        %2079 = vmatpush1.msra.mxu0 %v1913
        %2080 = vmatprep.subr.mxu0 %v1941
        %2081 = vmatpush1.msra.mxu0 %v1940
        %2082 = vmatprep.subr.mxu0 %v1975
        %2083 = vmatpush1.msra.mxu0 %v1974
        %2084 = vmatprep.subr.mxu0 0.0
        %2085 = vmatpush1.msra.mxu0 0.0
        %2086 = vmatprep.subr.mxu0 0.0
        %2087 = vmatpush1.msra.mxu0 0.0
        %2088 = vmatprep.subr.mxu0 0.0
        %2089 = vmatpush1.msra.mxu0 0.0
        %2090 = vmatprep.subr.mxu0 0.0
        %2091 = vmatpush1.msra.mxu0 0.0
        %2092 = vmatprep.subr.mxu0 0.0
        %2093 = vmatpush1.msra.mxu0 0.0
        %2094 = vmatprep.subr.mxu0 0.0
        %2095 = vmatpush1.msra.mxu0 0.0
        %2096 = vmatprep.subr.mxu0 0.0
        %2097 = vmatpush1.msra.mxu0 0.0
        %2098 = vmatprep.subr.mxu0 0.0
        %2099 = vmatpush1.msra.mxu0 0.0
        %2100 = vmatprep.subr.mxu0 0.0
        %2101 = vmatpush1.msra.mxu0 0.0
        %2102 = vmatprep.subr.mxu0 0.0
        %2103 = vmatpush1.msra.mxu0 0.0
        %2104 = vmatprep.subr.mxu0 0.0
        %2105 = vmatpush1.msra.mxu0 0.0
        %2106 = vmatprep.subr.mxu0 0.0
        %2107 = vmatpush1.msra.mxu0 0.0
        %2108 = vmatprep.subr.mxu0 0.0
        %2109 = vmatpush1.msra.mxu0 0.0
        %2110 = vmatprep.subr.mxu0 0.0
        %2111 = vmatpush1.msra.mxu0 0.0
        %2112 = vmatprep.subr.mxu0 0.0
        %2113 = vmatpush1.msra.mxu0 0.0
        %2114 = vmatprep.subr.mxu0 0.0
        %2115 = vmatpush1.msra.mxu0 0.0
        %2116 = vmatprep.subr.mxu0 0.0
        %2117 = vmatpush1.msra.mxu0 0.0
        %2118 = vmatprep.subr.mxu0 0.0
        %2119 = vmatpush1.msra.mxu0 0.0
        %2120 = vmatprep.subr.mxu0 0.0
        %2121 = vmatpush1.msra.mxu0 0.0
        %2122 = vmatprep.subr.mxu0 0.0
        %2123 = vmatpush1.msra.mxu0 0.0
        %2124 = vmatprep.subr.mxu0 0.0
        %2125 = vmatpush1.msra.mxu0 0.0
        %2126 = vmatprep.subr.mxu0 0.0
        %2127 = vmatpush1.msra.mxu0 0.0
        %2128 = vmatprep.subr.mxu0 0.0
        %2129 = vmatpush1.msra.mxu0 0.0
        %2130 = vmatprep.mubr.f32.mxu0 0.0
        %2131 = vmatmul.mubr.f32.gmra.mrb[0].mxu0 %v1993
        %v2132 = vpop.f32.mrb[0].mxu0
        %v2133 = vadd.f32 %v1990, %v2132
        %v2134 = vpop.f32.mrb[0].mxu0
        %v2135 = vadd.f32 %v1990, %v2134
        %2136 = vdwg.mxu0
        %2137 = vmatprep.subr.mxu0 %v1478
        %2138 = vmatpush1.msra.mxu0 %v1477
        %2139 = vmatprep.subr.mxu0 %v1753
        %2140 = vmatpush1.msra.mxu0 %v1752
        %2141 = vmatprep.subr.mxu0 %v1787
        %2142 = vmatpush1.msra.mxu0 %v1786
        %2143 = vmatprep.subr.mxu0 %v1821
        %2144 = vmatpush1.msra.mxu0 %v1820
        %2145 = vmatprep.subr.mxu0 %v1848
        %2146 = vmatpush1.msra.mxu0 %v1847
        %2147 = vmatprep.subr.mxu0 %v1882
        %2148 = vmatpush1.msra.mxu0 %v1881
        %2149 = vmatprep.subr.mxu0 %v1916
        %2150 = vmatpush1.msra.mxu0 %v1915
        %2151 = vmatprep.subr.mxu0 %v1943
        %2152 = vmatpush1.msra.mxu0 %v1942
        %2153 = vmatprep.subr.mxu0 %v1977
        %2154 = vmatpush1.msra.mxu0 %v1976
        %2155 = vmatprep.subr.mxu0 0.0
        %2156 = vmatpush1.msra.mxu0 0.0
        %2157 = vmatprep.subr.mxu0 0.0
        %2158 = vmatpush1.msra.mxu0 0.0
        %2159 = vmatprep.subr.mxu0 0.0
        %2160 = vmatpush1.msra.mxu0 0.0
        %2161 = vmatprep.subr.mxu0 0.0
        %2162 = vmatpush1.msra.mxu0 0.0
        %2163 = vmatprep.subr.mxu0 0.0
        %2164 = vmatpush1.msra.mxu0 0.0
        %2165 = vmatprep.subr.mxu0 0.0
        %2166 = vmatpush1.msra.mxu0 0.0
        %2167 = vmatprep.subr.mxu0 0.0
        %2168 = vmatpush1.msra.mxu0 0.0
        %2169 = vmatprep.subr.mxu0 0.0
        %2170 = vmatpush1.msra.mxu0 0.0
        %2171 = vmatprep.subr.mxu0 0.0
        %2172 = vmatpush1.msra.mxu0 0.0
        %2173 = vmatprep.subr.mxu0 0.0
        %2174 = vmatpush1.msra.mxu0 0.0
        %2175 = vmatprep.subr.mxu0 0.0
        %2176 = vmatpush1.msra.mxu0 0.0
        %2177 = vmatprep.subr.mxu0 0.0
        %2178 = vmatpush1.msra.mxu0 0.0
        %2179 = vmatprep.subr.mxu0 0.0
        %2180 = vmatpush1.msra.mxu0 0.0
        %2181 = vmatprep.subr.mxu0 0.0
        %2182 = vmatpush1.msra.mxu0 0.0
        %2183 = vmatprep.subr.mxu0 0.0
        %2184 = vmatpush1.msra.mxu0 0.0
        %2185 = vmatprep.subr.mxu0 0.0
        %2186 = vmatpush1.msra.mxu0 0.0
        %2187 = vmatprep.subr.mxu0 0.0
        %2188 = vmatpush1.msra.mxu0 0.0
        %2189 = vmatprep.subr.mxu0 0.0
        %2190 = vmatpush1.msra.mxu0 0.0
        %2191 = vmatprep.subr.mxu0 0.0
        %2192 = vmatpush1.msra.mxu0 0.0
        %2193 = vmatprep.subr.mxu0 0.0
        %2194 = vmatpush1.msra.mxu0 0.0
        %2195 = vmatprep.subr.mxu0 0.0
        %2196 = vmatpush1.msra.mxu0 0.0
        %2197 = vmatprep.subr.mxu0 0.0
        %2198 = vmatpush1.msra.mxu0 0.0
        %2199 = vmatprep.subr.mxu0 0.0
        %2200 = vmatpush1.msra.mxu0 0.0
        %2201 = vmatprep.mubr.f32.mxu0 0.0
        %2202 = vmatmul.mubr.f32.gmra.mrb[0].mxu0 %v1993
        %v2203 = vpop.f32.mrb[0].mxu0
        %v2204 = vadd.f32 %v1990, %v2203
        %v2205 = vpop.f32.mrb[0].mxu0
        %v2206 = vadd.f32 %v1990, %v2205
        %2207 = vdwg.mxu0
        %2208 = vmatprep.subr.mxu0 0.0
        %2209 = vmatpush1.msra.mxu0 %v1479
        %2210 = vmatprep.subr.mxu0 0.0
        %2211 = vmatpush1.msra.mxu0 %v1747
        %2212 = vmatprep.subr.mxu0 0.0
        %2213 = vmatpush1.msra.mxu0 %v1781
        %2214 = vmatprep.subr.mxu0 0.0
        %2215 = vmatpush1.msra.mxu0 %v1815
        %2216 = vmatprep.subr.mxu0 0.0
        %2217 = vmatpush1.msra.mxu0 %v1842
        %2218 = vmatprep.subr.mxu0 0.0
        %2219 = vmatpush1.msra.mxu0 %v1876
        %2220 = vmatprep.subr.mxu0 0.0
        %2221 = vmatpush1.msra.mxu0 %v1910
        %2222 = vmatprep.subr.mxu0 0.0
        %2223 = vmatpush1.msra.mxu0 %v1937
        %2224 = vmatprep.subr.mxu0 0.0
        %2225 = vmatpush1.msra.mxu0 %v1971
        %2226 = vmatprep.subr.mxu0 0.0
        %2227 = vmatpush1.msra.mxu0 0.0
        %2228 = vmatprep.subr.mxu0 0.0
        %2229 = vmatpush1.msra.mxu0 0.0
        %2230 = vmatprep.subr.mxu0 0.0
        %2231 = vmatpush1.msra.mxu0 0.0
        %2232 = vmatprep.subr.mxu0 0.0
        %2233 = vmatpush1.msra.mxu0 0.0
        %2234 = vmatprep.subr.mxu0 0.0
        %2235 = vmatpush1.msra.mxu0 0.0
        %2236 = vmatprep.subr.mxu0 0.0
        %2237 = vmatpush1.msra.mxu0 0.0
        %2238 = vmatprep.subr.mxu0 0.0
        %2239 = vmatpush1.msra.mxu0 0.0
        %2240 = vmatprep.subr.mxu0 0.0
        %2241 = vmatpush1.msra.mxu0 0.0
        %2242 = vmatprep.subr.mxu0 0.0
        %2243 = vmatpush1.msra.mxu0 0.0
        %2244 = vmatprep.subr.mxu0 0.0
        %2245 = vmatpush1.msra.mxu0 0.0
        %2246 = vmatprep.subr.mxu0 0.0
        %2247 = vmatpush1.msra.mxu0 0.0
        %2248 = vmatprep.subr.mxu0 0.0
        %2249 = vmatpush1.msra.mxu0 0.0
        %2250 = vmatprep.subr.mxu0 0.0
        %2251 = vmatpush1.msra.mxu0 0.0
        %2252 = vmatprep.subr.mxu0 0.0
        %2253 = vmatpush1.msra.mxu0 0.0
        %2254 = vmatprep.subr.mxu0 0.0
        %2255 = vmatpush1.msra.mxu0 0.0
        %2256 = vmatprep.subr.mxu0 0.0
        %2257 = vmatpush1.msra.mxu0 0.0
        %2258 = vmatprep.subr.mxu0 0.0
        %2259 = vmatpush1.msra.mxu0 0.0
        %2260 = vmatprep.subr.mxu0 0.0
        %2261 = vmatpush1.msra.mxu0 0.0
        %2262 = vmatprep.subr.mxu0 0.0
        %2263 = vmatpush1.msra.mxu0 0.0
        %2264 = vmatprep.subr.mxu0 0.0
        %2265 = vmatpush1.msra.mxu0 0.0
        %2266 = vmatprep.subr.mxu0 0.0
        %2267 = vmatpush1.msra.mxu0 0.0
        %2268 = vmatprep.subr.mxu0 0.0
        %2269 = vmatpush1.msra.mxu0 0.0
        %2270 = vmatprep.subr.mxu0 0.0
        %2271 = vmatpush1.msra.mxu0 0.0
        %2272 = vmatprep.mubr.f32.mxu0 0.0
        %2273 = vmatmul.mubr.f32.gmra.mrb[0].mxu0 %v1993
        %v2274 = vpop.f32.mrb[0].mxu0
        %v2275 = vadd.f32 %v1990, %v2274
        %v2276 = vpop.f32.mrb[0].mxu0
        %2277 = vdwg.mxu0
        %v2278 = vmax.f32 %v2062, 0.0
        %v2279 = vmax.f32 %v2064, 0.0
        %v2280 = vmax.f32 %v2133, 0.0
        %v2281 = vmax.f32 %v2135, 0.0
        %v2282 = vmax.f32 %v2204, 0.0
        %v2283 = vmax.f32 %v2206, 0.0
        %v2284 = vmax.f32 %v2275, 0.0
        %2285 = vst [vmem:[#allocation3] sm:$0xff] %v2278
        %2286 = vst [vmem:[#allocation3 + $0x8] sm:$0xff] %v2279
        %2287 = vst [vmem:[#allocation3 + $0x10] sm:$0xff] %v2280
        %2288 = vst [vmem:[#allocation3 + $0x18] sm:$0xff] %v2281
        %2289 = vst [vmem:[#allocation3 + $0x20] sm:$0xff] %v2282
        %2290 = vst [vmem:[#allocation3 + $0x28] sm:$0xff] %v2283
        %vm2291 = vcmask 130048
        %2292 = vst.msk [vmem:[#allocation3 + $0x30] sm:$0xff] %vm2291, %v2284
        %vm2293 = vcmask 1047680
        %2294 = vst.msk [vmem:[#allocation3 + $0x30] sm:$0xff] %vm2293, 0.0
        %v2295 = vld [vmem:[#allocation3] sm:$0xff]
        %v2296 = vld [vmem:[#allocation3 + $0x8] sm:$0xff]
        %v2297 = vld [vmem:[#allocation3 + $0x10] sm:$0xff]
        %v2298 = vld [vmem:[#allocation3 + $0x18] sm:$0xff]
        %v2299 = vld [vmem:[#allocation3 + $0x20] sm:$0xff]
        %v2300 = vld [vmem:[#allocation3 + $0x28] sm:$0xff]
        %v2301 = vld [vmem:[#allocation3 + $0x30] sm:$0xff]
        %2309 = vrot.lane.b32.xlu0 %v2295, 127
        %v2310 = vpop.permute.xlu0 %2309
        %2311 = vrot.lane.b32.xlu0 %v2296, 127
        %v2312 = vpop.permute.xlu0 %2311
        %2313 = vrot.lane.b32.xlu0 %v2297, 127
        %v2314 = vpop.permute.xlu0 %2313
        %2315 = vrot.lane.b32.xlu0 %v2298, 127
        %v2316 = vpop.permute.xlu0 %2315
        %2317 = vrot.lane.b32.xlu0 %v2299, 127
        %v2318 = vpop.permute.xlu0 %2317
        %2319 = vrot.lane.b32.xlu0 %v2300, 127
        %v2320 = vpop.permute.xlu0 %2319
        %2321 = vrot.lane.b32.xlu0 %v2301, 127
        %v2322 = vpop.permute.xlu0 %2321
        %v2323 = vsel %vm647, %v2310, %v2312
        %v2324 = vsel %vm647, %v2312, %v2314
        %v2325 = vsel %vm647, %v2314, %v2316
        %v2326 = vsel %vm647, %v2316, %v2318
        %v2327 = vsel %vm647, %v2318, %v2320
        %v2328 = vsel %vm647, %v2320, %v2322
        %v2336 = vmax.f32 %v2295, %v2323
        %v2337 = vmax.f32 %v2296, %v2324
        %v2338 = vmax.f32 %v2297, %v2325
        %v2339 = vmax.f32 %v2298, %v2326
        %v2340 = vmax.f32 %v2299, %v2327
        %v2341 = vmax.f32 %v2300, %v2328
        %v2342 = vmax.f32 %v2301, %v2322
        %2343 = vrot.lane.b32.xlu0 %v2295, 126
        %v2344 = vpop.permute.xlu0 %2343
        %2345 = vrot.lane.b32.xlu0 %v2296, 126
        %v2346 = vpop.permute.xlu0 %2345
        %2347 = vrot.lane.b32.xlu0 %v2297, 126
        %v2348 = vpop.permute.xlu0 %2347
        %2349 = vrot.lane.b32.xlu0 %v2298, 126
        %v2350 = vpop.permute.xlu0 %2349
        %2351 = vrot.lane.b32.xlu0 %v2299, 126
        %v2352 = vpop.permute.xlu0 %2351
        %2353 = vrot.lane.b32.xlu0 %v2300, 126
        %v2354 = vpop.permute.xlu0 %2353
        %2355 = vrot.lane.b32.xlu0 %v2301, 126
        %v2356 = vpop.permute.xlu0 %2355
        %v2357 = vsel %vm744, %v2344, %v2346
        %v2358 = vsel %vm744, %v2346, %v2348
        %v2359 = vsel %vm744, %v2348, %v2350
        %v2360 = vsel %vm744, %v2350, %v2352
        %v2361 = vsel %vm744, %v2352, %v2354
        %v2362 = vsel %vm744, %v2354, %v2356
        %v2370 = vmax.f32 %v2336, %v2357
        %v2371 = vmax.f32 %v2337, %v2358
        %v2372 = vmax.f32 %v2338, %v2359
        %v2373 = vmax.f32 %v2339, %v2360
        %v2374 = vmax.f32 %v2340, %v2361
        %v2375 = vmax.f32 %v2341, %v2362
        %v2376 = vmax.f32 %v2342, %v2356
        %2377 = vrot.lane.b32.xlu0 %v2295, 125
        %v2378 = vpop.permute.xlu0 %2377
        %2379 = vrot.lane.b32.xlu0 %v2296, 125
        %v2380 = vpop.permute.xlu0 %2379
        %2381 = vrot.lane.b32.xlu0 %v2297, 125
        %v2382 = vpop.permute.xlu0 %2381
        %2383 = vrot.lane.b32.xlu0 %v2298, 125
        %v2384 = vpop.permute.xlu0 %2383
        %2385 = vrot.lane.b32.xlu0 %v2299, 125
        %v2386 = vpop.permute.xlu0 %2385
        %2387 = vrot.lane.b32.xlu0 %v2300, 125
        %v2388 = vpop.permute.xlu0 %2387
        %2389 = vrot.lane.b32.xlu0 %v2301, 125
        %v2390 = vpop.permute.xlu0 %2389
        %vm2391 = vcmask 1022976
        %v2392 = vsel %vm2391, %v2378, %v2380
        %v2393 = vsel %vm2391, %v2380, %v2382
        %v2394 = vsel %vm2391, %v2382, %v2384
        %v2395 = vsel %vm2391, %v2384, %v2386
        %v2396 = vsel %vm2391, %v2386, %v2388
        %v2397 = vsel %vm2391, %v2388, %v2390
        %v2405 = vmax.f32 %v2370, %v2392
        %v2406 = vmax.f32 %v2371, %v2393
        %v2407 = vmax.f32 %v2372, %v2394
        %v2408 = vmax.f32 %v2373, %v2395
        %v2409 = vmax.f32 %v2374, %v2396
        %v2410 = vmax.f32 %v2375, %v2397
        %v2411 = vmax.f32 %v2376, %v2390
        %2412 = vrot.lane.b32.xlu0 %v2295, 124
        %v2413 = vpop.permute.xlu0 %2412
        %2414 = vrot.lane.b32.xlu0 %v2296, 124
        %v2415 = vpop.permute.xlu0 %2414
        %2416 = vrot.lane.b32.xlu0 %v2297, 124
        %v2417 = vpop.permute.xlu0 %2416
        %2418 = vrot.lane.b32.xlu0 %v2298, 124
        %v2419 = vpop.permute.xlu0 %2418
        %2420 = vrot.lane.b32.xlu0 %v2299, 124
        %v2421 = vpop.permute.xlu0 %2420
        %2422 = vrot.lane.b32.xlu0 %v2300, 124
        %v2423 = vpop.permute.xlu0 %2422
        %2424 = vrot.lane.b32.xlu0 %v2301, 124
        %v2425 = vpop.permute.xlu0 %2424
        %vm2426 = vcmask 1014784
        %v2427 = vsel %vm2426, %v2413, %v2415
        %v2428 = vsel %vm2426, %v2415, %v2417
        %v2429 = vsel %vm2426, %v2417, %v2419
        %v2430 = vsel %vm2426, %v2419, %v2421
        %v2431 = vsel %vm2426, %v2421, %v2423
        %v2432 = vsel %vm2426, %v2423, %v2425
        %v2440 = vmax.f32 %v2405, %v2427
        %v2441 = vmax.f32 %v2406, %v2428
        %v2442 = vmax.f32 %v2407, %v2429
        %v2443 = vmax.f32 %v2408, %v2430
        %v2444 = vmax.f32 %v2409, %v2431
        %v2445 = vmax.f32 %v2410, %v2432
        %v2446 = vmax.f32 %v2411, %v2425
        %2447 = vst [vmem:[#allocation4] sm:$0xff] %v2440
        %2448 = vst [vmem:[#allocation4 + $0x8] sm:$0xff] %v2441
        %2449 = vst [vmem:[#allocation4 + $0x10] sm:$0xff] %v2442
        %2450 = vst [vmem:[#allocation4 + $0x18] sm:$0xff] %v2443
        %2451 = vst [vmem:[#allocation4 + $0x20] sm:$0xff] %v2444
        %2452 = vst [vmem:[#allocation4 + $0x28] sm:$0xff] %v2445
        %2453 = vst.msk [vmem:[#allocation4 + $0x30] sm:$0xff] %vm2291, %v2446
        %2454 = vst.msk [vmem:[#allocation4 + $0x30] sm:$0xff] %vm2293, 0.0
        %v2455 = vld [vmem:[#allocation4] sm:$0xff]
        %v2456 = vld [vmem:[#allocation4 + $0x8] sm:$0xff]
        %v2457 = vld [vmem:[#allocation4 + $0x10] sm:$0xff]
        %v2458 = vld [vmem:[#allocation4 + $0x18] sm:$0xff]
        %v2459 = vld [vmem:[#allocation4 + $0x20] sm:$0xff]
        %v2460 = vld [vmem:[#allocation4 + $0x28] sm:$0xff]
        %v2461 = vld [vmem:[#allocation4 + $0x30] sm:$0xff]
        %2469 = vrot.lane.b32.xlu0 %v2455, 100
        %v2470 = vpop.permute.xlu0 %2469
        %2471 = vrot.lane.b32.xlu0 %v2456, 100
        %v2472 = vpop.permute.xlu0 %2471
        %2473 = vrot.lane.b32.xlu0 %v2457, 100
        %v2474 = vpop.permute.xlu0 %2473
        %2475 = vrot.lane.b32.xlu0 %v2458, 100
        %v2476 = vpop.permute.xlu0 %2475
        %2477 = vrot.lane.b32.xlu0 %v2459, 100
        %v2478 = vpop.permute.xlu0 %2477
        %2479 = vrot.lane.b32.xlu0 %v2460, 100
        %v2480 = vpop.permute.xlu0 %2479
        %2481 = vrot.lane.b32.xlu0 %v2461, 100
        %v2482 = vpop.permute.xlu0 %2481
        %v2483 = vsel %vm841, %v2470, %v2472
        %v2484 = vsel %vm841, %v2472, %v2474
        %v2485 = vsel %vm841, %v2474, %v2476
        %v2486 = vsel %vm841, %v2476, %v2478
        %v2487 = vsel %vm841, %v2478, %v2480
        %v2488 = vsel %vm841, %v2480, %v2482
        %v2496 = vmax.f32 %v2455, %v2483
        %v2497 = vmax.f32 %v2456, %v2484
        %v2498 = vmax.f32 %v2457, %v2485
        %v2499 = vmax.f32 %v2458, %v2486
        %v2500 = vmax.f32 %v2459, %v2487
        %v2501 = vmax.f32 %v2460, %v2488
        %v2502 = vmax.f32 %v2461, %v2482
        %2503 = vrot.lane.b32.xlu0 %v2455, 72
        %v2504 = vpop.permute.xlu0 %2503
        %2505 = vrot.lane.b32.xlu0 %v2456, 72
        %v2506 = vpop.permute.xlu0 %2505
        %2507 = vrot.lane.b32.xlu0 %v2457, 72
        %v2508 = vpop.permute.xlu0 %2507
        %2509 = vrot.lane.b32.xlu0 %v2458, 72
        %v2510 = vpop.permute.xlu0 %2509
        %2511 = vrot.lane.b32.xlu0 %v2459, 72
        %v2512 = vpop.permute.xlu0 %2511
        %2513 = vrot.lane.b32.xlu0 %v2460, 72
        %v2514 = vpop.permute.xlu0 %2513
        %2515 = vrot.lane.b32.xlu0 %v2461, 72
        %v2516 = vpop.permute.xlu0 %2515
        %v2517 = vsel %vm1124, %v2504, %v2506
        %v2518 = vsel %vm1124, %v2506, %v2508
        %v2519 = vsel %vm1124, %v2508, %v2510
        %v2520 = vsel %vm1124, %v2510, %v2512
        %v2521 = vsel %vm1124, %v2512, %v2514
        %v2522 = vsel %vm1124, %v2514, %v2516
        %v2530 = vmax.f32 %v2496, %v2517
        %v2531 = vmax.f32 %v2497, %v2518
        %v2532 = vmax.f32 %v2498, %v2519
        %v2533 = vmax.f32 %v2499, %v2520
        %v2534 = vmax.f32 %v2500, %v2521
        %v2535 = vmax.f32 %v2501, %v2522
        %v2536 = vmax.f32 %v2502, %v2516
        %2537 = vrot.lane.b32.xlu0 %v2455, 44
        %v2538 = vpop.permute.xlu0 %2537
        %2539 = vrot.lane.b32.xlu0 %v2456, 44
        %v2540 = vpop.permute.xlu0 %2539
        %2541 = vrot.lane.b32.xlu0 %v2457, 44
        %v2542 = vpop.permute.xlu0 %2541
        %2543 = vrot.lane.b32.xlu0 %v2458, 44
        %v2544 = vpop.permute.xlu0 %2543
        %2545 = vrot.lane.b32.xlu0 %v2459, 44
        %v2546 = vpop.permute.xlu0 %2545
        %2547 = vrot.lane.b32.xlu0 %v2460, 44
        %v2548 = vpop.permute.xlu0 %2547
        %2549 = vrot.lane.b32.xlu0 %v2461, 44
        %v2550 = vpop.permute.xlu0 %2549
        %vm2551 = vcmask 359424
        %v2552 = vsel %vm2551, %v2538, %v2540
        %v2553 = vsel %vm2551, %v2540, %v2542
        %v2554 = vsel %vm2551, %v2542, %v2544
        %v2555 = vsel %vm2551, %v2544, %v2546
        %v2556 = vsel %vm2551, %v2546, %v2548
        %v2557 = vsel %vm2551, %v2548, %v2550
        %v2565 = vmax.f32 %v2530, %v2552
        %v2566 = vmax.f32 %v2531, %v2553
        %v2567 = vmax.f32 %v2532, %v2554
        %v2568 = vmax.f32 %v2533, %v2555
        %v2569 = vmax.f32 %v2534, %v2556
        %v2570 = vmax.f32 %v2535, %v2557
        %v2571 = vmax.f32 %v2536, %v2550
        %2572 = vrot.lane.b32.xlu0 %v2455, 16
        %v2573 = vpop.permute.xlu0 %2572
        %2574 = vrot.lane.b32.xlu0 %v2456, 16
        %v2575 = vpop.permute.xlu0 %2574
        %2576 = vrot.lane.b32.xlu0 %v2457, 16
        %v2577 = vpop.permute.xlu0 %2576
        %2578 = vrot.lane.b32.xlu0 %v2458, 16
        %v2579 = vpop.permute.xlu0 %2578
        %2580 = vrot.lane.b32.xlu0 %v2459, 16
        %v2581 = vpop.permute.xlu0 %2580
        %2582 = vrot.lane.b32.xlu0 %v2460, 16
        %v2583 = vpop.permute.xlu0 %2582
        %2584 = vrot.lane.b32.xlu0 %v2461, 16
        %v2585 = vpop.permute.xlu0 %2584
        %v2586 = vsel %vm2291, %v2573, %v2575
        %v2587 = vsel %vm2291, %v2575, %v2577
        %v2588 = vsel %vm2291, %v2577, %v2579
        %v2589 = vsel %vm2291, %v2579, %v2581
        %v2590 = vsel %vm2291, %v2581, %v2583
        %v2591 = vsel %vm2291, %v2583, %v2585
        %v2599 = vmax.f32 %v2565, %v2586
        %v2600 = vmax.f32 %v2566, %v2587
        %v2601 = vmax.f32 %v2567, %v2588
        %v2602 = vmax.f32 %v2568, %v2589
        %v2603 = vmax.f32 %v2569, %v2590
        %v2604 = vmax.f32 %v2570, %v2591
        %v2605 = vmax.f32 %v2571, %v2585
        %v2606 = vld [vmem:[%s2] sm:$0xff]
        %v2607 = vld [vmem:[%s2 + $0x8] sm:$0xff]
        %v2608 = vld [vmem:[%s2 + $0x10] sm:$0xff]
        %v2609 = vld [vmem:[%s2 + $0x18] sm:$0xff]
        %v2610 = vld [vmem:[%s2 + $0x20] sm:$0xff]
        %v2611 = vld [vmem:[%s2 + $0x28] sm:$0xff]
        %v2612 = vld [vmem:[%s2 + $0x30] sm:$0xff]
        %v2613 = vld [vmem:[%s2 + $0x38] sm:$0xff]
        %v2614 = vld [vmem:[%s2 + $0x40] sm:$0xff]
        %v2615 = vld [vmem:[%s2 + $0x48] sm:$0xff]
        %v2616 = vld [vmem:[%s2 + $0x50] sm:$0xff]
        %v2617 = vld [vmem:[%s2 + $0x58] sm:$0xff]
        %v2618 = vld [vmem:[%s2 + $0x60] sm:$0xff]
        %v2619 = vld [vmem:[%s2 + $0x68] sm:$0xff]
        %v2620 = vld [vmem:[%s2 + $0x70] sm:$0xff]
        %v2621 = vld [vmem:[%s2 + $0x78] sm:$0xff]
        %v2622 = vld [vmem:[%s2 + $0x80] sm:$0xff]
        %v2623 = vld [vmem:[%s2 + $0x88] sm:$0xff]
        %v2624 = vld [vmem:[%s2 + $0x90] sm:$0xff]
        %v2625 = vld [vmem:[%s2 + $0x98] sm:$0xff]
        %v2626 = vld [vmem:[%s2 + $0xa0] sm:$0xff]
        %v2627 = vld [vmem:[%s2 + $0xa8] sm:$0xff]
        %v2628 = vld [vmem:[%s2 + $0xb0] sm:$0xff]
        %v2629 = vld [vmem:[%s2 + $0xb8] sm:$0xff]
        %v2630 = vld [vmem:[%s2 + $0xc0] sm:$0xff]
        %v2631 = vld [vmem:[%s2 + $0xc8] sm:$0xff]
        %v2632 = vld [vmem:[%s2 + $0xd0] sm:$0xff]
        %v2633 = vld [vmem:[%s2 + $0xd8] sm:$0xff]
        %v2634 = vld [vmem:[%s2 + $0xe0] sm:$0xff]
        %v2635 = vld [vmem:[%s2 + $0xe8] sm:$0xff]
        %v2636 = vld [vmem:[%s2 + $0xf0] sm:$0xff]
        %v2637 = vld [vmem:[%s2 + $0xf8] sm:$0xff]
        %v2638 = vld [vmem:[%s2 + $0x100] sm:$0xff]
        %v2639 = vld [vmem:[%s2 + $0x108] sm:$0xff]
        %v2640 = vld [vmem:[%s2 + $0x110] sm:$0xff]
        %v2641 = vld [vmem:[%s2 + $0x118] sm:$0xff]
        %v2642 = vld [vmem:[%s2 + $0x120] sm:$0xff]
        %v2643 = vld [vmem:[%s2 + $0x128] sm:$0xff]
        %v2644 = vld [vmem:[%s2 + $0x130] sm:$0xff]
        %v2645 = vld [vmem:[%s2 + $0x138] sm:$0xff]
        %v2646 = vld [vmem:[%s2 + $0x140] sm:$0xff]
        %v2647 = vld [vmem:[%s2 + $0x148] sm:$0xff]
        %v2648 = vld [vmem:[%s2 + $0x150] sm:$0xff]
        %v2649 = vld [vmem:[%s2 + $0x158] sm:$0xff]
        %v2650 = vld [vmem:[%s2 + $0x160] sm:$0xff]
        %v2651 = vld [vmem:[%s2 + $0x168] sm:$0xff]
        %v2652 = vld [vmem:[%s2 + $0x170] sm:$0xff]
        %v2653 = vld [vmem:[%s2 + $0x178] sm:$0xff]
        %v2654 = vld [vmem:[%s2 + $0x180] sm:$0xff]
        %v2655 = vld [vmem:[%s2 + $0x188] sm:$0xff]
        %v2656 = vld [vmem:[%s2 + $0x190] sm:$0xff]
        %v2657 = vld [vmem:[%s2 + $0x198] sm:$0xff]
        %v2658 = vld [vmem:[%s2 + $0x1a0] sm:$0xff]
        %v2659 = vld [vmem:[%s2 + $0x1a8] sm:$0xff]
        %v2660 = vld [vmem:[%s2 + $0x1b0] sm:$0xff]
        %v2661 = vld [vmem:[%s2 + $0x1b8] sm:$0xff]
        %v2662 = vld [vmem:[%s2 + $0x1c0] sm:$0xff]
        %v2663 = vld [vmem:[%s2 + $0x1c8] sm:$0xff]
        %v2664 = vld [vmem:[%s2 + $0x1d0] sm:$0xff]
        %v2665 = vld [vmem:[%s2 + $0x1d8] sm:$0xff]
        %v2666 = vld [vmem:[%s2 + $0x1e0] sm:$0xff]
        %v2667 = vld [vmem:[%s2 + $0x1e8] sm:$0xff]
        %v2668 = vld [vmem:[%s2 + $0x1f0] sm:$0xff]
        %v2669 = vld [vmem:[%s2 + $0x1f8] sm:$0xff]
        %v2670 = vld [vmem:[%s2 + $0x200] sm:$0xff]
        %v2671 = vld [vmem:[%s2 + $0x208] sm:$0xff]
        %v2672 = vld [vmem:[%s2 + $0x210] sm:$0xff]
        %v2673 = vld [vmem:[%s2 + $0x218] sm:$0xff]
        %v2674 = vld [vmem:[%s2 + $0x220] sm:$0xff]
        %v2675 = vld [vmem:[%s2 + $0x228] sm:$0xff]
        %v2676 = vld [vmem:[%s2 + $0x230] sm:$0xff]
        %v2677 = vld [vmem:[%s2 + $0x238] sm:$0xff]
        %v2678 = vld [vmem:[%s2 + $0x240] sm:$0xff]
        %v2679 = vld [vmem:[%s2 + $0x248] sm:$0xff]
        %v2680 = vld [vmem:[%s2 + $0x250] sm:$0xff]
        %v2681 = vld [vmem:[%s2 + $0x258] sm:$0xff]
        %v2682 = vld [vmem:[%s2 + $0x260] sm:$0xff]
        %v2683 = vld [vmem:[%s2 + $0x268] sm:$0xff]
        %v2684 = vld [vmem:[%s2 + $0x270] sm:$0xff]
        %v2685 = vld [vmem:[%s2 + $0x278] sm:$0xff]
        %v2686 = vld [vmem:[%s2 + $0x280] sm:$0xff]
        %v2687 = vld [vmem:[%s2 + $0x288] sm:$0xff]
        %v2688 = vld [vmem:[%s2 + $0x290] sm:$0xff]
        %v2689 = vld [vmem:[%s2 + $0x298] sm:$0xff]
        %v2690 = vld [vmem:[%s2 + $0x2a0] sm:$0xff]
        %v2691 = vld [vmem:[%s2 + $0x2a8] sm:$0xff]
        %v2692 = vld [vmem:[%s2 + $0x2b0] sm:$0xff]
        %v2693 = vld [vmem:[%s2 + $0x2b8] sm:$0xff]
        %v2694 = vld [vmem:[%s2 + $0x2c0] sm:$0xff]
        %v2695 = vld [vmem:[%s2 + $0x2c8] sm:$0xff]
        %v2696 = vld [vmem:[%s2 + $0x2d0] sm:$0xff]
        %v2697 = vld [vmem:[%s2 + $0x2d8] sm:$0xff]
        %v2698 = vld [vmem:[%s2 + $0x2e0] sm:$0xff]
        %v2699 = vld [vmem:[%s2 + $0x2e8] sm:$0xff]
        %v2700 = vld [vmem:[%s2 + $0x2f0] sm:$0xff]
        %v2701 = vld [vmem:[%s2 + $0x2f8] sm:$0xff]
        %v2702 = vld [vmem:[%s2 + $0x300] sm:$0xff]
        %v2703 = vld [vmem:[%s2 + $0x308] sm:$0xff]
        %v2705 = vsel %vm2291, %v2605, 0
        %2707 = vmatprep.subr.mxu0 0.0
        %2708 = vmatpush1.msra.mxu0 %v2606
        %2709 = vmatprep.subr.mxu0 0.0
        %2710 = vmatpush1.msra.mxu0 %v2607
        %2711 = vmatprep.subr.mxu0 0.0
        %2712 = vmatpush1.msra.mxu0 %v2608
        %2713 = vmatprep.subr.mxu0 0.0
        %2714 = vmatpush1.msra.mxu0 %v2609
        %2715 = vmatprep.subr.mxu0 0.0
        %2716 = vmatpush1.msra.mxu0 %v2610
        %2717 = vmatprep.subr.mxu0 0.0
        %2718 = vmatpush1.msra.mxu0 %v2611
        %2719 = vmatprep.subr.mxu0 0.0
        %2720 = vmatpush1.msra.mxu0 %v2612
        %2721 = vmatprep.subr.mxu0 0.0
        %2722 = vmatpush1.msra.mxu0 %v2613
        %2723 = vmatprep.subr.mxu0 0.0
        %2724 = vmatpush1.msra.mxu0 %v2614
        %2725 = vmatprep.subr.mxu0 0.0
        %2726 = vmatpush1.msra.mxu0 %v2615
        %2727 = vmatprep.subr.mxu0 0.0
        %2728 = vmatpush1.msra.mxu0 %v2616
        %2729 = vmatprep.subr.mxu0 0.0
        %2730 = vmatpush1.msra.mxu0 %v2617
        %2731 = vmatprep.subr.mxu0 0.0
        %2732 = vmatpush1.msra.mxu0 %v2618
        %2733 = vmatprep.subr.mxu0 0.0
        %2734 = vmatpush1.msra.mxu0 %v2619
        %2735 = vmatprep.subr.mxu0 0.0
        %2736 = vmatpush1.msra.mxu0 %v2620
        %2737 = vmatprep.subr.mxu0 0.0
        %2738 = vmatpush1.msra.mxu0 %v2621
        %2739 = vmatprep.subr.mxu0 0.0
        %2740 = vmatpush1.msra.mxu0 %v2622
        %2741 = vmatprep.subr.mxu0 0.0
        %2742 = vmatpush1.msra.mxu0 %v2623
        %2743 = vmatprep.subr.mxu0 0.0
        %2744 = vmatpush1.msra.mxu0 %v2624
        %2745 = vmatprep.subr.mxu0 0.0
        %2746 = vmatpush1.msra.mxu0 %v2625
        %2747 = vmatprep.subr.mxu0 0.0
        %2748 = vmatpush1.msra.mxu0 %v2626
        %2749 = vmatprep.subr.mxu0 0.0
        %2750 = vmatpush1.msra.mxu0 %v2627
        %2751 = vmatprep.subr.mxu0 0.0
        %2752 = vmatpush1.msra.mxu0 %v2628
        %2753 = vmatprep.subr.mxu0 0.0
        %2754 = vmatpush1.msra.mxu0 %v2629
        %2755 = vmatprep.subr.mxu0 0.0
        %2756 = vmatpush1.msra.mxu0 %v2630
        %2757 = vmatprep.subr.mxu0 0.0
        %2758 = vmatpush1.msra.mxu0 %v2631
        %2759 = vmatprep.subr.mxu0 0.0
        %2760 = vmatpush1.msra.mxu0 %v2632
        %2761 = vmatprep.subr.mxu0 0.0
        %2762 = vmatpush1.msra.mxu0 %v2633
        %2763 = vmatprep.subr.mxu0 0.0
        %2764 = vmatpush1.msra.mxu0 %v2634
        %2765 = vmatprep.subr.mxu0 0.0
        %2766 = vmatpush1.msra.mxu0 %v2635
        %2767 = vmatprep.subr.mxu0 0.0
        %2768 = vmatpush1.msra.mxu0 %v2636
        %2769 = vmatprep.subr.mxu0 0.0
        %2770 = vmatpush1.msra.mxu0 %v2637
        %2771 = vmatprep.mubr.f32.mxu0 %v2600
        %2772 = vmatmul.mubr.f32.gmra.mrb[0].mxu0 %v2599
        %v2773 = vpop.f32.mrb[0].mxu0
        %v2774 = vadd.f32 0.0, %v2773
        %v2775 = vpop.f32.mrb[0].mxu0
        %2776 = vdwg.mxu0
        %2777 = vmatprep.subr.mxu0 0.0
        %2778 = vmatpush1.msra.mxu0 %v2638
        %2779 = vmatprep.subr.mxu0 0.0
        %2780 = vmatpush1.msra.mxu0 %v2639
        %2781 = vmatprep.subr.mxu0 0.0
        %2782 = vmatpush1.msra.mxu0 %v2640
        %2783 = vmatprep.subr.mxu0 0.0
        %2784 = vmatpush1.msra.mxu0 %v2641
        %2785 = vmatprep.subr.mxu0 0.0
        %2786 = vmatpush1.msra.mxu0 %v2642
        %2787 = vmatprep.subr.mxu0 0.0
        %2788 = vmatpush1.msra.mxu0 %v2643
        %2789 = vmatprep.subr.mxu0 0.0
        %2790 = vmatpush1.msra.mxu0 %v2644
        %2791 = vmatprep.subr.mxu0 0.0
        %2792 = vmatpush1.msra.mxu0 %v2645
        %2793 = vmatprep.subr.mxu0 0.0
        %2794 = vmatpush1.msra.mxu0 %v2646
        %2795 = vmatprep.subr.mxu0 0.0
        %2796 = vmatpush1.msra.mxu0 %v2647
        %2797 = vmatprep.subr.mxu0 0.0
        %2798 = vmatpush1.msra.mxu0 %v2648
        %2799 = vmatprep.subr.mxu0 0.0
        %2800 = vmatpush1.msra.mxu0 %v2649
        %2801 = vmatprep.subr.mxu0 0.0
        %2802 = vmatpush1.msra.mxu0 %v2650
        %2803 = vmatprep.subr.mxu0 0.0
        %2804 = vmatpush1.msra.mxu0 %v2651
        %2805 = vmatprep.subr.mxu0 0.0
        %2806 = vmatpush1.msra.mxu0 %v2652
        %2807 = vmatprep.subr.mxu0 0.0
        %2808 = vmatpush1.msra.mxu0 %v2653
        %2809 = vmatprep.subr.mxu0 0.0
        %2810 = vmatpush1.msra.mxu0 %v2654
        %2811 = vmatprep.subr.mxu0 0.0
        %2812 = vmatpush1.msra.mxu0 %v2655
        %2813 = vmatprep.subr.mxu0 0.0
        %2814 = vmatpush1.msra.mxu0 %v2656
        %2815 = vmatprep.subr.mxu0 0.0
        %2816 = vmatpush1.msra.mxu0 %v2657
        %2817 = vmatprep.subr.mxu0 0.0
        %2818 = vmatpush1.msra.mxu0 %v2658
        %2819 = vmatprep.subr.mxu0 0.0
        %2820 = vmatpush1.msra.mxu0 %v2659
        %2821 = vmatprep.subr.mxu0 0.0
        %2822 = vmatpush1.msra.mxu0 %v2660
        %2823 = vmatprep.subr.mxu0 0.0
        %2824 = vmatpush1.msra.mxu0 %v2661
        %2825 = vmatprep.subr.mxu0 0.0
        %2826 = vmatpush1.msra.mxu0 %v2662
        %2827 = vmatprep.subr.mxu0 0.0
        %2828 = vmatpush1.msra.mxu0 %v2663
        %2829 = vmatprep.subr.mxu0 0.0
        %2830 = vmatpush1.msra.mxu0 %v2664
        %2831 = vmatprep.subr.mxu0 0.0
        %2832 = vmatpush1.msra.mxu0 %v2665
        %2833 = vmatprep.subr.mxu0 0.0
        %2834 = vmatpush1.msra.mxu0 %v2666
        %2835 = vmatprep.subr.mxu0 0.0
        %2836 = vmatpush1.msra.mxu0 %v2667
        %2837 = vmatprep.subr.mxu0 0.0
        %2838 = vmatpush1.msra.mxu0 %v2668
        %2839 = vmatprep.subr.mxu0 0.0
        %2840 = vmatpush1.msra.mxu0 %v2669
        %2841 = vmatprep.mubr.f32.mxu0 %v2602
        %2842 = vmatmul.mubr.f32.gmra.mrb[0].mxu0 %v2601
        %v2843 = vpop.f32.mrb[0].mxu0
        %v2844 = vadd.f32 %v2774, %v2843
        %v2845 = vpop.f32.mrb[0].mxu0
        %2846 = vdwg.mxu0
        %2847 = vmatprep.subr.mxu0 0.0
        %2848 = vmatpush1.msra.mxu0 %v2670
        %2849 = vmatprep.subr.mxu0 0.0
        %2850 = vmatpush1.msra.mxu0 %v2671
        %2851 = vmatprep.subr.mxu0 0.0
        %2852 = vmatpush1.msra.mxu0 %v2672
        %2853 = vmatprep.subr.mxu0 0.0
        %2854 = vmatpush1.msra.mxu0 %v2673
        %2855 = vmatprep.subr.mxu0 0.0
        %2856 = vmatpush1.msra.mxu0 %v2674
        %2857 = vmatprep.subr.mxu0 0.0
        %2858 = vmatpush1.msra.mxu0 %v2675
        %2859 = vmatprep.subr.mxu0 0.0
        %2860 = vmatpush1.msra.mxu0 %v2676
        %2861 = vmatprep.subr.mxu0 0.0
        %2862 = vmatpush1.msra.mxu0 %v2677
        %2863 = vmatprep.subr.mxu0 0.0
        %2864 = vmatpush1.msra.mxu0 %v2678
        %2865 = vmatprep.subr.mxu0 0.0
        %2866 = vmatpush1.msra.mxu0 %v2679
        %2867 = vmatprep.subr.mxu0 0.0
        %2868 = vmatpush1.msra.mxu0 %v2680
        %2869 = vmatprep.subr.mxu0 0.0
        %2870 = vmatpush1.msra.mxu0 %v2681
        %2871 = vmatprep.subr.mxu0 0.0
        %2872 = vmatpush1.msra.mxu0 %v2682
        %2873 = vmatprep.subr.mxu0 0.0
        %2874 = vmatpush1.msra.mxu0 %v2683
        %2875 = vmatprep.subr.mxu0 0.0
        %2876 = vmatpush1.msra.mxu0 %v2684
        %2877 = vmatprep.subr.mxu0 0.0
        %2878 = vmatpush1.msra.mxu0 %v2685
        %2879 = vmatprep.subr.mxu0 0.0
        %2880 = vmatpush1.msra.mxu0 %v2686
        %2881 = vmatprep.subr.mxu0 0.0
        %2882 = vmatpush1.msra.mxu0 %v2687
        %2883 = vmatprep.subr.mxu0 0.0
        %2884 = vmatpush1.msra.mxu0 %v2688
        %2885 = vmatprep.subr.mxu0 0.0
        %2886 = vmatpush1.msra.mxu0 %v2689
        %2887 = vmatprep.subr.mxu0 0.0
        %2888 = vmatpush1.msra.mxu0 %v2690
        %2889 = vmatprep.subr.mxu0 0.0
        %2890 = vmatpush1.msra.mxu0 %v2691
        %2891 = vmatprep.subr.mxu0 0.0
        %2892 = vmatpush1.msra.mxu0 %v2692
        %2893 = vmatprep.subr.mxu0 0.0
        %2894 = vmatpush1.msra.mxu0 %v2693
        %2895 = vmatprep.subr.mxu0 0.0
        %2896 = vmatpush1.msra.mxu0 %v2694
        %2897 = vmatprep.subr.mxu0 0.0
        %2898 = vmatpush1.msra.mxu0 %v2695
        %2899 = vmatprep.subr.mxu0 0.0
        %2900 = vmatpush1.msra.mxu0 %v2696
        %2901 = vmatprep.subr.mxu0 0.0
        %2902 = vmatpush1.msra.mxu0 %v2697
        %2903 = vmatprep.subr.mxu0 0.0
        %2904 = vmatpush1.msra.mxu0 %v2698
        %2905 = vmatprep.subr.mxu0 0.0
        %2906 = vmatpush1.msra.mxu0 %v2699
        %2907 = vmatprep.subr.mxu0 0.0
        %2908 = vmatpush1.msra.mxu0 %v2700
        %2909 = vmatprep.subr.mxu0 0.0
        %2910 = vmatpush1.msra.mxu0 %v2701
        %2911 = vmatprep.mubr.f32.mxu0 %v2604
        %2912 = vmatmul.mubr.f32.gmra.mrb[0].mxu0 %v2603
        %v2913 = vpop.f32.mrb[0].mxu0
        %v2914 = vadd.f32 %v2844, %v2913
        %v2915 = vpop.f32.mrb[0].mxu0
        %2916 = vdwg.mxu0
        %2917 = vmatprep.subr.mxu0 0.0
        %2918 = vmatpush1.msra.mxu0 %v2702
        %2919 = vmatprep.subr.mxu0 0.0
        %2920 = vmatpush1.msra.mxu0 %v2703
        %2921 = vmatprep.subr.mxu0 0.0
        %2922 = vmatpush1.msra.mxu0 0.0
        %2923 = vmatprep.subr.mxu0 0.0
        %2924 = vmatpush1.msra.mxu0 0.0
        %2925 = vmatprep.subr.mxu0 0.0
        %2926 = vmatpush1.msra.mxu0 0.0
        %2927 = vmatprep.subr.mxu0 0.0
        %2928 = vmatpush1.msra.mxu0 0.0
        %2929 = vmatprep.subr.mxu0 0.0
        %2930 = vmatpush1.msra.mxu0 0.0
        %2931 = vmatprep.subr.mxu0 0.0
        %2932 = vmatpush1.msra.mxu0 0.0
        %2933 = vmatprep.subr.mxu0 0.0
        %2934 = vmatpush1.msra.mxu0 0.0
        %2935 = vmatprep.subr.mxu0 0.0
        %2936 = vmatpush1.msra.mxu0 0.0
        %2937 = vmatprep.subr.mxu0 0.0
        %2938 = vmatpush1.msra.mxu0 0.0
        %2939 = vmatprep.subr.mxu0 0.0
        %2940 = vmatpush1.msra.mxu0 0.0
        %2941 = vmatprep.subr.mxu0 0.0
        %2942 = vmatpush1.msra.mxu0 0.0
        %2943 = vmatprep.subr.mxu0 0.0
        %2944 = vmatpush1.msra.mxu0 0.0
        %2945 = vmatprep.subr.mxu0 0.0
        %2946 = vmatpush1.msra.mxu0 0.0
        %2947 = vmatprep.subr.mxu0 0.0
        %2948 = vmatpush1.msra.mxu0 0.0
        %2949 = vmatprep.subr.mxu0 0.0
        %2950 = vmatpush1.msra.mxu0 0.0
        %2951 = vmatprep.subr.mxu0 0.0
        %2952 = vmatpush1.msra.mxu0 0.0
        %2953 = vmatprep.subr.mxu0 0.0
        %2954 = vmatpush1.msra.mxu0 0.0
        %2955 = vmatprep.subr.mxu0 0.0
        %2956 = vmatpush1.msra.mxu0 0.0
        %2957 = vmatprep.subr.mxu0 0.0
        %2958 = vmatpush1.msra.mxu0 0.0
        %2959 = vmatprep.subr.mxu0 0.0
        %2960 = vmatpush1.msra.mxu0 0.0
        %2961 = vmatprep.subr.mxu0 0.0
        %2962 = vmatpush1.msra.mxu0 0.0
        %2963 = vmatprep.subr.mxu0 0.0
        %2964 = vmatpush1.msra.mxu0 0.0
        %2965 = vmatprep.subr.mxu0 0.0
        %2966 = vmatpush1.msra.mxu0 0.0
        %2967 = vmatprep.subr.mxu0 0.0
        %2968 = vmatpush1.msra.mxu0 0.0
        %2969 = vmatprep.subr.mxu0 0.0
        %2970 = vmatpush1.msra.mxu0 0.0
        %2971 = vmatprep.subr.mxu0 0.0
        %2972 = vmatpush1.msra.mxu0 0.0
        %2973 = vmatprep.subr.mxu0 0.0
        %2974 = vmatpush1.msra.mxu0 0.0
        %2975 = vmatprep.subr.mxu0 0.0
        %2976 = vmatpush1.msra.mxu0 0.0
        %2977 = vmatprep.subr.mxu0 0.0
        %2978 = vmatpush1.msra.mxu0 0.0
        %2979 = vmatprep.subr.mxu0 0.0
        %2980 = vmatpush1.msra.mxu0 0.0
        %2981 = vmatprep.mubr.f32.mxu0 0.0
        %2982 = vmatmul.mubr.f32.gmra.mrb[0].mxu0 %v2705
        %v2983 = vpop.f32.mrb[0].mxu0
        %v2984 = vadd.f32 %v2914, %v2983
        %v2985 = vpop.f32.mrb[0].mxu0
        %2986 = vdwg.mxu0
        %v2987 = vld [vmem:[%s462] sm:$0xff]
        %v2988 = vmul.f32 %v2984, %v2987
        %v2989 = vlaneseq
        %vm2990 = vcmp.ge.s32.totalorder %v2989, 0
        %vm2991 = vcmp.lt.s32.totalorder %v2989, 25
        %vm2992 = vmand %vm2990, %vm2991
        %2993 = vst.msk [vmem:[#allocation5] sm:$0x1] %vm2992, %v2988
        %v2996 = vunpack.c.l.s4 1966171168
        %v2997 = vunpack.c.0.s8 %v2996
        %v2998 = vlaneseq
        %v2999 = vshrl.u32 %v2998, 7
        %v3000 = vsub.s32 %v2997, %v2999
        %v3001 = vrot.slane %v2988, %v3000
        %v3002 = vcombine.high %v3001, %v3001
        %v3004 = vunpack.c.l.s4 1966171168
        %v3005 = vunpack.c.0.s8 %v3004
        %v3006 = vlaneseq
        %v3007 = vshrl.u32 %v3006, 7
        %v3008 = vsub.s32 %v3005, %v3007
        %v3009 = vrot.slane %v3001, %v3008
        %v3011 = vunpack.c.l.s4 1966171168
        %v3012 = vunpack.c.0.s8 %v3011
        %v3013 = vlaneseq
        %v3014 = vshrl.u32 %v3013, 7
        %v3015 = vsub.s32 %v3012, %v3014
        %v3016 = vrot.slane %v3002, %v3015
        %3017 = vrot.lane.b32.xlu0 %v3016, 25
        %v3018 = vpop.permute.xlu0 %3017
        %vm3020 = vcmp.ge.s32.totalorder %v2989, 25
        %vm3021 = vcmp.lt.s32.totalorder %v2989, 50
        %vm3022 = vmand %vm3020, %vm3021
        %3023 = vst.msk [vmem:[#allocation5] sm:$0x1] %vm3022, %v3018
        %v3024 = vcombine.high %v3009, %v3009
        %3025 = vrot.lane.b32.xlu0 %v3024, 50
        %v3026 = vpop.permute.xlu0 %3025
        %vm3028 = vcmp.ge.s32.totalorder %v2989, 50
        %vm3029 = vcmp.lt.s32.totalorder %v2989, 75
        %vm3030 = vmand %vm3028, %vm3029
        %3031 = vst.msk [vmem:[#allocation5] sm:$0x1] %vm3030, %v3026
        %v3032 = vcombine.high %v3016, %v3016
        %3033 = vrot.lane.b32.xlu0 %v3032, 75
        %v3034 = vpop.permute.xlu0 %3033
        %vm3036 = vcmp.ge.s32.totalorder %v2989, 75
        %vm3037 = vcmp.lt.s32.totalorder %v2989, 100
        %vm3038 = vmand %vm3036, %vm3037
        %3039 = vst.msk [vmem:[#allocation5] sm:$0x1] %vm3038, %v3034
        %v3040 = vcombine.high %v2988, %v2988
        %v3042 = vunpack.c.l.s4 1966171168
        %v3043 = vunpack.c.0.s8 %v3042
        %v3044 = vlaneseq
        %v3045 = vshrl.u32 %v3044, 7
        %v3046 = vsub.s32 %v3043, %v3045
        %v3047 = vrot.slane %v3040, %v3046
        %v3049 = vunpack.c.l.s4 1966171168
        %v3050 = vunpack.c.0.s8 %v3049
        %v3051 = vlaneseq
        %v3052 = vshrl.u32 %v3051, 7
        %v3053 = vsub.s32 %v3050, %v3052
        %v3054 = vrot.slane %v3047, %v3053
        %3055 = vrot.lane.b32.xlu0 %v3054, 100
        %v3056 = vpop.permute.xlu0 %3055
        %vm3058 = vcmp.ge.s32.totalorder %v2989, 100
        %vm3059 = vcmp.lt.s32.totalorder %v2989, 125
        %vm3060 = vmand %vm3058, %vm3059
        %3061 = vst.msk [vmem:[#allocation5] sm:$0x1] %vm3060, %v3056
        %v3062 = vcombine.high %v3047, %v3047
        %v3064 = vunpack.c.l.s4 1966171168
        %v3065 = vunpack.c.0.s8 %v3064
        %v3066 = vlaneseq
        %v3067 = vshrl.u32 %v3066, 7
        %v3068 = vsub.s32 %v3065, %v3067
        %v3069 = vrot.slane %v3062, %v3068
        %3070 = vrot.lane.b32.xlu0 %v3069, 125
        %v3071 = vpop.permute.xlu0 %3070
        %v3072 = vrot.slane %v3071, 7
        %v3073 = vsel %vm2391, %v3072, %v3071
        %vm3075 = vcmp.ge.s32.totalorder %v2989, 125
        %vm3076 = vcmp.lt.s32.totalorder %v2989, 150
        %vm3077 = vmand %vm3075, %vm3076
        %3078 = vst.msk [vmem:[#allocation5] sm:$0x3] %vm3077, %v3073
        %v3079 = vcombine.high %v3054, %v3054
        %3080 = vrot.lane.b32.xlu0 %v3079, 22
        %v3081 = vpop.permute.xlu0 %3080
        %vm3083 = vcmp.ge.s32.totalorder %v2989, 22
        %vm3084 = vcmp.lt.s32.totalorder %v2989, 47
        %vm3085 = vmand %vm3083, %vm3084
        %3086 = vst.msk [vmem:[#allocation5 + $0x1] sm:$0x1] %vm3085, %v3081
        %v3087 = vcombine.high %v3069, %v3069
        %3088 = vrot.lane.b32.xlu0 %v3087, 47
        %v3089 = vpop.permute.xlu0 %3088
        %vm3091 = vcmp.ge.s32.totalorder %v2989, 47
        %vm3092 = vcmp.lt.s32.totalorder %v2989, 72
        %vm3093 = vmand %vm3091, %vm3092
        %3094 = vst.msk [vmem:[#allocation5 + $0x1] sm:$0x1] %vm3093, %v3089
        %v3095 = vld [vmem:[#allocation5] sm:$0x3]
        %v3096 = vld [vmem:[%s8] sm:$0xff]
        %v3097 = vld [vmem:[%s8 + $0x8] sm:$0xff]
        %v3098 = vld [vmem:[%s8 + $0x10] sm:$0xff]
        %v3099 = vld [vmem:[%s8 + $0x18] sm:$0xff]
        %v3100 = vld [vmem:[%s8 + $0x20] sm:$0xff]
        %v3101 = vld [vmem:[%s8 + $0x28] sm:$0xff]
        %v3102 = vld [vmem:[%s8 + $0x30] sm:$0xff]
        %v3103 = vld [vmem:[%s8 + $0x38] sm:$0xff]
        %v3104 = vld [vmem:[%s8 + $0x40] sm:$0xff]
        %v3105 = vld [vmem:[%s8 + $0x48] sm:$0xff]
        %v3106 = vld [vmem:[%s8 + $0x50] sm:$0xff]
        %v3107 = vld [vmem:[%s8 + $0x58] sm:$0xff]
        %v3108 = vld [vmem:[%s8 + $0x60] sm:$0xff]
        %v3109 = vld [vmem:[%s8 + $0x68] sm:$0xff]
        %v3110 = vld [vmem:[%s8 + $0x70] sm:$0xff]
        %v3111 = vld [vmem:[%s8 + $0x78] sm:$0xff]
        %v3112 = vld [vmem:[%s8 + $0x80] sm:$0xff]
        %v3113 = vld [vmem:[%s8 + $0x88] sm:$0xff]
        %v3114 = vld [vmem:[%s8 + $0x90] sm:$0xff]
        %v3115 = vld [vmem:[%s8 + $0x98] sm:$0xff]
        %v3116 = vld [vmem:[%s8 + $0xa0] sm:$0xff]
        %v3117 = vld [vmem:[%s8 + $0xa8] sm:$0xff]
        %v3118 = vld [vmem:[%s8 + $0xb0] sm:$0xff]
        %v3119 = vld [vmem:[%s8 + $0xb8] sm:$0xff]
        %v3120 = vld [vmem:[%s8 + $0xc0] sm:$0xff]
        %v3121 = vld [vmem:[%s9] sm:$0x1]
        %v3123 = vlaneseq
        %v3124 = vshrl.u32 %v3123, 7
        %v3125 = vsub.s32 0, %v3124
        %v3126 = vrot.slane %v3095, %v3125
        %v3127 = vlaneseq
        %v3128 = vshrl.u32 %v3127, 7
        %v3129 = vsub.s32 1, %v3128
        %v3130 = vrot.slane %v3095, %v3129
        %v3132 = vsel %vm1124, %v3130, 0
        %3134 = vmatprep.subr.mxu0 0.0
        %3135 = vmatpush1.msra.mxu0 %v3096
        %3136 = vmatprep.subr.mxu0 0.0
        %3137 = vmatpush1.msra.mxu0 %v3097
        %3138 = vmatprep.subr.mxu0 0.0
        %3139 = vmatpush1.msra.mxu0 %v3098
        %3140 = vmatprep.subr.mxu0 0.0
        %3141 = vmatpush1.msra.mxu0 %v3099
        %3142 = vmatprep.subr.mxu0 0.0
        %3143 = vmatpush1.msra.mxu0 %v3100
        %3144 = vmatprep.subr.mxu0 0.0
        %3145 = vmatpush1.msra.mxu0 %v3101
        %3146 = vmatprep.subr.mxu0 0.0
        %3147 = vmatpush1.msra.mxu0 %v3102
        %3148 = vmatprep.subr.mxu0 0.0
        %3149 = vmatpush1.msra.mxu0 %v3103
        %3150 = vmatprep.subr.mxu0 0.0
        %3151 = vmatpush1.msra.mxu0 %v3104
        %3152 = vmatprep.subr.mxu0 0.0
        %3153 = vmatpush1.msra.mxu0 %v3105
        %3154 = vmatprep.subr.mxu0 0.0
        %3155 = vmatpush1.msra.mxu0 %v3106
        %3156 = vmatprep.subr.mxu0 0.0
        %3157 = vmatpush1.msra.mxu0 %v3107
        %3158 = vmatprep.subr.mxu0 0.0
        %3159 = vmatpush1.msra.mxu0 %v3108
        %3160 = vmatprep.subr.mxu0 0.0
        %3161 = vmatpush1.msra.mxu0 %v3109
        %3162 = vmatprep.subr.mxu0 0.0
        %3163 = vmatpush1.msra.mxu0 %v3110
        %3164 = vmatprep.subr.mxu0 0.0
        %3165 = vmatpush1.msra.mxu0 %v3111
        %3166 = vmatprep.subr.mxu0 0.0
        %3167 = vmatpush1.msra.mxu0 %v3112
        %3168 = vmatprep.subr.mxu0 0.0
        %3169 = vmatpush1.msra.mxu0 %v3113
        %3170 = vmatprep.subr.mxu0 0.0
        %3171 = vmatpush1.msra.mxu0 %v3114
        %3172 = vmatprep.subr.mxu0 0.0
        %3173 = vmatpush1.msra.mxu0 %v3115
        %3174 = vmatprep.subr.mxu0 0.0
        %3175 = vmatpush1.msra.mxu0 %v3116
        %3176 = vmatprep.subr.mxu0 0.0
        %3177 = vmatpush1.msra.mxu0 %v3117
        %3178 = vmatprep.subr.mxu0 0.0
        %3179 = vmatpush1.msra.mxu0 %v3118
        %3180 = vmatprep.subr.mxu0 0.0
        %3181 = vmatpush1.msra.mxu0 %v3119
        %3182 = vmatprep.subr.mxu0 0.0
        %3183 = vmatpush1.msra.mxu0 %v3120
        %3184 = vmatprep.subr.mxu0 0.0
        %3185 = vmatpush1.msra.mxu0 0.0
        %3186 = vmatprep.subr.mxu0 0.0
        %3187 = vmatpush1.msra.mxu0 0.0
        %3188 = vmatprep.subr.mxu0 0.0
        %3189 = vmatpush1.msra.mxu0 0.0
        %3190 = vmatprep.subr.mxu0 0.0
        %3191 = vmatpush1.msra.mxu0 0.0
        %3192 = vmatprep.subr.mxu0 0.0
        %3193 = vmatpush1.msra.mxu0 0.0
        %3194 = vmatprep.subr.mxu0 0.0
        %3195 = vmatpush1.msra.mxu0 0.0
        %3196 = vmatprep.subr.mxu0 0.0
        %3197 = vmatpush1.msra.mxu0 0.0
        %3198 = vmatprep.mubr.f32.mxu0 %v3132
        %3199 = vmatmul.mubr.f32.gmra.mrb[0].mxu0 %v3126
        %v3200 = vpop.f32.mrb[0].mxu0
        %v3201 = vadd.f32 %v3121, %v3200
        %v3202 = vpop.f32.mrb[0].mxu0
        %3203 = vdwg.mxu0
        %v3204 = vmax.f32 %v3201, 0.0
        %v3205 = vld [vmem:[%s465] sm:$0x1]
        %v3206 = vmul.f32 %v3204, %v3205
        %v3207 = vld [vmem:[%s11] sm:$0xff]
        %v3208 = vld [vmem:[%s11 + $0x8] sm:$0xff]
        %v3209 = vld [vmem:[%s11 + $0x10] sm:$0xff]
        %v3210 = vld [vmem:[%s11 + $0x18] sm:$0xff]
        %v3211 = vld [vmem:[%s12] sm:$0x1]
        %vm3212 = vcmask 261120
        %v3214 = vsel %vm3212, %v3206, 0
        %3216 = vmatprep.subr.mxu0 0.0
        %3217 = vmatpush1.msra.mxu0 %v3207
        %3218 = vmatprep.subr.mxu0 0.0
        %3219 = vmatpush1.msra.mxu0 %v3208
        %3220 = vmatprep.subr.mxu0 0.0
        %3221 = vmatpush1.msra.mxu0 %v3209
        %3222 = vmatprep.subr.mxu0 0.0
        %3223 = vmatpush1.msra.mxu0 %v3210
        %3224 = vmatprep.subr.mxu0 0.0
        %3225 = vmatpush1.msra.mxu0 0.0
        %3226 = vmatprep.subr.mxu0 0.0
        %3227 = vmatpush1.msra.mxu0 0.0
        %3228 = vmatprep.subr.mxu0 0.0
        %3229 = vmatpush1.msra.mxu0 0.0
        %3230 = vmatprep.subr.mxu0 0.0
        %3231 = vmatpush1.msra.mxu0 0.0
        %3232 = vmatprep.subr.mxu0 0.0
        %3233 = vmatpush1.msra.mxu0 0.0
        %3234 = vmatprep.subr.mxu0 0.0
        %3235 = vmatpush1.msra.mxu0 0.0
        %3236 = vmatprep.subr.mxu0 0.0
        %3237 = vmatpush1.msra.mxu0 0.0
        %3238 = vmatprep.subr.mxu0 0.0
        %3239 = vmatpush1.msra.mxu0 0.0
        %3240 = vmatprep.subr.mxu0 0.0
        %3241 = vmatpush1.msra.mxu0 0.0
        %3242 = vmatprep.subr.mxu0 0.0
        %3243 = vmatpush1.msra.mxu0 0.0
        %3244 = vmatprep.subr.mxu0 0.0
        %3245 = vmatpush1.msra.mxu0 0.0
        %3246 = vmatprep.subr.mxu0 0.0
        %3247 = vmatpush1.msra.mxu0 0.0
        %3248 = vmatprep.subr.mxu0 0.0
        %3249 = vmatpush1.msra.mxu0 0.0
        %3250 = vmatprep.subr.mxu0 0.0
        %3251 = vmatpush1.msra.mxu0 0.0
        %3252 = vmatprep.subr.mxu0 0.0
        %3253 = vmatpush1.msra.mxu0 0.0
        %3254 = vmatprep.subr.mxu0 0.0
        %3255 = vmatpush1.msra.mxu0 0.0
        %3256 = vmatprep.subr.mxu0 0.0
        %3257 = vmatpush1.msra.mxu0 0.0
        %3258 = vmatprep.subr.mxu0 0.0
        %3259 = vmatpush1.msra.mxu0 0.0
        %3260 = vmatprep.subr.mxu0 0.0
        %3261 = vmatpush1.msra.mxu0 0.0
        %3262 = vmatprep.subr.mxu0 0.0
        %3263 = vmatpush1.msra.mxu0 0.0
        %3264 = vmatprep.subr.mxu0 0.0
        %3265 = vmatpush1.msra.mxu0 0.0
        %3266 = vmatprep.subr.mxu0 0.0
        %3267 = vmatpush1.msra.mxu0 0.0
        %3268 = vmatprep.subr.mxu0 0.0
        %3269 = vmatpush1.msra.mxu0 0.0
        %3270 = vmatprep.subr.mxu0 0.0
        %3271 = vmatpush1.msra.mxu0 0.0
        %3272 = vmatprep.subr.mxu0 0.0
        %3273 = vmatpush1.msra.mxu0 0.0
        %3274 = vmatprep.subr.mxu0 0.0
        %3275 = vmatpush1.msra.mxu0 0.0
        %3276 = vmatprep.subr.mxu0 0.0
        %3277 = vmatpush1.msra.mxu0 0.0
        %3278 = vmatprep.subr.mxu0 0.0
        %3279 = vmatpush1.msra.mxu0 0.0
        %3280 = vmatprep.mubr.f32.mxu0 0.0
        %3281 = vmatmul.mubr.f32.gmra.mrb[0].mxu0 %v3214
        %v3282 = vpop.f32.mrb[0].mxu0
        %v3283 = vadd.f32 %v3211, %v3282
        %v3284 = vpop.f32.mrb[0].mxu0
        %3285 = vdwg.mxu0
        %vm3286 = vcmask 73728
        %3287 = vst.msk [vmem:[%s454] sm:$0x1] %vm3286, %v3283
        %s3288 = sand.u32 %s323, 1
        %s3289 = scalar_lea.sflag [#allocation7], %s3288
        %s3290 = sand.u32 %s323, 1
        %s3291 = scalar_lea.vmem [#allocation6], %s3290
        // Predicated region
        $region73: #{bayesian_convnet_forward.1} parent=71 // pred_check
          %p3292 = pneg %p333
        $region74: #{bayesian_convnet_forward.1} parent=71 // pred_check_branch
          %3294 = sbr.rel (%p3292) target = $region76
        $region75: #{bayesian_convnet_forward.1} parent=71 // pred_region
          %s3296 = ssub.s32 16, 16
          %3297 = vsyncadd %s3289, %s3296
          %s3298 = smul.addr %s27, 16
          %s3299 = scalar_lea.hbm %s13, %s3298
          %s3301 = sshll.u32 %s3291, 4
          %s3302 = int_to_ptr.vmem [resolvable:$true] %s3301
          %3304 = dma.vmem_to_hbm [thread:$0]  %s3302, 16, %s3299, %s3289
        $region76: #{bayesian_convnet_forward.1} parent=71 // pred_fallthru
          _
      $region72: #{bayesian_convnet_forward.1} parent=5 // pred_fallthru
        _
      %p3305 = scmp.le.s32.totalorder 2, %s22
      // Predicated region
      $region77: #{bayesian_convnet_forward.1} parent=5 // pred_check
        %p3306 = pneg %p3305
      $region78: #{bayesian_convnet_forward.1} parent=5 // pred_check_branch
        %3308 = sbr.rel (%p3306) target = $region80
      $region79: #{bayesian_convnet_forward.1} parent=5 // pred_region
        %s3309 = ssub.s32 %s22, 2
        // Predicated region
        $region81: #{bayesian_convnet_forward.1} parent=79 // pred_check
          %p3310 = pneg %p339
        $region82: #{bayesian_convnet_forward.1} parent=79 // pred_check_branch
          %3312 = sbr.rel (%p3310) target = $region84
        $region83: #{bayesian_convnet_forward.1} parent=79 // pred_region
          %s3313 = sand.u32 %s324, 1
          %s3314 = scalar_lea.sflag [#allocation7], %s3313
          %s3315 = sand.u32 %s324, 1
          %s3316 = scalar_lea.vmem [#allocation6], %s3315
          %3317 = dma.done %s3314, 16
        $region84: #{bayesian_convnet_forward.1} parent=79 // pred_fallthru
          _
      $region80: #{bayesian_convnet_forward.1} parent=5 // pred_fallthru
        _
    $region6: #{bayesian_convnet_forward.1} parent=1 // loop_footer
      %s26 = sadd.s32 1, %s22
    $region7: #{bayesian_convnet_forward.1} parent=1 // loop_footer_branch
      %21 = sbr.rel target = $region3
    $region8: #{bayesian_convnet_forward.1} parent=1 // loop_exit
      _
    %3318 = vsyncpa [#allocation7], 1
    %s3319 = scalar_lea.sflag [#allocation7], 1
    %3320 = vsyncpa %s3319, 1

</llo_original>
